<compile_context>
chip_gen: v6e
topology: v6e:2x2x1
jax: 0.10.0
libtpu: 0.0.40
codegen_flags: <defaults>
</compile_context>

<pallas_src>
import math

import jax
import jax.numpy as jnp
from jax.experimental import pallas as pl
from jax.experimental.pallas import tpu as pltpu


def _dueling_qnet_kernel(
    x_ref,
    w1f, b1f,          # fused value|adv fc1: [n_dims, 1024] bf16, [1, 1024] bf16
    vw2, vb2,           # value fc2: [512, 512] bf16, [1, 512] bf16
    vw3, vb3,           # value fc3: [512, 256] bf16, [1, 256] bf16
    aw2, ab2,           # adv   fc2: [512, 512] bf16, [1, 512] bf16
    aw3, ab3,           # adv   fc3: [512, 256] bf16, [1, 256] bf16
    w4f, b4f,           # fused fc4: [512, n_out+1] bf16, [1, n_out+1] f32
    out_ref,
):
    n_out = out_ref.shape[1]

    def hidden(h, w_ref, b_ref):
        # bf16 x bf16 on the MXU with f32 accumulation; bias-add + ReLU in
        # bf16 (halves the elementwise epilogue on v6e/v7x, halves the bytes
        # stored/loaded between layers on every generation).
        acc = jnp.dot(h, w_ref[...], preferred_element_type=jnp.float32)
        y = acc.astype(jnp.bfloat16) + b_ref[...]
        return jnp.maximum(y, 0.0)

    x = x_ref[...].astype(jnp.bfloat16)

    # fused layer 1: one matmul feeds both streams
    h1 = hidden(x, w1f, b1f)                    # [TB, 1024] bf16
    v1 = h1[:, :512]
    a1 = h1[:, 512:]

    # per-stream layers 2 and 3 (bf16 activations, no re-casts)
    v2 = hidden(v1, vw2, vb2)                   # [TB, 512] bf16
    a2 = hidden(a1, aw2, ab2)                   # [TB, 512] bf16
    v3 = hidden(v2, vw3, vb3)                   # [TB, 256] bf16
    a3 = hidden(a2, aw3, ab3)                   # [TB, 256] bf16

    # fused layer 4: two static sublane slices of the resident weight, summed
    # in f32 (no [TB, 512] concat copy).  Output layout: [adv | value].
    y4 = (jnp.dot(v3, w4f[:256, :], preferred_element_type=jnp.float32)
          + jnp.dot(a3, w4f[256:, :], preferred_element_type=jnp.float32)
          + b4f[...])                           # [TB, n_out + 1] f32

    a = y4[:, :n_out]                           # lane-aligned at 0
    v = y4[:, n_out:]                           # [TB, 1]
    out_ref[...] = v + (a - jnp.mean(a, axis=1, keepdims=True))


def _round_up(n, m):
    return ((n + m - 1) // m) * m


def dueling_qnet_forward(x, packed_params, *, max_tb=1024):
    """x: [B, n_dims] f32; packed_params: output of pack_params()."""
    B, n_dims = x.shape
    n_out = packed_params[-1].shape[1] - 1      # b4f is [1, n_out + 1]

    # Batch tile: tiny batches run as a single block; otherwise aim for at
    # least 2 grid steps (so v7x's two TensorCores both get work) while
    # keeping the tile a multiple of 8 sublanes and <= max_tb.
    if B <= 8:
        TB = B
    else:
        TB = min(max_tb, _round_up(pl.cdiv(B, 2), 8))
    grid = (pl.cdiv(B, TB),)

    def batch_spec(feat):
        return pl.BlockSpec((TB, feat), lambda i: (i, 0))

    def resident_spec(arr):
        # Constant block index -> fetched once, VMEM-resident across grid steps.
        return pl.BlockSpec(arr.shape, lambda i: (0, 0))

    in_specs = [batch_spec(n_dims)] + [resident_spec(p) for p in packed_params]

    # TODO(synk): for repeated tiny-batch inference (rollouts), wrap the
    # timestep loop in one pallas_call with an outer grid axis so the ~1.7 MiB
    # of weights stays VMEM-resident across steps instead of being re-DMA'd
    # per call.
    return pl.pallas_call(
        _dueling_qnet_kernel,
        out_shape=jax.ShapeDtypeStruct((B, n_out), jnp.float32),
        grid=grid,
        in_specs=in_specs,
        out_specs=batch_spec(n_out),
        compiler_params=pltpu.CompilerParams(
            dimension_semantics=("parallel",),      # megacore-friendly on v7x
            vmem_limit_bytes=48 * 1024 * 1024,      # fits v7x's 64 MiB VMEM
        ),
    )(x, *packed_params)


def init_params(key, n_dims, n_out):
    """PyTorch-Linear-style init. Returns per-layer (weights, biases) in f32.

    Weight order: vw1, vw2, vw3, vw4, aw1, aw2, aw3, aw4 (each [in, out]);
    bias order matches (each [1, out]).
    """
    layer_dims = [
        (n_dims, 512), (512, 512), (512, 256), (256, 1),       # value stream
        (n_dims, 512), (512, 512), (512, 256), (256, n_out),   # adv stream
    ]
    keys = jax.random.split(key, 2 * len(layer_dims))
    ws, bs = [], []
    for i, (fan_in, fan_out) in enumerate(layer_dims):
        bound = 1.0 / math.sqrt(fan_in)
        ws.append(jax.random.uniform(
            keys[2 * i], (fan_in, fan_out), jnp.float32, -bound, bound))
        bs.append(jax.random.uniform(
            keys[2 * i + 1], (1, fan_out), jnp.float32, -bound, bound))
    return tuple(ws), tuple(bs)


def pack_params(ws, bs, w_dtype=jnp.bfloat16):
    """Fuse fc1 (concat) and fc4 (block, [adv | value] output order);
    cast weights + hidden-layer biases to bf16, keep the fc4 bias in f32."""
    vw1, vw2, vw3, vw4, aw1, aw2, aw3, aw4 = ws
    vb1, vb2, vb3, vb4, ab1, ab2, ab3, ab4 = bs
    n_out = aw4.shape[1]

    w1f = jnp.concatenate([vw1, aw1], axis=1)               # [n_dims, 1024]
    b1f = jnp.concatenate([vb1, ab1], axis=1)               # [1, 1024]

    # Fused fc4 with output layout [adv(0:n_out), value(n_out)]:
    #   rows   0:256 are fed by v3 -> value column (last)
    #   rows 256:512 are fed by a3 -> adv columns (0:n_out)
    w4f = jnp.zeros((512, n_out + 1), jnp.float32)
    w4f = w4f.at[:256, n_out:].set(vw4)
    w4f = w4f.at[256:, :n_out].set(aw4)
    b4f = jnp.concatenate([ab4, vb4], axis=1)               # [1, n_out + 1]

    hidden_w = [w1f, vw2, vw3, aw2, aw3]
    hidden_b = [b1f, vb2, vb3, ab2, ab3]

    packed = []
    for w, b in zip(hidden_w, hidden_b):
        packed.append(w.astype(w_dtype))          # bf16 weights (halve DMA)
        packed.append(b.astype(w_dtype))          # bf16 biases -> bf16 epilogue
    packed.append(w4f.astype(w_dtype))
    packed.append(b4f.astype(jnp.float32))        # final layer stays f32
    return tuple(packed)


def reference_forward(x, ws, bs, w_dtype=jnp.bfloat16):
    """Pure-JAX reference following the original (unfused) PyTorch structure,
    using the same numerics as the kernel: bf16 weights, bf16 bias+ReLU for
    the hidden layers, f32 fc4 + dueling combine."""
    vw1, vw2, vw3, vw4, aw1, aw2, aw3, aw4 = [w.astype(w_dtype) for w in ws]
    vb1, vb2, vb3, vb4, ab1, ab2, ab3, ab4 = bs

    def hidden(h, w, b):
        y = jnp.dot(h, w, preferred_element_type=jnp.float32)
        y = y.astype(w_dtype) + b.astype(w_dtype)
        return jnp.maximum(y, 0.0)

    def final(h, w, b):
        return jnp.dot(h, w, preferred_element_type=jnp.float32) + b

    xb = x.astype(w_dtype)
    v = hidden(xb, vw1, vb1)
    v = hidden(v, vw2, vb2)
    v = hidden(v, vw3, vb3)
    v = final(v, vw4, vb4)                        # [B, 1]
    a = hidden(xb, aw1, ab1)
    a = hidden(a, aw2, ab2)
    a = hidden(a, aw3, ab3)
    a = final(a, aw4, ab4)                        # [B, n_out]
    return v + (a - jnp.mean(a, axis=1, keepdims=True))


if __name__ == "__main__":
    B, n_dims, n_out = 2, 32, 8

    key = jax.random.PRNGKey(0)
    kx, kp = jax.random.split(key)
    x = jax.random.normal(kx, (B, n_dims), dtype=jnp.float32)

    ws, bs = init_params(kp, n_dims, n_out)
    packed = pack_params(ws, bs, w_dtype=jnp.bfloat16)

    out = dueling_qnet_forward(x, packed)
    out = jax.block_until_ready(out)

    ref = reference_forward(x, ws, bs, w_dtype=jnp.bfloat16)
    assert out.shape == (B, n_out)
    assert jnp.allclose(out, ref, atol=2e-2, rtol=2e-2), "mismatch vs reference"

    print("KERNEL_OK")
</pallas_src>

<mosaic_0001>
module attributes {stable_mosaic.version = 11 : i64} {
  func.func @_dueling_qnet_kernel(%arg0: i32, %arg1: memref<2x32xf32, #tpu.memory_space<vmem>>, %arg2: memref<32x1024xbf16, #tpu.memory_space<vmem>>, %arg3: memref<1x1024xbf16, #tpu.memory_space<vmem>>, %arg4: memref<512x512xbf16, #tpu.memory_space<vmem>>, %arg5: memref<1x512xbf16, #tpu.memory_space<vmem>>, %arg6: memref<512x256xbf16, #tpu.memory_space<vmem>>, %arg7: memref<1x256xbf16, #tpu.memory_space<vmem>>, %arg8: memref<512x512xbf16, #tpu.memory_space<vmem>>, %arg9: memref<1x512xbf16, #tpu.memory_space<vmem>>, %arg10: memref<512x256xbf16, #tpu.memory_space<vmem>>, %arg11: memref<1x256xbf16, #tpu.memory_space<vmem>>, %arg12: memref<512x9xbf16, #tpu.memory_space<vmem>>, %arg13: memref<1x9xf32, #tpu.memory_space<vmem>>, %arg14: memref<2x8xf32, #tpu.memory_space<vmem>>) attributes {dimension_semantics = [#tpu.dimension_semantics<parallel>], iteration_bounds = array<i64: 1>, scalar_prefetch = 0 : i64, scratch_operands = 0 : i64, tpu.core_type = #tpu.core_type<tc>, window_params = [{transform_indices = @transform_0, window_bounds = array<i64: 2, 32>}, {pipeline_mode = #tpu.pipeline_mode<synchronous>, transform_indices = @transform_1, window_bounds = array<i64: 32, 1024>}, {pipeline_mode = #tpu.pipeline_mode<synchronous>, transform_indices = @transform_2, window_bounds = array<i64: 1, 1024>}, {pipeline_mode = #tpu.pipeline_mode<synchronous>, transform_indices = @transform_3, window_bounds = array<i64: 512, 512>}, {pipeline_mode = #tpu.pipeline_mode<synchronous>, transform_indices = @transform_4, window_bounds = array<i64: 1, 512>}, {pipeline_mode = #tpu.pipeline_mode<synchronous>, transform_indices = @transform_5, window_bounds = array<i64: 512, 256>}, {pipeline_mode = #tpu.pipeline_mode<synchronous>, transform_indices = @transform_6, window_bounds = array<i64: 1, 256>}, {pipeline_mode = #tpu.pipeline_mode<synchronous>, transform_indices = @transform_7, window_bounds = array<i64: 512, 512>}, {pipeline_mode = #tpu.pipeline_mode<synchronous>, transform_indices = @transform_8, window_bounds = array<i64: 1, 512>}, {pipeline_mode = #tpu.pipeline_mode<synchronous>, transform_indices = @transform_9, window_bounds = array<i64: 512, 256>}, {pipeline_mode = #tpu.pipeline_mode<synchronous>, transform_indices = @transform_10, window_bounds = array<i64: 1, 256>}, {pipeline_mode = #tpu.pipeline_mode<synchronous>, transform_indices = @transform_11, window_bounds = array<i64: 512, 9>}, {pipeline_mode = #tpu.pipeline_mode<synchronous>, transform_indices = @transform_12, window_bounds = array<i64: 1, 9>}, {transform_indices = @transform_13, window_bounds = array<i64: 2, 8>}]} {
    %c0 = arith.constant 0 : index
    %c0_0 = arith.constant 0 : index
    %0 = vector.load %arg1[%c0, %c0_0] : memref<2x32xf32, #tpu.memory_space<vmem>>, vector<2x32xf32>
    %1 = arith.truncf %0 : vector<2x32xf32> to vector<2x32xbf16>
    %c0_1 = arith.constant 0 : index
    %c0_2 = arith.constant 0 : index
    %2 = vector.load %arg2[%c0_1, %c0_2] : memref<32x1024xbf16, #tpu.memory_space<vmem>>, vector<32x1024xbf16>
    %cst = arith.constant dense<0.000000e+00> : vector<2x1024xf32>
    %3 = tpu.matmul %1, %2, %cst {dimension_numbers = #tpu.dot_dimension_numbers<[1], [0], [0], [1], [0, 0, 1, 1], [], []>} : vector<2x32xbf16>, vector<32x1024xbf16>, vector<2x1024xf32> -> vector<2x1024xf32>
    %4 = arith.truncf %3 : vector<2x1024xf32> to vector<2x1024xbf16>
    %c0_3 = arith.constant 0 : index
    %c0_4 = arith.constant 0 : index
    %5 = vector.load %arg3[%c0_3, %c0_4] : memref<1x1024xbf16, #tpu.memory_space<vmem>>, vector<1x1024xbf16>
    %6 = vector.broadcast %5 : vector<1x1024xbf16> to vector<2x1024xbf16>
    %7 = arith.addf %4, %6 : vector<2x1024xbf16>
    %cst_5 = arith.constant 0.000000e+00 : bf16
    %8 = vector.broadcast %cst_5 : bf16 to vector<2x1024xbf16>
    %9 = arith.maximumf %7, %8 : vector<2x1024xbf16>
    %10 = vector.extract_strided_slice %9 {offsets = [0, 0], sizes = [2, 512], strides = [1, 1]} : vector<2x1024xbf16> to vector<2x512xbf16>
    %11 = vector.extract_strided_slice %9 {offsets = [0, 512], sizes = [2, 512], strides = [1, 1]} : vector<2x1024xbf16> to vector<2x512xbf16>
    %c0_6 = arith.constant 0 : index
    %c0_7 = arith.constant 0 : index
    %12 = vector.load %arg4[%c0_6, %c0_7] : memref<512x512xbf16, #tpu.memory_space<vmem>>, vector<512x512xbf16>
    %cst_8 = arith.constant dense<0.000000e+00> : vector<2x512xf32>
    %13 = tpu.matmul %10, %12, %cst_8 {dimension_numbers = #tpu.dot_dimension_numbers<[1], [0], [0], [1], [0, 0, 1, 1], [], []>} : vector<2x512xbf16>, vector<512x512xbf16>, vector<2x512xf32> -> vector<2x512xf32>
    %14 = arith.truncf %13 : vector<2x512xf32> to vector<2x512xbf16>
    %c0_9 = arith.constant 0 : index
    %c0_10 = arith.constant 0 : index
    %15 = vector.load %arg5[%c0_9, %c0_10] : memref<1x512xbf16, #tpu.memory_space<vmem>>, vector<1x512xbf16>
    %16 = vector.broadcast %15 : vector<1x512xbf16> to vector<2x512xbf16>
    %17 = arith.addf %14, %16 : vector<2x512xbf16>
    %cst_11 = arith.constant 0.000000e+00 : bf16
    %18 = vector.broadcast %cst_11 : bf16 to vector<2x512xbf16>
    %19 = arith.maximumf %17, %18 : vector<2x512xbf16>
    %c0_12 = arith.constant 0 : index
    %c0_13 = arith.constant 0 : index
    %20 = vector.load %arg8[%c0_12, %c0_13] : memref<512x512xbf16, #tpu.memory_space<vmem>>, vector<512x512xbf16>
    %cst_14 = arith.constant dense<0.000000e+00> : vector<2x512xf32>
    %21 = tpu.matmul %11, %20, %cst_14 {dimension_numbers = #tpu.dot_dimension_numbers<[1], [0], [0], [1], [0, 0, 1, 1], [], []>} : vector<2x512xbf16>, vector<512x512xbf16>, vector<2x512xf32> -> vector<2x512xf32>
    %22 = arith.truncf %21 : vector<2x512xf32> to vector<2x512xbf16>
    %c0_15 = arith.constant 0 : index
    %c0_16 = arith.constant 0 : index
    %23 = vector.load %arg9[%c0_15, %c0_16] : memref<1x512xbf16, #tpu.memory_space<vmem>>, vector<1x512xbf16>
    %24 = vector.broadcast %23 : vector<1x512xbf16> to vector<2x512xbf16>
    %25 = arith.addf %22, %24 : vector<2x512xbf16>
    %cst_17 = arith.constant 0.000000e+00 : bf16
    %26 = vector.broadcast %cst_17 : bf16 to vector<2x512xbf16>
    %27 = arith.maximumf %25, %26 : vector<2x512xbf16>
    %c0_18 = arith.constant 0 : index
    %c0_19 = arith.constant 0 : index
    %28 = vector.load %arg6[%c0_18, %c0_19] : memref<512x256xbf16, #tpu.memory_space<vmem>>, vector<512x256xbf16>
    %cst_20 = arith.constant dense<0.000000e+00> : vector<2x256xf32>
    %29 = tpu.matmul %19, %28, %cst_20 {dimension_numbers = #tpu.dot_dimension_numbers<[1], [0], [0], [1], [0, 0, 1, 1], [], []>} : vector<2x512xbf16>, vector<512x256xbf16>, vector<2x256xf32> -> vector<2x256xf32>
    %30 = arith.truncf %29 : vector<2x256xf32> to vector<2x256xbf16>
    %c0_21 = arith.constant 0 : index
    %c0_22 = arith.constant 0 : index
    %31 = vector.load %arg7[%c0_21, %c0_22] : memref<1x256xbf16, #tpu.memory_space<vmem>>, vector<1x256xbf16>
    %32 = vector.broadcast %31 : vector<1x256xbf16> to vector<2x256xbf16>
    %33 = arith.addf %30, %32 : vector<2x256xbf16>
    %cst_23 = arith.constant 0.000000e+00 : bf16
    %34 = vector.broadcast %cst_23 : bf16 to vector<2x256xbf16>
    %35 = arith.maximumf %33, %34 : vector<2x256xbf16>
    %c0_24 = arith.constant 0 : index
    %c0_25 = arith.constant 0 : index
    %36 = vector.load %arg10[%c0_24, %c0_25] : memref<512x256xbf16, #tpu.memory_space<vmem>>, vector<512x256xbf16>
    %cst_26 = arith.constant dense<0.000000e+00> : vector<2x256xf32>
    %37 = tpu.matmul %27, %36, %cst_26 {dimension_numbers = #tpu.dot_dimension_numbers<[1], [0], [0], [1], [0, 0, 1, 1], [], []>} : vector<2x512xbf16>, vector<512x256xbf16>, vector<2x256xf32> -> vector<2x256xf32>
    %38 = arith.truncf %37 : vector<2x256xf32> to vector<2x256xbf16>
    %c0_27 = arith.constant 0 : index
    %c0_28 = arith.constant 0 : index
    %39 = vector.load %arg11[%c0_27, %c0_28] : memref<1x256xbf16, #tpu.memory_space<vmem>>, vector<1x256xbf16>
    %40 = vector.broadcast %39 : vector<1x256xbf16> to vector<2x256xbf16>
    %41 = arith.addf %38, %40 : vector<2x256xbf16>
    %cst_29 = arith.constant 0.000000e+00 : bf16
    %42 = vector.broadcast %cst_29 : bf16 to vector<2x256xbf16>
    %43 = arith.maximumf %41, %42 : vector<2x256xbf16>
    %c0_30 = arith.constant 0 : index
    %c0_31 = arith.constant 0 : index
    %44 = vector.load %arg12[%c0_30, %c0_31] : memref<512x9xbf16, #tpu.memory_space<vmem>>, vector<256x9xbf16>
    %cst_32 = arith.constant dense<0.000000e+00> : vector<2x9xf32>
    %45 = tpu.matmul %35, %44, %cst_32 {dimension_numbers = #tpu.dot_dimension_numbers<[1], [0], [0], [1], [0, 0, 1, 1], [], []>} : vector<2x256xbf16>, vector<256x9xbf16>, vector<2x9xf32> -> vector<2x9xf32>
    %c256 = arith.constant 256 : index
    %c0_33 = arith.constant 0 : index
    %46 = vector.load %arg12[%c256, %c0_33] : memref<512x9xbf16, #tpu.memory_space<vmem>>, vector<256x9xbf16>
    %cst_34 = arith.constant dense<0.000000e+00> : vector<2x9xf32>
    %47 = tpu.matmul %43, %46, %cst_34 {dimension_numbers = #tpu.dot_dimension_numbers<[1], [0], [0], [1], [0, 0, 1, 1], [], []>} : vector<2x256xbf16>, vector<256x9xbf16>, vector<2x9xf32> -> vector<2x9xf32>
    %48 = arith.addf %45, %47 : vector<2x9xf32>
    %c0_35 = arith.constant 0 : index
    %c0_36 = arith.constant 0 : index
    %49 = vector.load %arg13[%c0_35, %c0_36] : memref<1x9xf32, #tpu.memory_space<vmem>>, vector<1x9xf32>
    %50 = vector.broadcast %49 : vector<1x9xf32> to vector<2x9xf32>
    %51 = arith.addf %48, %50 : vector<2x9xf32>
    %52 = vector.extract_strided_slice %51 {offsets = [0, 0], sizes = [2, 8], strides = [1, 1]} : vector<2x9xf32> to vector<2x8xf32>
    %53 = vector.extract_strided_slice %51 {offsets = [0, 8], sizes = [2, 1], strides = [1, 1]} : vector<2x9xf32> to vector<2x1xf32>
    %cst_37 = arith.constant dense<0.000000e+00> : vector<2xf32>
    %54 = vector.multi_reduction <add>, %52, %cst_37 [1] : vector<2x8xf32> to vector<2xf32>
    %55 = vector.shape_cast %54 : vector<2xf32> to vector<2x1xf32>
    %cst_38 = arith.constant 8.000000e+00 : f32
    %56 = vector.broadcast %cst_38 : f32 to vector<2x1xf32>
    %57 = arith.divf %55, %56 : vector<2x1xf32>
    %58 = vector.broadcast %57 : vector<2x1xf32> to vector<2x8xf32>
    %59 = arith.subf %52, %58 : vector<2x8xf32>
    %60 = vector.broadcast %53 : vector<2x1xf32> to vector<2x8xf32>
    %61 = arith.addf %60, %59 : vector<2x8xf32>
    %c0_39 = arith.constant 0 : index
    %c0_40 = arith.constant 0 : index
    %62 = vector.load %arg14[%c0_39, %c0_40] : memref<2x8xf32, #tpu.memory_space<vmem>>, vector<2x8xf32>
    tpu.vector_store %arg14[%c0_39, %c0_40], %61 {strides = array<i32>} : memref<2x8xf32, #tpu.memory_space<vmem>>, vector<2x8xf32>,
    return
  }
  func.func @transform_0(%arg0: i32) -> (i32, i32) {
    %c0_i32 = arith.constant 0 : i32
    %c0_i32_0 = arith.constant 0 : i32
    return %arg0, %c0_i32 : i32, i32
  }
  func.func @transform_1(%arg0: i32) -> (i32, i32) {
    %c0_i32 = arith.constant 0 : i32
    %c0_i32_0 = arith.constant 0 : i32
    %c0_i32_1 = arith.constant 0 : i32
    return %c0_i32, %c0_i32_0 : i32, i32
  }
  func.func @transform_2(%arg0: i32) -> (i32, i32) {
    %c0_i32 = arith.constant 0 : i32
    %c0_i32_0 = arith.constant 0 : i32
    %c0_i32_1 = arith.constant 0 : i32
    return %c0_i32, %c0_i32_0 : i32, i32
  }
  func.func @transform_3(%arg0: i32) -> (i32, i32) {
    %c0_i32 = arith.constant 0 : i32
    %c0_i32_0 = arith.constant 0 : i32
    %c0_i32_1 = arith.constant 0 : i32
    return %c0_i32, %c0_i32_0 : i32, i32
  }
  func.func @transform_4(%arg0: i32) -> (i32, i32) {
    %c0_i32 = arith.constant 0 : i32
    %c0_i32_0 = arith.constant 0 : i32
    %c0_i32_1 = arith.constant 0 : i32
    return %c0_i32, %c0_i32_0 : i32, i32
  }
  func.func @transform_5(%arg0: i32) -> (i32, i32) {
    %c0_i32 = arith.constant 0 : i32
    %c0_i32_0 = arith.constant 0 : i32
    %c0_i32_1 = arith.constant 0 : i32
    return %c0_i32, %c0_i32_0 : i32, i32
  }
  func.func @transform_6(%arg0: i32) -> (i32, i32) {
    %c0_i32 = arith.constant 0 : i32
    %c0_i32_0 = arith.constant 0 : i32
    %c0_i32_1 = arith.constant 0 : i32
    return %c0_i32, %c0_i32_0 : i32, i32
  }
  func.func @transform_7(%arg0: i32) -> (i32, i32) {
    %c0_i32 = arith.constant 0 : i32
    %c0_i32_0 = arith.constant 0 : i32
    %c0_i32_1 = arith.constant 0 : i32
    return %c0_i32, %c0_i32_0 : i32, i32
  }
  func.func @transform_8(%arg0: i32) -> (i32, i32) {
    %c0_i32 = arith.constant 0 : i32
    %c0_i32_0 = arith.constant 0 : i32
    %c0_i32_1 = arith.constant 0 : i32
    return %c0_i32, %c0_i32_0 : i32, i32
  }
  func.func @transform_9(%arg0: i32) -> (i32, i32) {
    %c0_i32 = arith.constant 0 : i32
    %c0_i32_0 = arith.constant 0 : i32
    %c0_i32_1 = arith.constant 0 : i32
    return %c0_i32, %c0_i32_0 : i32, i32
  }
  func.func @transform_10(%arg0: i32) -> (i32, i32) {
    %c0_i32 = arith.constant 0 : i32
    %c0_i32_0 = arith.constant 0 : i32
    %c0_i32_1 = arith.constant 0 : i32
    return %c0_i32, %c0_i32_0 : i32, i32
  }
  func.func @transform_11(%arg0: i32) -> (i32, i32) {
    %c0_i32 = arith.constant 0 : i32
    %c0_i32_0 = arith.constant 0 : i32
    %c0_i32_1 = arith.constant 0 : i32
    return %c0_i32, %c0_i32_0 : i32, i32
  }
  func.func @transform_12(%arg0: i32) -> (i32, i32) {
    %c0_i32 = arith.constant 0 : i32
    %c0_i32_0 = arith.constant 0 : i32
    %c0_i32_1 = arith.constant 0 : i32
    return %c0_i32, %c0_i32_0 : i32, i32
  }
  func.func @transform_13(%arg0: i32) -> (i32, i32) {
    %c0_i32 = arith.constant 0 : i32
    %c0_i32_0 = arith.constant 0 : i32
    return %arg0, %c0_i32 : i32, i32
  }
}

</mosaic_0001>

<llo_original>
// kernel: tpu_custom_call.1
$region0: #{tpu_custom_call.1}
  #allocation0 [shape = 'u32[]', space=smem, size = 0x4, offset = 0x4, fixed_abs, tag = 'smem constant byte address 0x4 - core index']
  #allocation1 [shape = 'u32[144,128]{1,0:T(1,128)}', space=vmem, size = 0x12000, scoped, tag = 'internal scratch']
  %s0 = inlined_call_operand.vmem [shape: f32[2,32], index: 0, kind: input, shape index: {}]
  %s1 = inlined_call_operand.vmem [shape: bf16[32,1024], index: 1, kind: input, shape index: {}]
  %s2 = inlined_call_operand.vmem [shape: bf16[1,1024], index: 2, kind: input, shape index: {}]
  %s3 = inlined_call_operand.hbm [shape: bf16[512,512], index: 3, kind: input, shape index: {}]
  %s4 = inlined_call_operand.vmem [shape: bf16[1,512], index: 4, kind: input, shape index: {}]
  %s5 = inlined_call_operand.hbm [shape: bf16[512,256], index: 5, kind: input, shape index: {}]
  %s6 = inlined_call_operand.vmem [shape: bf16[1,256], index: 6, kind: input, shape index: {}]
  %s7 = inlined_call_operand.hbm [shape: bf16[512,512], index: 7, kind: input, shape index: {}]
  %s8 = inlined_call_operand.vmem [shape: bf16[1,512], index: 8, kind: input, shape index: {}]
  %s9 = inlined_call_operand.hbm [shape: bf16[512,256], index: 9, kind: input, shape index: {}]
  %s10 = inlined_call_operand.vmem [shape: bf16[1,256], index: 10, kind: input, shape index: {}]
  %s11 = inlined_call_operand.vmem [shape: bf16[512,9], index: 11, kind: input, shape index: {}]
  %s12 = inlined_call_operand.vmem [shape: f32[1,9], index: 12, kind: input, shape index: {}]
  %s13 = inlined_call_operand.hbm [shape: f32[2,8], index: 13, kind: output, shape index: {}]
  %s14 = sld [smem:[#allocation0]]
  $region78: #{tpu_custom_call.1} parent=0
    _
  %s16 = ssub.s32 1, %s14
  %s17 = scalar_select 0, %s16, %s14
  $region1: #{tpu_custom_call.1} parent=0
    #allocation2 [shape = 'u8[524288]{0}', space=vmem, size = 0x80000, scoped, tag = 'input window, operand 3, single buffered']
    #allocation3 [shape = 's32[1]{0}', space=sflag, size = 0x4, scoped, tag = 'scoped memory for tpu_custom_call.1']
    #allocation4 [shape = 's32[1]{0}', space=sflag, size = 0x4, scoped, tag = 'scoped memory for tpu_custom_call.1']
    #allocation5 [shape = 'u8[262144]{0}', space=vmem, size = 0x40000, scoped, tag = 'input window, operand 5, single buffered']
    #allocation6 [shape = 's32[1]{0}', space=sflag, size = 0x4, scoped, tag = 'scoped memory for tpu_custom_call.1']
    #allocation7 [shape = 'u8[524288]{0}', space=vmem, size = 0x80000, scoped, tag = 'input window, operand 7, single buffered']
    #allocation8 [shape = 'u8[262144]{0}', space=vmem, size = 0x40000, scoped, tag = 'input window, operand 9, single buffered']
    #allocation9 [shape = 's32[1]{0}', space=sflag, size = 0x4, scoped, tag = 'scoped memory for tpu_custom_call.1']
    #allocation10 [shape = 'u8[1024]{0}', space=vmem, size = 0x400, scoped, tag = 'output window, operand 0, single buffered']
    %18 = vsyncpa [#allocation3], 0
    %19 = vsyncpa [#allocation6], 0
    %20 = vsyncpa [#allocation9], 0
    %21 = vsyncpa [#allocation4], 0
    // Predicated region
    $region2: #{tpu_custom_call.1} parent=1 // pred_check
      _
    $region3: #{tpu_custom_call.1} parent=1 // pred_check_branch
      %23 = sbr.rel (0) target = $region5
    $region4: #{tpu_custom_call.1} parent=1 // pred_region
      _
    $region5: #{tpu_custom_call.1} parent=1 // pred_fallthru
      _
    // Predicated region
    $region6: #{tpu_custom_call.1} parent=1 // pred_check
      _
    $region7: #{tpu_custom_call.1} parent=1 // pred_check_branch
      %25 = sbr.rel (0) target = $region9
    $region8: #{tpu_custom_call.1} parent=1 // pred_region
      _
    $region9: #{tpu_custom_call.1} parent=1 // pred_fallthru
      _
    // Predicated region
    $region10: #{tpu_custom_call.1} parent=1 // pred_check
      _
    $region11: #{tpu_custom_call.1} parent=1 // pred_check_branch
      %27 = sbr.rel (0) target = $region13
    $region12: #{tpu_custom_call.1} parent=1 // pred_region
      _
    $region13: #{tpu_custom_call.1} parent=1 // pred_fallthru
      _
    // Predicated region
    $region14: #{tpu_custom_call.1} parent=1 // pred_check
      _
    $region15: #{tpu_custom_call.1} parent=1 // pred_check_branch
      %29 = sbr.rel (0) target = $region17
    $region16: #{tpu_custom_call.1} parent=1 // pred_region
      %s31 = ssub.s32 16384, 16384
      %32 = vsyncadd [#allocation3], %s31
      %s33 = sshll.u32 [#allocation2], 4
      %s34 = int_to_ptr.vmem [resolvable:$true] %s33
      %39 = dma.hbm_to_vmem [thread:$0]  %s3, 16384, %s34, [#allocation3], 256, 256, 16
    $region17: #{tpu_custom_call.1} parent=1 // pred_fallthru
      _
    // Predicated region
    $region18: #{tpu_custom_call.1} parent=1 // pred_check
      _
    $region19: #{tpu_custom_call.1} parent=1 // pred_check_branch
      %41 = sbr.rel (0) target = $region21
    $region20: #{tpu_custom_call.1} parent=1 // pred_region
      _
    $region21: #{tpu_custom_call.1} parent=1 // pred_fallthru
      _
    // Predicated region
    $region22: #{tpu_custom_call.1} parent=1 // pred_check
      _
    $region23: #{tpu_custom_call.1} parent=1 // pred_check_branch
      %43 = sbr.rel (0) target = $region25
    $region24: #{tpu_custom_call.1} parent=1 // pred_region
      %s45 = ssub.s32 8192, 8192
      %46 = vsyncadd [#allocation6], %s45
      %s47 = sshll.u32 [#allocation5], 4
      %s48 = int_to_ptr.vmem [resolvable:$true] %s47
      %53 = dma.hbm_to_vmem [thread:$0]  %s5, 8192, %s48, [#allocation6], 128, 128, 8
    $region25: #{tpu_custom_call.1} parent=1 // pred_fallthru
      _
    // Predicated region
    $region26: #{tpu_custom_call.1} parent=1 // pred_check
      _
    $region27: #{tpu_custom_call.1} parent=1 // pred_check_branch
      %55 = sbr.rel (0) target = $region29
    $region28: #{tpu_custom_call.1} parent=1 // pred_region
      _
    $region29: #{tpu_custom_call.1} parent=1 // pred_fallthru
      _
    // Predicated region
    $region30: #{tpu_custom_call.1} parent=1 // pred_check
      _
    $region31: #{tpu_custom_call.1} parent=1 // pred_check_branch
      %57 = sbr.rel (0) target = $region33
    $region32: #{tpu_custom_call.1} parent=1 // pred_region
      %s59 = ssub.s32 16384, 16384
      %60 = vsyncadd [#allocation6], %s59
      %s61 = sshll.u32 [#allocation7], 4
      %s62 = int_to_ptr.vmem [resolvable:$true] %s61
      %67 = dma.hbm_to_vmem [thread:$0]  %s7, 16384, %s62, [#allocation6], 256, 256, 16
    $region33: #{tpu_custom_call.1} parent=1 // pred_fallthru
      _
    // Predicated region
    $region34: #{tpu_custom_call.1} parent=1 // pred_check
      _
    $region35: #{tpu_custom_call.1} parent=1 // pred_check_branch
      %69 = sbr.rel (0) target = $region37
    $region36: #{tpu_custom_call.1} parent=1 // pred_region
      _
    $region37: #{tpu_custom_call.1} parent=1 // pred_fallthru
      _
    // Predicated region
    $region38: #{tpu_custom_call.1} parent=1 // pred_check
      _
    $region39: #{tpu_custom_call.1} parent=1 // pred_check_branch
      %71 = sbr.rel (0) target = $region41
    $region40: #{tpu_custom_call.1} parent=1 // pred_region
      %s73 = ssub.s32 8192, 8192
      %74 = vsyncadd [#allocation9], %s73
      %s75 = sshll.u32 [#allocation8], 4
      %s76 = int_to_ptr.vmem [resolvable:$true] %s75
      %81 = dma.hbm_to_vmem [thread:$0]  %s9, 8192, %s76, [#allocation9], 128, 128, 8
    $region41: #{tpu_custom_call.1} parent=1 // pred_fallthru
      _
    // Predicated region
    $region42: #{tpu_custom_call.1} parent=1 // pred_check
      _
    $region43: #{tpu_custom_call.1} parent=1 // pred_check_branch
      %83 = sbr.rel (0) target = $region45
    $region44: #{tpu_custom_call.1} parent=1 // pred_region
      _
    $region45: #{tpu_custom_call.1} parent=1 // pred_fallthru
      _
    // Predicated region
    $region46: #{tpu_custom_call.1} parent=1 // pred_check
      _
    $region47: #{tpu_custom_call.1} parent=1 // pred_check_branch
      %85 = sbr.rel (0) target = $region49
    $region48: #{tpu_custom_call.1} parent=1 // pred_region
      _
    $region49: #{tpu_custom_call.1} parent=1 // pred_fallthru
      _
    // Predicated region
    $region50: #{tpu_custom_call.1} parent=1 // pred_check
      _
    $region51: #{tpu_custom_call.1} parent=1 // pred_check_branch
      %87 = sbr.rel (0) target = $region53
    $region52: #{tpu_custom_call.1} parent=1 // pred_region
      _
    $region53: #{tpu_custom_call.1} parent=1 // pred_fallthru
      _
    // Predicated region
    $region54: #{tpu_custom_call.1} parent=1 // pred_check
      _
    $region55: #{tpu_custom_call.1} parent=1 // pred_check_branch
      %89 = sbr.rel (0) target = $region57
    $region56: #{tpu_custom_call.1} parent=1 // pred_region
      %90 = dma.done [#allocation3], 16384
    $region57: #{tpu_custom_call.1} parent=1 // pred_fallthru
      _
    // Predicated region
    $region58: #{tpu_custom_call.1} parent=1 // pred_check
      _
    $region59: #{tpu_custom_call.1} parent=1 // pred_check_branch
      %92 = sbr.rel (0) target = $region61
    $region60: #{tpu_custom_call.1} parent=1 // pred_region
      %93 = dma.done [#allocation6], 8192
    $region61: #{tpu_custom_call.1} parent=1 // pred_fallthru
      _
    // Predicated region
    $region62: #{tpu_custom_call.1} parent=1 // pred_check
      _
    $region63: #{tpu_custom_call.1} parent=1 // pred_check_branch
      %95 = sbr.rel (0) target = $region65
    $region64: #{tpu_custom_call.1} parent=1 // pred_region
      %96 = dma.done [#allocation6], 16384
    $region65: #{tpu_custom_call.1} parent=1 // pred_fallthru
      _
    // Predicated region
    $region66: #{tpu_custom_call.1} parent=1 // pred_check
      _
    $region67: #{tpu_custom_call.1} parent=1 // pred_check_branch
      %98 = sbr.rel (0) target = $region69
    $region68: #{tpu_custom_call.1} parent=1 // pred_region
      %99 = dma.done [#allocation9], 8192
    $region69: #{tpu_custom_call.1} parent=1 // pred_fallthru
      _
    %v101 = vld [vmem:[%s0] sm:$0x3]
    %v102 = vpack.c.bf16 %v101, %v101
    %v103 = vld [vmem:[%s1] sm:$0xff]
    %v104 = vld [vmem:[%s1 + $0x8] sm:$0xff]
    %v105 = vld [vmem:[%s1 + $0x10] sm:$0xff]
    %v106 = vld [vmem:[%s1 + $0x18] sm:$0xff]
    %v107 = vld [vmem:[%s1 + $0x20] sm:$0xff]
    %v108 = vld [vmem:[%s1 + $0x28] sm:$0xff]
    %v109 = vld [vmem:[%s1 + $0x30] sm:$0xff]
    %v110 = vld [vmem:[%s1 + $0x38] sm:$0xff]
    %v111 = vld [vmem:[%s1 + $0x40] sm:$0xff]
    %v112 = vld [vmem:[%s1 + $0x48] sm:$0xff]
    %v113 = vld [vmem:[%s1 + $0x50] sm:$0xff]
    %v114 = vld [vmem:[%s1 + $0x58] sm:$0xff]
    %v115 = vld [vmem:[%s1 + $0x60] sm:$0xff]
    %v116 = vld [vmem:[%s1 + $0x68] sm:$0xff]
    %v117 = vld [vmem:[%s1 + $0x70] sm:$0xff]
    %v118 = vld [vmem:[%s1 + $0x78] sm:$0xff]
    %v135 = vunpack.c.l.b16 %v103
    %v136 = vunpack.c.h.b16 %v103
    %v137 = vunpack.c.l.b16 %v104
    %v138 = vunpack.c.h.b16 %v104
    %v139 = vunpack.c.l.b16 %v105
    %v140 = vunpack.c.h.b16 %v105
    %v141 = vunpack.c.l.b16 %v106
    %v142 = vunpack.c.h.b16 %v106
    %v143 = vunpack.c.l.b16 %v107
    %v144 = vunpack.c.h.b16 %v107
    %v145 = vunpack.c.l.b16 %v108
    %v146 = vunpack.c.h.b16 %v108
    %v147 = vunpack.c.l.b16 %v109
    %v148 = vunpack.c.h.b16 %v109
    %v149 = vunpack.c.l.b16 %v110
    %v150 = vunpack.c.h.b16 %v110
    %v151 = vunpack.c.l.b16 %v111
    %v152 = vunpack.c.h.b16 %v111
    %v153 = vunpack.c.l.b16 %v112
    %v154 = vunpack.c.h.b16 %v112
    %v155 = vunpack.c.l.b16 %v113
    %v156 = vunpack.c.h.b16 %v113
    %v157 = vunpack.c.l.b16 %v114
    %v158 = vunpack.c.h.b16 %v114
    %v159 = vunpack.c.l.b16 %v115
    %v160 = vunpack.c.h.b16 %v115
    %v161 = vunpack.c.l.b16 %v116
    %v162 = vunpack.c.h.b16 %v116
    %v163 = vunpack.c.l.b16 %v117
    %v164 = vunpack.c.h.b16 %v117
    %v165 = vunpack.c.l.b16 %v118
    %v166 = vunpack.c.h.b16 %v118
    %v167 = vpack.c.b16 %v143, %v135
    %v168 = vpack.c.b16 %v144, %v136
    %v169 = vpack.c.b16 %v145, %v137
    %v170 = vpack.c.b16 %v146, %v138
    %v171 = vpack.c.b16 %v147, %v139
    %v172 = vpack.c.b16 %v148, %v140
    %v173 = vpack.c.b16 %v149, %v141
    %v174 = vpack.c.b16 %v150, %v142
    %v175 = vpack.c.b16 %v159, %v151
    %v176 = vpack.c.b16 %v160, %v152
    %v177 = vpack.c.b16 %v161, %v153
    %v178 = vpack.c.b16 %v162, %v154
    %v179 = vpack.c.b16 %v163, %v155
    %v180 = vpack.c.b16 %v164, %v156
    %v181 = vpack.c.b16 %v165, %v157
    %v182 = vpack.c.b16 %v166, %v158
    %vm199 = vcmask 261120
    %v201 = vsel %vm199, %v102, 0
    %203 = vmatprep.subr.bf16.mxu0 0
    %204 = vmatpush1.bf16.msra.mxu0 0
    %205 = vmatprep.subr.bf16.mxu0 0
    %206 = vmatpush1.bf16.msra.mxu0 0
    %207 = vmatprep.subr.bf16.mxu0 0
    %208 = vmatpush1.bf16.msra.mxu0 0
    %209 = vmatprep.subr.bf16.mxu0 0
    %210 = vmatpush1.bf16.msra.mxu0 0
    %211 = vmatprep.subr.bf16.mxu0 0
    %212 = vmatpush1.bf16.msra.mxu0 0
    %213 = vmatprep.subr.bf16.mxu0 0
    %214 = vmatpush1.bf16.msra.mxu0 0
    %215 = vmatprep.subr.bf16.mxu0 %v176
    %216 = vmatpush1.bf16.msra.mxu0 %v175
    %217 = vmatprep.subr.bf16.mxu0 %v168
    %218 = vmatpush1.bf16.msra.mxu0 %v167
    %219 = vmatprep.subr.bf16.mxu0 0
    %220 = vmatpush2.bf16.msra.mxu0 0
    %221 = vmatprep.subr.bf16.mxu0 0
    %222 = vmatpush2.bf16.msra.mxu0 0
    %223 = vmatprep.subr.bf16.mxu0 0
    %224 = vmatpush2.bf16.msra.mxu0 0
    %225 = vmatprep.subr.bf16.mxu0 0
    %226 = vmatpush2.bf16.msra.mxu0 0
    %227 = vmatprep.subr.bf16.mxu0 0
    %228 = vmatpush2.bf16.msra.mxu0 0
    %229 = vmatprep.subr.bf16.mxu0 0
    %230 = vmatpush2.bf16.msra.mxu0 0
    %231 = vmatprep.subr.bf16.mxu0 0
    %232 = vmatpush2.bf16.msra.mxu0 0
    %233 = vmatprep.subr.bf16.mxu0 0
    %234 = vmatpush2.bf16.msra.mxu0 0
    %235 = vmatprep.mubr.bf16.mxu0 0
    %236 = vmatmul.mubr.bf16.gmra.mxu0 %v201
    %v237 = vpop.f32.mrf.mxu0
    %v238 = vadd.f32 0.0, %v237
    %v239 = vpop.f32.mrf.mxu0
    %v240 = vadd.f32 0.0, %v239
    %v241 = vpop.f32.mrf.mxu0
    %v242 = vpop.f32.mrf.mxu0
    %243 = vdwg.mxu0
    %244 = vmatprep.subr.bf16.mxu0 0
    %245 = vmatpush1.bf16.msra.mxu0 0
    %246 = vmatprep.subr.bf16.mxu0 0
    %247 = vmatpush1.bf16.msra.mxu0 0
    %248 = vmatprep.subr.bf16.mxu0 0
    %249 = vmatpush1.bf16.msra.mxu0 0
    %250 = vmatprep.subr.bf16.mxu0 0
    %251 = vmatpush1.bf16.msra.mxu0 0
    %252 = vmatprep.subr.bf16.mxu0 0
    %253 = vmatpush1.bf16.msra.mxu0 0
    %254 = vmatprep.subr.bf16.mxu0 0
    %255 = vmatpush1.bf16.msra.mxu0 0
    %256 = vmatprep.subr.bf16.mxu0 %v178
    %257 = vmatpush1.bf16.msra.mxu0 %v177
    %258 = vmatprep.subr.bf16.mxu0 %v170
    %259 = vmatpush1.bf16.msra.mxu0 %v169
    %260 = vmatprep.subr.bf16.mxu0 0
    %261 = vmatpush2.bf16.msra.mxu0 0
    %262 = vmatprep.subr.bf16.mxu0 0
    %263 = vmatpush2.bf16.msra.mxu0 0
    %264 = vmatprep.subr.bf16.mxu0 0
    %265 = vmatpush2.bf16.msra.mxu0 0
    %266 = vmatprep.subr.bf16.mxu0 0
    %267 = vmatpush2.bf16.msra.mxu0 0
    %268 = vmatprep.subr.bf16.mxu0 0
    %269 = vmatpush2.bf16.msra.mxu0 0
    %270 = vmatprep.subr.bf16.mxu0 0
    %271 = vmatpush2.bf16.msra.mxu0 0
    %272 = vmatprep.subr.bf16.mxu0 0
    %273 = vmatpush2.bf16.msra.mxu0 0
    %274 = vmatprep.subr.bf16.mxu0 0
    %275 = vmatpush2.bf16.msra.mxu0 0
    %276 = vmatprep.mubr.bf16.mxu0 0
    %277 = vmatmul.mubr.bf16.gmra.mxu0 %v201
    %v278 = vpop.f32.mrf.mxu0
    %v279 = vadd.f32 0.0, %v278
    %v280 = vpop.f32.mrf.mxu0
    %v281 = vadd.f32 0.0, %v280
    %v282 = vpop.f32.mrf.mxu0
    %v283 = vpop.f32.mrf.mxu0
    %284 = vdwg.mxu0
    %285 = vmatprep.subr.bf16.mxu0 0
    %286 = vmatpush1.bf16.msra.mxu0 0
    %287 = vmatprep.subr.bf16.mxu0 0
    %288 = vmatpush1.bf16.msra.mxu0 0
    %289 = vmatprep.subr.bf16.mxu0 0
    %290 = vmatpush1.bf16.msra.mxu0 0
    %291 = vmatprep.subr.bf16.mxu0 0
    %292 = vmatpush1.bf16.msra.mxu0 0
    %293 = vmatprep.subr.bf16.mxu0 0
    %294 = vmatpush1.bf16.msra.mxu0 0
    %295 = vmatprep.subr.bf16.mxu0 0
    %296 = vmatpush1.bf16.msra.mxu0 0
    %297 = vmatprep.subr.bf16.mxu0 %v180
    %298 = vmatpush1.bf16.msra.mxu0 %v179
    %299 = vmatprep.subr.bf16.mxu0 %v172
    %300 = vmatpush1.bf16.msra.mxu0 %v171
    %301 = vmatprep.subr.bf16.mxu0 0
    %302 = vmatpush2.bf16.msra.mxu0 0
    %303 = vmatprep.subr.bf16.mxu0 0
    %304 = vmatpush2.bf16.msra.mxu0 0
    %305 = vmatprep.subr.bf16.mxu0 0
    %306 = vmatpush2.bf16.msra.mxu0 0
    %307 = vmatprep.subr.bf16.mxu0 0
    %308 = vmatpush2.bf16.msra.mxu0 0
    %309 = vmatprep.subr.bf16.mxu0 0
    %310 = vmatpush2.bf16.msra.mxu0 0
    %311 = vmatprep.subr.bf16.mxu0 0
    %312 = vmatpush2.bf16.msra.mxu0 0
    %313 = vmatprep.subr.bf16.mxu0 0
    %314 = vmatpush2.bf16.msra.mxu0 0
    %315 = vmatprep.subr.bf16.mxu0 0
    %316 = vmatpush2.bf16.msra.mxu0 0
    %317 = vmatprep.mubr.bf16.mxu0 0
    %318 = vmatmul.mubr.bf16.gmra.mxu0 %v201
    %v319 = vpop.f32.mrf.mxu0
    %v320 = vadd.f32 0.0, %v319
    %v321 = vpop.f32.mrf.mxu0
    %v322 = vadd.f32 0.0, %v321
    %v323 = vpop.f32.mrf.mxu0
    %v324 = vpop.f32.mrf.mxu0
    %325 = vdwg.mxu0
    %326 = vmatprep.subr.bf16.mxu0 0
    %327 = vmatpush1.bf16.msra.mxu0 0
    %328 = vmatprep.subr.bf16.mxu0 0
    %329 = vmatpush1.bf16.msra.mxu0 0
    %330 = vmatprep.subr.bf16.mxu0 0
    %331 = vmatpush1.bf16.msra.mxu0 0
    %332 = vmatprep.subr.bf16.mxu0 0
    %333 = vmatpush1.bf16.msra.mxu0 0
    %334 = vmatprep.subr.bf16.mxu0 0
    %335 = vmatpush1.bf16.msra.mxu0 0
    %336 = vmatprep.subr.bf16.mxu0 0
    %337 = vmatpush1.bf16.msra.mxu0 0
    %338 = vmatprep.subr.bf16.mxu0 %v182
    %339 = vmatpush1.bf16.msra.mxu0 %v181
    %340 = vmatprep.subr.bf16.mxu0 %v174
    %341 = vmatpush1.bf16.msra.mxu0 %v173
    %342 = vmatprep.subr.bf16.mxu0 0
    %343 = vmatpush2.bf16.msra.mxu0 0
    %344 = vmatprep.subr.bf16.mxu0 0
    %345 = vmatpush2.bf16.msra.mxu0 0
    %346 = vmatprep.subr.bf16.mxu0 0
    %347 = vmatpush2.bf16.msra.mxu0 0
    %348 = vmatprep.subr.bf16.mxu0 0
    %349 = vmatpush2.bf16.msra.mxu0 0
    %350 = vmatprep.subr.bf16.mxu0 0
    %351 = vmatpush2.bf16.msra.mxu0 0
    %352 = vmatprep.subr.bf16.mxu0 0
    %353 = vmatpush2.bf16.msra.mxu0 0
    %354 = vmatprep.subr.bf16.mxu0 0
    %355 = vmatpush2.bf16.msra.mxu0 0
    %356 = vmatprep.subr.bf16.mxu0 0
    %357 = vmatpush2.bf16.msra.mxu0 0
    %358 = vmatprep.mubr.bf16.mxu0 0
    %359 = vmatmul.mubr.bf16.gmra.mxu0 %v201
    %v360 = vpop.f32.mrf.mxu0
    %v361 = vadd.f32 0.0, %v360
    %v362 = vpop.f32.mrf.mxu0
    %v363 = vadd.f32 0.0, %v362
    %v364 = vpop.f32.mrf.mxu0
    %v365 = vpop.f32.mrf.mxu0
    %366 = vdwg.mxu0
    %v367 = vpack.c.bf16 %v238, %v238
    %v368 = vpack.c.bf16 %v240, %v240
    %v369 = vpack.c.bf16 %v279, %v279
    %v370 = vpack.c.bf16 %v281, %v281
    %v371 = vpack.c.bf16 %v320, %v320
    %v372 = vpack.c.bf16 %v322, %v322
    %v373 = vpack.c.bf16 %v361, %v361
    %v374 = vpack.c.bf16 %v363, %v363
    %v375 = vld [vmem:[%s2] sm:$0xff]
    %v377 = vcombine.high %v375, %v375
    %v379 = vunpack.c.l.s4 1966171168
    %v380 = vunpack.c.0.s8 %v379
    %v381 = vlaneseq
    %v382 = vshrl.u32 %v381, 7
    %v383 = vsub.s32 %v380, %v382
    %v384 = vrot.slane %v375, %v383
    %v386 = vunpack.c.l.s4 1966171168
    %v387 = vunpack.c.0.s8 %v386
    %v388 = vlaneseq
    %v389 = vshrl.u32 %v388, 7
    %v390 = vsub.s32 %v387, %v389
    %v391 = vrot.slane %v377, %v390
    %v392 = vcombine.high %v384, %v384
    %v393 = vcombine.high %v391, %v391
    %v395 = vunpack.c.l.s4 1966171168
    %v396 = vunpack.c.0.s8 %v395
    %v397 = vlaneseq
    %v398 = vshrl.u32 %v397, 7
    %v399 = vsub.s32 %v396, %v398
    %v400 = vrot.slane %v384, %v399
    %v402 = vunpack.c.l.s4 1966171168
    %v403 = vunpack.c.0.s8 %v402
    %v404 = vlaneseq
    %v405 = vshrl.u32 %v404, 7
    %v406 = vsub.s32 %v403, %v405
    %v407 = vrot.slane %v391, %v406
    %v409 = vunpack.c.l.s4 1966171168
    %v410 = vunpack.c.0.s8 %v409
    %v411 = vlaneseq
    %v412 = vshrl.u32 %v411, 7
    %v413 = vsub.s32 %v410, %v412
    %v414 = vrot.slane %v392, %v413
    %v416 = vunpack.c.l.s4 1966171168
    %v417 = vunpack.c.0.s8 %v416
    %v418 = vlaneseq
    %v419 = vshrl.u32 %v418, 7
    %v420 = vsub.s32 %v417, %v419
    %v421 = vrot.slane %v393, %v420
    %v422 = vcombine.high %v400, %v400
    %v423 = vcombine.high %v407, %v407
    %v424 = vcombine.high %v414, %v414
    %v425 = vcombine.high %v421, %v421
    %v427 = vpack.i.b16 %v400, %v400
    %v429 = vlaneseq
    %v430 = vshrl.u32 %v429, 7
    %v431 = vsub.s32 0, %v430
    %v432 = vrot.slane %v427, %v431
    %v434 = vpack.i.b16 %v414, %v414
    %v436 = vlaneseq
    %v437 = vshrl.u32 %v436, 7
    %v438 = vsub.s32 0, %v437
    %v439 = vrot.slane %v434, %v438
    %v441 = vpack.i.b16 %v422, %v422
    %v443 = vlaneseq
    %v444 = vshrl.u32 %v443, 7
    %v445 = vsub.s32 0, %v444
    %v446 = vrot.slane %v441, %v445
    %v448 = vpack.i.b16 %v424, %v424
    %v450 = vlaneseq
    %v451 = vshrl.u32 %v450, 7
    %v452 = vsub.s32 0, %v451
    %v453 = vrot.slane %v448, %v452
    %v455 = vpack.i.b16 %v407, %v407
    %v457 = vlaneseq
    %v458 = vshrl.u32 %v457, 7
    %v459 = vsub.s32 0, %v458
    %v460 = vrot.slane %v455, %v459
    %v462 = vpack.i.b16 %v421, %v421
    %v464 = vlaneseq
    %v465 = vshrl.u32 %v464, 7
    %v466 = vsub.s32 0, %v465
    %v467 = vrot.slane %v462, %v466
    %v469 = vpack.i.b16 %v423, %v423
    %v471 = vlaneseq
    %v472 = vshrl.u32 %v471, 7
    %v473 = vsub.s32 0, %v472
    %v474 = vrot.slane %v469, %v473
    %v476 = vpack.i.b16 %v425, %v425
    %v478 = vlaneseq
    %v479 = vshrl.u32 %v478, 7
    %v480 = vsub.s32 0, %v479
    %v481 = vrot.slane %v476, %v480
    %v482 = vadd.bf16 %v367, %v432
    %v483 = vadd.bf16 %v368, %v439
    %v484 = vadd.bf16 %v369, %v446
    %v485 = vadd.bf16 %v370, %v453
    %v486 = vadd.bf16 %v371, %v460
    %v487 = vadd.bf16 %v372, %v467
    %v488 = vadd.bf16 %v373, %v474
    %v489 = vadd.bf16 %v374, %v481
    %v490 = vmax.bf16 %v482, 0
    %v491 = vmax.bf16 %v483, 0
    %v492 = vmax.bf16 %v484, 0
    %v493 = vmax.bf16 %v485, 0
    %v494 = vmax.bf16 %v486, 0
    %v495 = vmax.bf16 %v487, 0
    %v496 = vmax.bf16 %v488, 0
    %v497 = vmax.bf16 %v489, 0
    %v498 = vld [vmem:[#allocation2] sm:$0xff]
    %v499 = vld [vmem:[#allocation2 + $0x8] sm:$0xff]
    %v500 = vld [vmem:[#allocation2 + $0x10] sm:$0xff]
    %v501 = vld [vmem:[#allocation2 + $0x18] sm:$0xff]
    %v502 = vld [vmem:[#allocation2 + $0x20] sm:$0xff]
    %v503 = vld [vmem:[#allocation2 + $0x28] sm:$0xff]
    %v504 = vld [vmem:[#allocation2 + $0x30] sm:$0xff]
    %v505 = vld [vmem:[#allocation2 + $0x38] sm:$0xff]
    %v506 = vld [vmem:[#allocation2 + $0x40] sm:$0xff]
    %v507 = vld [vmem:[#allocation2 + $0x48] sm:$0xff]
    %v508 = vld [vmem:[#allocation2 + $0x50] sm:$0xff]
    %v509 = vld [vmem:[#allocation2 + $0x58] sm:$0xff]
    %v510 = vld [vmem:[#allocation2 + $0x60] sm:$0xff]
    %v511 = vld [vmem:[#allocation2 + $0x68] sm:$0xff]
    %v512 = vld [vmem:[#allocation2 + $0x70] sm:$0xff]
    %v513 = vld [vmem:[#allocation2 + $0x78] sm:$0xff]
    %v514 = vld [vmem:[#allocation2 + $0x80] sm:$0xff]
    %v515 = vld [vmem:[#allocation2 + $0x88] sm:$0xff]
    %v516 = vld [vmem:[#allocation2 + $0x90] sm:$0xff]
    %v517 = vld [vmem:[#allocation2 + $0x98] sm:$0xff]
    %v518 = vld [vmem:[#allocation2 + $0xa0] sm:$0xff]
    %v519 = vld [vmem:[#allocation2 + $0xa8] sm:$0xff]
    %v520 = vld [vmem:[#allocation2 + $0xb0] sm:$0xff]
    %v521 = vld [vmem:[#allocation2 + $0xb8] sm:$0xff]
    %v522 = vld [vmem:[#allocation2 + $0xc0] sm:$0xff]
    %v523 = vld [vmem:[#allocation2 + $0xc8] sm:$0xff]
    %v524 = vld [vmem:[#allocation2 + $0xd0] sm:$0xff]
    %v525 = vld [vmem:[#allocation2 + $0xd8] sm:$0xff]
    %v526 = vld [vmem:[#allocation2 + $0xe0] sm:$0xff]
    %v527 = vld [vmem:[#allocation2 + $0xe8] sm:$0xff]
    %v528 = vld [vmem:[#allocation2 + $0xf0] sm:$0xff]
    %v529 = vld [vmem:[#allocation2 + $0xf8] sm:$0xff]
    %v530 = vld [vmem:[#allocation2 + $0x100] sm:$0xff]
    %v531 = vld [vmem:[#allocation2 + $0x108] sm:$0xff]
    %v532 = vld [vmem:[#allocation2 + $0x110] sm:$0xff]
    %v533 = vld [vmem:[#allocation2 + $0x118] sm:$0xff]
    %v534 = vld [vmem:[#allocation2 + $0x120] sm:$0xff]
    %v535 = vld [vmem:[#allocation2 + $0x128] sm:$0xff]
    %v536 = vld [vmem:[#allocation2 + $0x130] sm:$0xff]
    %v537 = vld [vmem:[#allocation2 + $0x138] sm:$0xff]
    %v538 = vld [vmem:[#allocation2 + $0x140] sm:$0xff]
    %v539 = vld [vmem:[#allocation2 + $0x148] sm:$0xff]
    %v540 = vld [vmem:[#allocation2 + $0x150] sm:$0xff]
    %v541 = vld [vmem:[#allocation2 + $0x158] sm:$0xff]
    %v542 = vld [vmem:[#allocation2 + $0x160] sm:$0xff]
    %v543 = vld [vmem:[#allocation2 + $0x168] sm:$0xff]
    %v544 = vld [vmem:[#allocation2 + $0x170] sm:$0xff]
    %v545 = vld [vmem:[#allocation2 + $0x178] sm:$0xff]
    %v546 = vld [vmem:[#allocation2 + $0x180] sm:$0xff]
    %v547 = vld [vmem:[#allocation2 + $0x188] sm:$0xff]
    %v548 = vld [vmem:[#allocation2 + $0x190] sm:$0xff]
    %v549 = vld [vmem:[#allocation2 + $0x198] sm:$0xff]
    %v550 = vld [vmem:[#allocation2 + $0x1a0] sm:$0xff]
    %v551 = vld [vmem:[#allocation2 + $0x1a8] sm:$0xff]
    %v552 = vld [vmem:[#allocation2 + $0x1b0] sm:$0xff]
    %v553 = vld [vmem:[#allocation2 + $0x1b8] sm:$0xff]
    %v554 = vld [vmem:[#allocation2 + $0x1c0] sm:$0xff]
    %v555 = vld [vmem:[#allocation2 + $0x1c8] sm:$0xff]
    %v556 = vld [vmem:[#allocation2 + $0x1d0] sm:$0xff]
    %v557 = vld [vmem:[#allocation2 + $0x1d8] sm:$0xff]
    %v558 = vld [vmem:[#allocation2 + $0x1e0] sm:$0xff]
    %v559 = vld [vmem:[#allocation2 + $0x1e8] sm:$0xff]
    %v560 = vld [vmem:[#allocation2 + $0x1f0] sm:$0xff]
    %v561 = vld [vmem:[#allocation2 + $0x1f8] sm:$0xff]
    %v562 = vld [vmem:[#allocation2 + $0x200] sm:$0xff]
    %v563 = vld [vmem:[#allocation2 + $0x208] sm:$0xff]
    %v564 = vld [vmem:[#allocation2 + $0x210] sm:$0xff]
    %v565 = vld [vmem:[#allocation2 + $0x218] sm:$0xff]
    %v566 = vld [vmem:[#allocation2 + $0x220] sm:$0xff]
    %v567 = vld [vmem:[#allocation2 + $0x228] sm:$0xff]
    %v568 = vld [vmem:[#allocation2 + $0x230] sm:$0xff]
    %v569 = vld [vmem:[#allocation2 + $0x238] sm:$0xff]
    %v570 = vld [vmem:[#allocation2 + $0x240] sm:$0xff]
    %v571 = vld [vmem:[#allocation2 + $0x248] sm:$0xff]
    %v572 = vld [vmem:[#allocation2 + $0x250] sm:$0xff]
    %v573 = vld [vmem:[#allocation2 + $0x258] sm:$0xff]
    %v574 = vld [vmem:[#allocation2 + $0x260] sm:$0xff]
    %v575 = vld [vmem:[#allocation2 + $0x268] sm:$0xff]
    %v576 = vld [vmem:[#allocation2 + $0x270] sm:$0xff]
    %v577 = vld [vmem:[#allocation2 + $0x278] sm:$0xff]
    %v578 = vld [vmem:[#allocation2 + $0x280] sm:$0xff]
    %v579 = vld [vmem:[#allocation2 + $0x288] sm:$0xff]
    %v580 = vld [vmem:[#allocation2 + $0x290] sm:$0xff]
    %v581 = vld [vmem:[#allocation2 + $0x298] sm:$0xff]
    %v582 = vld [vmem:[#allocation2 + $0x2a0] sm:$0xff]
    %v583 = vld [vmem:[#allocation2 + $0x2a8] sm:$0xff]
    %v584 = vld [vmem:[#allocation2 + $0x2b0] sm:$0xff]
    %v585 = vld [vmem:[#allocation2 + $0x2b8] sm:$0xff]
    %v586 = vld [vmem:[#allocation2 + $0x2c0] sm:$0xff]
    %v587 = vld [vmem:[#allocation2 + $0x2c8] sm:$0xff]
    %v588 = vld [vmem:[#allocation2 + $0x2d0] sm:$0xff]
    %v589 = vld [vmem:[#allocation2 + $0x2d8] sm:$0xff]
    %v590 = vld [vmem:[#allocation2 + $0x2e0] sm:$0xff]
    %v591 = vld [vmem:[#allocation2 + $0x2e8] sm:$0xff]
    %v592 = vld [vmem:[#allocation2 + $0x2f0] sm:$0xff]
    %v593 = vld [vmem:[#allocation2 + $0x2f8] sm:$0xff]
    %v594 = vld [vmem:[#allocation2 + $0x300] sm:$0xff]
    %v595 = vld [vmem:[#allocation2 + $0x308] sm:$0xff]
    %v596 = vld [vmem:[#allocation2 + $0x310] sm:$0xff]
    %v597 = vld [vmem:[#allocation2 + $0x318] sm:$0xff]
    %v598 = vld [vmem:[#allocation2 + $0x320] sm:$0xff]
    %v599 = vld [vmem:[#allocation2 + $0x328] sm:$0xff]
    %v600 = vld [vmem:[#allocation2 + $0x330] sm:$0xff]
    %v601 = vld [vmem:[#allocation2 + $0x338] sm:$0xff]
    %v602 = vld [vmem:[#allocation2 + $0x340] sm:$0xff]
    %v603 = vld [vmem:[#allocation2 + $0x348] sm:$0xff]
    %v604 = vld [vmem:[#allocation2 + $0x350] sm:$0xff]
    %v605 = vld [vmem:[#allocation2 + $0x358] sm:$0xff]
    %v606 = vld [vmem:[#allocation2 + $0x360] sm:$0xff]
    %v607 = vld [vmem:[#allocation2 + $0x368] sm:$0xff]
    %v608 = vld [vmem:[#allocation2 + $0x370] sm:$0xff]
    %v609 = vld [vmem:[#allocation2 + $0x378] sm:$0xff]
    %v610 = vld [vmem:[#allocation2 + $0x380] sm:$0xff]
    %v611 = vld [vmem:[#allocation2 + $0x388] sm:$0xff]
    %v612 = vld [vmem:[#allocation2 + $0x390] sm:$0xff]
    %v613 = vld [vmem:[#allocation2 + $0x398] sm:$0xff]
    %v614 = vld [vmem:[#allocation2 + $0x3a0] sm:$0xff]
    %v615 = vld [vmem:[#allocation2 + $0x3a8] sm:$0xff]
    %v616 = vld [vmem:[#allocation2 + $0x3b0] sm:$0xff]
    %v617 = vld [vmem:[#allocation2 + $0x3b8] sm:$0xff]
    %v618 = vld [vmem:[#allocation2 + $0x3c0] sm:$0xff]
    %v619 = vld [vmem:[#allocation2 + $0x3c8] sm:$0xff]
    %v620 = vld [vmem:[#allocation2 + $0x3d0] sm:$0xff]
    %v621 = vld [vmem:[#allocation2 + $0x3d8] sm:$0xff]
    %v622 = vld [vmem:[#allocation2 + $0x3e0] sm:$0xff]
    %v623 = vld [vmem:[#allocation2 + $0x3e8] sm:$0xff]
    %v624 = vld [vmem:[#allocation2 + $0x3f0] sm:$0xff]
    %v625 = vld [vmem:[#allocation2 + $0x3f8] sm:$0xff]
    %v754 = vunpack.c.l.b16 %v498
    %v755 = vunpack.c.h.b16 %v498
    %v756 = vunpack.c.l.b16 %v499
    %v757 = vunpack.c.h.b16 %v499
    %v758 = vunpack.c.l.b16 %v500
    %v759 = vunpack.c.h.b16 %v500
    %v760 = vunpack.c.l.b16 %v501
    %v761 = vunpack.c.h.b16 %v501
    %v762 = vunpack.c.l.b16 %v502
    %v763 = vunpack.c.h.b16 %v502
    %v764 = vunpack.c.l.b16 %v503
    %v765 = vunpack.c.h.b16 %v503
    %v766 = vunpack.c.l.b16 %v504
    %v767 = vunpack.c.h.b16 %v504
    %v768 = vunpack.c.l.b16 %v505
    %v769 = vunpack.c.h.b16 %v505
    %v770 = vunpack.c.l.b16 %v506
    %v771 = vunpack.c.h.b16 %v506
    %v772 = vunpack.c.l.b16 %v507
    %v773 = vunpack.c.h.b16 %v507
    %v774 = vunpack.c.l.b16 %v508
    %v775 = vunpack.c.h.b16 %v508
    %v776 = vunpack.c.l.b16 %v509
    %v777 = vunpack.c.h.b16 %v509
    %v778 = vunpack.c.l.b16 %v510
    %v779 = vunpack.c.h.b16 %v510
    %v780 = vunpack.c.l.b16 %v511
    %v781 = vunpack.c.h.b16 %v511
    %v782 = vunpack.c.l.b16 %v512
    %v783 = vunpack.c.h.b16 %v512
    %v784 = vunpack.c.l.b16 %v513
    %v785 = vunpack.c.h.b16 %v513
    %v786 = vunpack.c.l.b16 %v514
    %v787 = vunpack.c.h.b16 %v514
    %v788 = vunpack.c.l.b16 %v515
    %v789 = vunpack.c.h.b16 %v515
    %v790 = vunpack.c.l.b16 %v516
    %v791 = vunpack.c.h.b16 %v516
    %v792 = vunpack.c.l.b16 %v517
    %v793 = vunpack.c.h.b16 %v517
    %v794 = vunpack.c.l.b16 %v518
    %v795 = vunpack.c.h.b16 %v518
    %v796 = vunpack.c.l.b16 %v519
    %v797 = vunpack.c.h.b16 %v519
    %v798 = vunpack.c.l.b16 %v520
    %v799 = vunpack.c.h.b16 %v520
    %v800 = vunpack.c.l.b16 %v521
    %v801 = vunpack.c.h.b16 %v521
    %v802 = vunpack.c.l.b16 %v522
    %v803 = vunpack.c.h.b16 %v522
    %v804 = vunpack.c.l.b16 %v523
    %v805 = vunpack.c.h.b16 %v523
    %v806 = vunpack.c.l.b16 %v524
    %v807 = vunpack.c.h.b16 %v524
    %v808 = vunpack.c.l.b16 %v525
    %v809 = vunpack.c.h.b16 %v525
    %v810 = vunpack.c.l.b16 %v526
    %v811 = vunpack.c.h.b16 %v526
    %v812 = vunpack.c.l.b16 %v527
    %v813 = vunpack.c.h.b16 %v527
    %v814 = vunpack.c.l.b16 %v528
    %v815 = vunpack.c.h.b16 %v528
    %v816 = vunpack.c.l.b16 %v529
    %v817 = vunpack.c.h.b16 %v529
    %v818 = vunpack.c.l.b16 %v530
    %v819 = vunpack.c.h.b16 %v530
    %v820 = vunpack.c.l.b16 %v531
    %v821 = vunpack.c.h.b16 %v531
    %v822 = vunpack.c.l.b16 %v532
    %v823 = vunpack.c.h.b16 %v532
    %v824 = vunpack.c.l.b16 %v533
    %v825 = vunpack.c.h.b16 %v533
    %v826 = vunpack.c.l.b16 %v534
    %v827 = vunpack.c.h.b16 %v534
    %v828 = vunpack.c.l.b16 %v535
    %v829 = vunpack.c.h.b16 %v535
    %v830 = vunpack.c.l.b16 %v536
    %v831 = vunpack.c.h.b16 %v536
    %v832 = vunpack.c.l.b16 %v537
    %v833 = vunpack.c.h.b16 %v537
    %v834 = vunpack.c.l.b16 %v538
    %v835 = vunpack.c.h.b16 %v538
    %v836 = vunpack.c.l.b16 %v539
    %v837 = vunpack.c.h.b16 %v539
    %v838 = vunpack.c.l.b16 %v540
    %v839 = vunpack.c.h.b16 %v540
    %v840 = vunpack.c.l.b16 %v541
    %v841 = vunpack.c.h.b16 %v541
    %v842 = vunpack.c.l.b16 %v542
    %v843 = vunpack.c.h.b16 %v542
    %v844 = vunpack.c.l.b16 %v543
    %v845 = vunpack.c.h.b16 %v543
    %v846 = vunpack.c.l.b16 %v544
    %v847 = vunpack.c.h.b16 %v544
    %v848 = vunpack.c.l.b16 %v545
    %v849 = vunpack.c.h.b16 %v545
    %v850 = vunpack.c.l.b16 %v546
    %v851 = vunpack.c.h.b16 %v546
    %v852 = vunpack.c.l.b16 %v547
    %v853 = vunpack.c.h.b16 %v547
    %v854 = vunpack.c.l.b16 %v548
    %v855 = vunpack.c.h.b16 %v548
    %v856 = vunpack.c.l.b16 %v549
    %v857 = vunpack.c.h.b16 %v549
    %v858 = vunpack.c.l.b16 %v550
    %v859 = vunpack.c.h.b16 %v550
    %v860 = vunpack.c.l.b16 %v551
    %v861 = vunpack.c.h.b16 %v551
    %v862 = vunpack.c.l.b16 %v552
    %v863 = vunpack.c.h.b16 %v552
    %v864 = vunpack.c.l.b16 %v553
    %v865 = vunpack.c.h.b16 %v553
    %v866 = vunpack.c.l.b16 %v554
    %v867 = vunpack.c.h.b16 %v554
    %v868 = vunpack.c.l.b16 %v555
    %v869 = vunpack.c.h.b16 %v555
    %v870 = vunpack.c.l.b16 %v556
    %v871 = vunpack.c.h.b16 %v556
    %v872 = vunpack.c.l.b16 %v557
    %v873 = vunpack.c.h.b16 %v557
    %v874 = vunpack.c.l.b16 %v558
    %v875 = vunpack.c.h.b16 %v558
    %v876 = vunpack.c.l.b16 %v559
    %v877 = vunpack.c.h.b16 %v559
    %v878 = vunpack.c.l.b16 %v560
    %v879 = vunpack.c.h.b16 %v560
    %v880 = vunpack.c.l.b16 %v561
    %v881 = vunpack.c.h.b16 %v561
    %v882 = vunpack.c.l.b16 %v562
    %v883 = vunpack.c.h.b16 %v562
    %v884 = vunpack.c.l.b16 %v563
    %v885 = vunpack.c.h.b16 %v563
    %v886 = vunpack.c.l.b16 %v564
    %v887 = vunpack.c.h.b16 %v564
    %v888 = vunpack.c.l.b16 %v565
    %v889 = vunpack.c.h.b16 %v565
    %v890 = vunpack.c.l.b16 %v566
    %v891 = vunpack.c.h.b16 %v566
    %v892 = vunpack.c.l.b16 %v567
    %v893 = vunpack.c.h.b16 %v567
    %v894 = vunpack.c.l.b16 %v568
    %v895 = vunpack.c.h.b16 %v568
    %v896 = vunpack.c.l.b16 %v569
    %v897 = vunpack.c.h.b16 %v569
    %v898 = vunpack.c.l.b16 %v570
    %v899 = vunpack.c.h.b16 %v570
    %v900 = vunpack.c.l.b16 %v571
    %v901 = vunpack.c.h.b16 %v571
    %v902 = vunpack.c.l.b16 %v572
    %v903 = vunpack.c.h.b16 %v572
    %v904 = vunpack.c.l.b16 %v573
    %v905 = vunpack.c.h.b16 %v573
    %v906 = vunpack.c.l.b16 %v574
    %v907 = vunpack.c.h.b16 %v574
    %v908 = vunpack.c.l.b16 %v575
    %v909 = vunpack.c.h.b16 %v575
    %v910 = vunpack.c.l.b16 %v576
    %v911 = vunpack.c.h.b16 %v576
    %v912 = vunpack.c.l.b16 %v577
    %v913 = vunpack.c.h.b16 %v577
    %v914 = vunpack.c.l.b16 %v578
    %v915 = vunpack.c.h.b16 %v578
    %v916 = vunpack.c.l.b16 %v579
    %v917 = vunpack.c.h.b16 %v579
    %v918 = vunpack.c.l.b16 %v580
    %v919 = vunpack.c.h.b16 %v580
    %v920 = vunpack.c.l.b16 %v581
    %v921 = vunpack.c.h.b16 %v581
    %v922 = vunpack.c.l.b16 %v582
    %v923 = vunpack.c.h.b16 %v582
    %v924 = vunpack.c.l.b16 %v583
    %v925 = vunpack.c.h.b16 %v583
    %v926 = vunpack.c.l.b16 %v584
    %v927 = vunpack.c.h.b16 %v584
    %v928 = vunpack.c.l.b16 %v585
    %v929 = vunpack.c.h.b16 %v585
    %v930 = vunpack.c.l.b16 %v586
    %v931 = vunpack.c.h.b16 %v586
    %v932 = vunpack.c.l.b16 %v587
    %v933 = vunpack.c.h.b16 %v587
    %v934 = vunpack.c.l.b16 %v588
    %v935 = vunpack.c.h.b16 %v588
    %v936 = vunpack.c.l.b16 %v589
    %v937 = vunpack.c.h.b16 %v589
    %v938 = vunpack.c.l.b16 %v590
    %v939 = vunpack.c.h.b16 %v590
    %v940 = vunpack.c.l.b16 %v591
    %v941 = vunpack.c.h.b16 %v591
    %v942 = vunpack.c.l.b16 %v592
    %v943 = vunpack.c.h.b16 %v592
    %v944 = vunpack.c.l.b16 %v593
    %v945 = vunpack.c.h.b16 %v593
    %v946 = vunpack.c.l.b16 %v594
    %v947 = vunpack.c.h.b16 %v594
    %v948 = vunpack.c.l.b16 %v595
    %v949 = vunpack.c.h.b16 %v595
    %v950 = vunpack.c.l.b16 %v596
    %v951 = vunpack.c.h.b16 %v596
    %v952 = vunpack.c.l.b16 %v597
    %v953 = vunpack.c.h.b16 %v597
    %v954 = vunpack.c.l.b16 %v598
    %v955 = vunpack.c.h.b16 %v598
    %v956 = vunpack.c.l.b16 %v599
    %v957 = vunpack.c.h.b16 %v599
    %v958 = vunpack.c.l.b16 %v600
    %v959 = vunpack.c.h.b16 %v600
    %v960 = vunpack.c.l.b16 %v601
    %v961 = vunpack.c.h.b16 %v601
    %v962 = vunpack.c.l.b16 %v602
    %v963 = vunpack.c.h.b16 %v602
    %v964 = vunpack.c.l.b16 %v603
    %v965 = vunpack.c.h.b16 %v603
    %v966 = vunpack.c.l.b16 %v604
    %v967 = vunpack.c.h.b16 %v604
    %v968 = vunpack.c.l.b16 %v605
    %v969 = vunpack.c.h.b16 %v605
    %v970 = vunpack.c.l.b16 %v606
    %v971 = vunpack.c.h.b16 %v606
    %v972 = vunpack.c.l.b16 %v607
    %v973 = vunpack.c.h.b16 %v607
    %v974 = vunpack.c.l.b16 %v608
    %v975 = vunpack.c.h.b16 %v608
    %v976 = vunpack.c.l.b16 %v609
    %v977 = vunpack.c.h.b16 %v609
    %v978 = vunpack.c.l.b16 %v610
    %v979 = vunpack.c.h.b16 %v610
    %v980 = vunpack.c.l.b16 %v611
    %v981 = vunpack.c.h.b16 %v611
    %v982 = vunpack.c.l.b16 %v612
    %v983 = vunpack.c.h.b16 %v612
    %v984 = vunpack.c.l.b16 %v613
    %v985 = vunpack.c.h.b16 %v613
    %v986 = vunpack.c.l.b16 %v614
    %v987 = vunpack.c.h.b16 %v614
    %v988 = vunpack.c.l.b16 %v615
    %v989 = vunpack.c.h.b16 %v615
    %v990 = vunpack.c.l.b16 %v616
    %v991 = vunpack.c.h.b16 %v616
    %v992 = vunpack.c.l.b16 %v617
    %v993 = vunpack.c.h.b16 %v617
    %v994 = vunpack.c.l.b16 %v618
    %v995 = vunpack.c.h.b16 %v618
    %v996 = vunpack.c.l.b16 %v619
    %v997 = vunpack.c.h.b16 %v619
    %v998 = vunpack.c.l.b16 %v620
    %v999 = vunpack.c.h.b16 %v620
    %v1000 = vunpack.c.l.b16 %v621
    %v1001 = vunpack.c.h.b16 %v621
    %v1002 = vunpack.c.l.b16 %v622
    %v1003 = vunpack.c.h.b16 %v622
    %v1004 = vunpack.c.l.b16 %v623
    %v1005 = vunpack.c.h.b16 %v623
    %v1006 = vunpack.c.l.b16 %v624
    %v1007 = vunpack.c.h.b16 %v624
    %v1008 = vunpack.c.l.b16 %v625
    %v1009 = vunpack.c.h.b16 %v625
    %v1010 = vpack.c.b16 %v758, %v754
    %v1011 = vpack.c.b16 %v759, %v755
    %v1012 = vpack.c.b16 %v760, %v756
    %v1013 = vpack.c.b16 %v761, %v757
    %v1014 = vpack.c.b16 %v766, %v762
    %v1015 = vpack.c.b16 %v767, %v763
    %v1016 = vpack.c.b16 %v768, %v764
    %v1017 = vpack.c.b16 %v769, %v765
    %v1018 = vpack.c.b16 %v774, %v770
    %v1019 = vpack.c.b16 %v775, %v771
    %v1020 = vpack.c.b16 %v776, %v772
    %v1021 = vpack.c.b16 %v777, %v773
    %v1022 = vpack.c.b16 %v782, %v778
    %v1023 = vpack.c.b16 %v783, %v779
    %v1024 = vpack.c.b16 %v784, %v780
    %v1025 = vpack.c.b16 %v785, %v781
    %v1026 = vpack.c.b16 %v790, %v786
    %v1027 = vpack.c.b16 %v791, %v787
    %v1028 = vpack.c.b16 %v792, %v788
    %v1029 = vpack.c.b16 %v793, %v789
    %v1030 = vpack.c.b16 %v798, %v794
    %v1031 = vpack.c.b16 %v799, %v795
    %v1032 = vpack.c.b16 %v800, %v796
    %v1033 = vpack.c.b16 %v801, %v797
    %v1034 = vpack.c.b16 %v806, %v802
    %v1035 = vpack.c.b16 %v807, %v803
    %v1036 = vpack.c.b16 %v808, %v804
    %v1037 = vpack.c.b16 %v809, %v805
    %v1038 = vpack.c.b16 %v814, %v810
    %v1039 = vpack.c.b16 %v815, %v811
    %v1040 = vpack.c.b16 %v816, %v812
    %v1041 = vpack.c.b16 %v817, %v813
    %v1042 = vpack.c.b16 %v822, %v818
    %v1043 = vpack.c.b16 %v823, %v819
    %v1044 = vpack.c.b16 %v824, %v820
    %v1045 = vpack.c.b16 %v825, %v821
    %v1046 = vpack.c.b16 %v830, %v826
    %v1047 = vpack.c.b16 %v831, %v827
    %v1048 = vpack.c.b16 %v832, %v828
    %v1049 = vpack.c.b16 %v833, %v829
    %v1050 = vpack.c.b16 %v838, %v834
    %v1051 = vpack.c.b16 %v839, %v835
    %v1052 = vpack.c.b16 %v840, %v836
    %v1053 = vpack.c.b16 %v841, %v837
    %v1054 = vpack.c.b16 %v846, %v842
    %v1055 = vpack.c.b16 %v847, %v843
    %v1056 = vpack.c.b16 %v848, %v844
    %v1057 = vpack.c.b16 %v849, %v845
    %v1058 = vpack.c.b16 %v854, %v850
    %v1059 = vpack.c.b16 %v855, %v851
    %v1060 = vpack.c.b16 %v856, %v852
    %v1061 = vpack.c.b16 %v857, %v853
    %v1062 = vpack.c.b16 %v862, %v858
    %v1063 = vpack.c.b16 %v863, %v859
    %v1064 = vpack.c.b16 %v864, %v860
    %v1065 = vpack.c.b16 %v865, %v861
    %v1066 = vpack.c.b16 %v870, %v866
    %v1067 = vpack.c.b16 %v871, %v867
    %v1068 = vpack.c.b16 %v872, %v868
    %v1069 = vpack.c.b16 %v873, %v869
    %v1070 = vpack.c.b16 %v878, %v874
    %v1071 = vpack.c.b16 %v879, %v875
    %v1072 = vpack.c.b16 %v880, %v876
    %v1073 = vpack.c.b16 %v881, %v877
    %v1074 = vpack.c.b16 %v886, %v882
    %v1075 = vpack.c.b16 %v887, %v883
    %v1076 = vpack.c.b16 %v888, %v884
    %v1077 = vpack.c.b16 %v889, %v885
    %v1078 = vpack.c.b16 %v894, %v890
    %v1079 = vpack.c.b16 %v895, %v891
    %v1080 = vpack.c.b16 %v896, %v892
    %v1081 = vpack.c.b16 %v897, %v893
    %v1082 = vpack.c.b16 %v902, %v898
    %v1083 = vpack.c.b16 %v903, %v899
    %v1084 = vpack.c.b16 %v904, %v900
    %v1085 = vpack.c.b16 %v905, %v901
    %v1086 = vpack.c.b16 %v910, %v906
    %v1087 = vpack.c.b16 %v911, %v907
    %v1088 = vpack.c.b16 %v912, %v908
    %v1089 = vpack.c.b16 %v913, %v909
    %v1090 = vpack.c.b16 %v918, %v914
    %v1091 = vpack.c.b16 %v919, %v915
    %v1092 = vpack.c.b16 %v920, %v916
    %v1093 = vpack.c.b16 %v921, %v917
    %v1094 = vpack.c.b16 %v926, %v922
    %v1095 = vpack.c.b16 %v927, %v923
    %v1096 = vpack.c.b16 %v928, %v924
    %v1097 = vpack.c.b16 %v929, %v925
    %v1098 = vpack.c.b16 %v934, %v930
    %v1099 = vpack.c.b16 %v935, %v931
    %v1100 = vpack.c.b16 %v936, %v932
    %v1101 = vpack.c.b16 %v937, %v933
    %v1102 = vpack.c.b16 %v942, %v938
    %v1103 = vpack.c.b16 %v943, %v939
    %v1104 = vpack.c.b16 %v944, %v940
    %v1105 = vpack.c.b16 %v945, %v941
    %v1106 = vpack.c.b16 %v950, %v946
    %v1107 = vpack.c.b16 %v951, %v947
    %v1108 = vpack.c.b16 %v952, %v948
    %v1109 = vpack.c.b16 %v953, %v949
    %v1110 = vpack.c.b16 %v958, %v954
    %v1111 = vpack.c.b16 %v959, %v955
    %v1112 = vpack.c.b16 %v960, %v956
    %v1113 = vpack.c.b16 %v961, %v957
    %v1114 = vpack.c.b16 %v966, %v962
    %v1115 = vpack.c.b16 %v967, %v963
    %v1116 = vpack.c.b16 %v968, %v964
    %v1117 = vpack.c.b16 %v969, %v965
    %v1118 = vpack.c.b16 %v974, %v970
    %v1119 = vpack.c.b16 %v975, %v971
    %v1120 = vpack.c.b16 %v976, %v972
    %v1121 = vpack.c.b16 %v977, %v973
    %v1122 = vpack.c.b16 %v982, %v978
    %v1123 = vpack.c.b16 %v983, %v979
    %v1124 = vpack.c.b16 %v984, %v980
    %v1125 = vpack.c.b16 %v985, %v981
    %v1126 = vpack.c.b16 %v990, %v986
    %v1127 = vpack.c.b16 %v991, %v987
    %v1128 = vpack.c.b16 %v992, %v988
    %v1129 = vpack.c.b16 %v993, %v989
    %v1130 = vpack.c.b16 %v998, %v994
    %v1131 = vpack.c.b16 %v999, %v995
    %v1132 = vpack.c.b16 %v1000, %v996
    %v1133 = vpack.c.b16 %v1001, %v997
    %v1134 = vpack.c.b16 %v1006, %v1002
    %v1135 = vpack.c.b16 %v1007, %v1003
    %v1136 = vpack.c.b16 %v1008, %v1004
    %v1137 = vpack.c.b16 %v1009, %v1005
    %1266 = vmatprep.subr.bf16.mxu0 %v1039
    %1267 = vmatpush1.bf16.msra.mxu0 %v1038
    %1268 = vmatprep.subr.bf16.mxu0 %v1035
    %1269 = vmatpush1.bf16.msra.mxu0 %v1034
    %1270 = vmatprep.subr.bf16.mxu0 %v1031
    %1271 = vmatpush1.bf16.msra.mxu0 %v1030
    %1272 = vmatprep.subr.bf16.mxu0 %v1027
    %1273 = vmatpush1.bf16.msra.mxu0 %v1026
    %1274 = vmatprep.subr.bf16.mxu0 %v1023
    %1275 = vmatpush1.bf16.msra.mxu0 %v1022
    %1276 = vmatprep.subr.bf16.mxu0 %v1019
    %1277 = vmatpush1.bf16.msra.mxu0 %v1018
    %1278 = vmatprep.subr.bf16.mxu0 %v1015
    %1279 = vmatpush1.bf16.msra.mxu0 %v1014
    %1280 = vmatprep.subr.bf16.mxu0 %v1011
    %1281 = vmatpush1.bf16.msra.mxu0 %v1010
    %1282 = vmatprep.subr.bf16.mxu0 %v1071
    %1283 = vmatpush2.bf16.msra.mxu0 %v1070
    %1284 = vmatprep.subr.bf16.mxu0 %v1067
    %1285 = vmatpush2.bf16.msra.mxu0 %v1066
    %1286 = vmatprep.subr.bf16.mxu0 %v1063
    %1287 = vmatpush2.bf16.msra.mxu0 %v1062
    %1288 = vmatprep.subr.bf16.mxu0 %v1059
    %1289 = vmatpush2.bf16.msra.mxu0 %v1058
    %1290 = vmatprep.subr.bf16.mxu0 %v1055
    %1291 = vmatpush2.bf16.msra.mxu0 %v1054
    %1292 = vmatprep.subr.bf16.mxu0 %v1051
    %1293 = vmatpush2.bf16.msra.mxu0 %v1050
    %1294 = vmatprep.subr.bf16.mxu0 %v1047
    %1295 = vmatpush2.bf16.msra.mxu0 %v1046
    %1296 = vmatprep.subr.bf16.mxu0 %v1043
    %1297 = vmatpush2.bf16.msra.mxu0 %v1042
    %1298 = vmatprep.mubr.bf16.mxu0 %v491
    %1299 = vmatmul.mubr.bf16.gmra.mxu0 %v490
    %v1300 = vpop.f32.mrf.mxu0
    %v1301 = vadd.f32 0.0, %v1300
    %v1302 = vpop.f32.mrf.mxu0
    %v1303 = vadd.f32 0.0, %v1302
    %v1304 = vpop.f32.mrf.mxu0
    %v1305 = vpop.f32.mrf.mxu0
    %1306 = vdwg.mxu0
    %1307 = vmatprep.subr.bf16.mxu0 %v1103
    %1308 = vmatpush1.bf16.msra.mxu0 %v1102
    %1309 = vmatprep.subr.bf16.mxu0 %v1099
    %1310 = vmatpush1.bf16.msra.mxu0 %v1098
    %1311 = vmatprep.subr.bf16.mxu0 %v1095
    %1312 = vmatpush1.bf16.msra.mxu0 %v1094
    %1313 = vmatprep.subr.bf16.mxu0 %v1091
    %1314 = vmatpush1.bf16.msra.mxu0 %v1090
    %1315 = vmatprep.subr.bf16.mxu0 %v1087
    %1316 = vmatpush1.bf16.msra.mxu0 %v1086
    %1317 = vmatprep.subr.bf16.mxu0 %v1083
    %1318 = vmatpush1.bf16.msra.mxu0 %v1082
    %1319 = vmatprep.subr.bf16.mxu0 %v1079
    %1320 = vmatpush1.bf16.msra.mxu0 %v1078
    %1321 = vmatprep.subr.bf16.mxu0 %v1075
    %1322 = vmatpush1.bf16.msra.mxu0 %v1074
    %1323 = vmatprep.subr.bf16.mxu0 %v1135
    %1324 = vmatpush2.bf16.msra.mxu0 %v1134
    %1325 = vmatprep.subr.bf16.mxu0 %v1131
    %1326 = vmatpush2.bf16.msra.mxu0 %v1130
    %1327 = vmatprep.subr.bf16.mxu0 %v1127
    %1328 = vmatpush2.bf16.msra.mxu0 %v1126
    %1329 = vmatprep.subr.bf16.mxu0 %v1123
    %1330 = vmatpush2.bf16.msra.mxu0 %v1122
    %1331 = vmatprep.subr.bf16.mxu0 %v1119
    %1332 = vmatpush2.bf16.msra.mxu0 %v1118
    %1333 = vmatprep.subr.bf16.mxu0 %v1115
    %1334 = vmatpush2.bf16.msra.mxu0 %v1114
    %1335 = vmatprep.subr.bf16.mxu0 %v1111
    %1336 = vmatpush2.bf16.msra.mxu0 %v1110
    %1337 = vmatprep.subr.bf16.mxu0 %v1107
    %1338 = vmatpush2.bf16.msra.mxu0 %v1106
    %1339 = vmatprep.mubr.bf16.mxu0 %v493
    %1340 = vmatmul.mubr.bf16.gmra.mxu0 %v492
    %v1341 = vpop.f32.mrf.mxu0
    %v1342 = vadd.f32 %v1301, %v1341
    %v1343 = vpop.f32.mrf.mxu0
    %v1344 = vadd.f32 %v1303, %v1343
    %v1345 = vpop.f32.mrf.mxu0
    %v1346 = vpop.f32.mrf.mxu0
    %1347 = vdwg.mxu0
    %1348 = vmatprep.subr.bf16.mxu0 %v1041
    %1349 = vmatpush1.bf16.msra.mxu0 %v1040
    %1350 = vmatprep.subr.bf16.mxu0 %v1037
    %1351 = vmatpush1.bf16.msra.mxu0 %v1036
    %1352 = vmatprep.subr.bf16.mxu0 %v1033
    %1353 = vmatpush1.bf16.msra.mxu0 %v1032
    %1354 = vmatprep.subr.bf16.mxu0 %v1029
    %1355 = vmatpush1.bf16.msra.mxu0 %v1028
    %1356 = vmatprep.subr.bf16.mxu0 %v1025
    %1357 = vmatpush1.bf16.msra.mxu0 %v1024
    %1358 = vmatprep.subr.bf16.mxu0 %v1021
    %1359 = vmatpush1.bf16.msra.mxu0 %v1020
    %1360 = vmatprep.subr.bf16.mxu0 %v1017
    %1361 = vmatpush1.bf16.msra.mxu0 %v1016
    %1362 = vmatprep.subr.bf16.mxu0 %v1013
    %1363 = vmatpush1.bf16.msra.mxu0 %v1012
    %1364 = vmatprep.subr.bf16.mxu0 %v1073
    %1365 = vmatpush2.bf16.msra.mxu0 %v1072
    %1366 = vmatprep.subr.bf16.mxu0 %v1069
    %1367 = vmatpush2.bf16.msra.mxu0 %v1068
    %1368 = vmatprep.subr.bf16.mxu0 %v1065
    %1369 = vmatpush2.bf16.msra.mxu0 %v1064
    %1370 = vmatprep.subr.bf16.mxu0 %v1061
    %1371 = vmatpush2.bf16.msra.mxu0 %v1060
    %1372 = vmatprep.subr.bf16.mxu0 %v1057
    %1373 = vmatpush2.bf16.msra.mxu0 %v1056
    %1374 = vmatprep.subr.bf16.mxu0 %v1053
    %1375 = vmatpush2.bf16.msra.mxu0 %v1052
    %1376 = vmatprep.subr.bf16.mxu0 %v1049
    %1377 = vmatpush2.bf16.msra.mxu0 %v1048
    %1378 = vmatprep.subr.bf16.mxu0 %v1045
    %1379 = vmatpush2.bf16.msra.mxu0 %v1044
    %1380 = vmatprep.mubr.bf16.mxu0 %v491
    %1381 = vmatmul.mubr.bf16.gmra.mxu0 %v490
    %v1382 = vpop.f32.mrf.mxu0
    %v1383 = vadd.f32 0.0, %v1382
    %v1384 = vpop.f32.mrf.mxu0
    %v1385 = vadd.f32 0.0, %v1384
    %v1386 = vpop.f32.mrf.mxu0
    %v1387 = vpop.f32.mrf.mxu0
    %1388 = vdwg.mxu0
    %1389 = vmatprep.subr.bf16.mxu0 %v1105
    %1390 = vmatpush1.bf16.msra.mxu0 %v1104
    %1391 = vmatprep.subr.bf16.mxu0 %v1101
    %1392 = vmatpush1.bf16.msra.mxu0 %v1100
    %1393 = vmatprep.subr.bf16.mxu0 %v1097
    %1394 = vmatpush1.bf16.msra.mxu0 %v1096
    %1395 = vmatprep.subr.bf16.mxu0 %v1093
    %1396 = vmatpush1.bf16.msra.mxu0 %v1092
    %1397 = vmatprep.subr.bf16.mxu0 %v1089
    %1398 = vmatpush1.bf16.msra.mxu0 %v1088
    %1399 = vmatprep.subr.bf16.mxu0 %v1085
    %1400 = vmatpush1.bf16.msra.mxu0 %v1084
    %1401 = vmatprep.subr.bf16.mxu0 %v1081
    %1402 = vmatpush1.bf16.msra.mxu0 %v1080
    %1403 = vmatprep.subr.bf16.mxu0 %v1077
    %1404 = vmatpush1.bf16.msra.mxu0 %v1076
    %1405 = vmatprep.subr.bf16.mxu0 %v1137
    %1406 = vmatpush2.bf16.msra.mxu0 %v1136
    %1407 = vmatprep.subr.bf16.mxu0 %v1133
    %1408 = vmatpush2.bf16.msra.mxu0 %v1132
    %1409 = vmatprep.subr.bf16.mxu0 %v1129
    %1410 = vmatpush2.bf16.msra.mxu0 %v1128
    %1411 = vmatprep.subr.bf16.mxu0 %v1125
    %1412 = vmatpush2.bf16.msra.mxu0 %v1124
    %1413 = vmatprep.subr.bf16.mxu0 %v1121
    %1414 = vmatpush2.bf16.msra.mxu0 %v1120
    %1415 = vmatprep.subr.bf16.mxu0 %v1117
    %1416 = vmatpush2.bf16.msra.mxu0 %v1116
    %1417 = vmatprep.subr.bf16.mxu0 %v1113
    %1418 = vmatpush2.bf16.msra.mxu0 %v1112
    %1419 = vmatprep.subr.bf16.mxu0 %v1109
    %1420 = vmatpush2.bf16.msra.mxu0 %v1108
    %1421 = vmatprep.mubr.bf16.mxu0 %v493
    %1422 = vmatmul.mubr.bf16.gmra.mxu0 %v492
    %v1423 = vpop.f32.mrf.mxu0
    %v1424 = vadd.f32 %v1383, %v1423
    %v1425 = vpop.f32.mrf.mxu0
    %v1426 = vadd.f32 %v1385, %v1425
    %v1427 = vpop.f32.mrf.mxu0
    %v1428 = vpop.f32.mrf.mxu0
    %1429 = vdwg.mxu0
    %v1430 = vpack.c.bf16 %v1342, %v1342
    %v1431 = vpack.c.bf16 %v1344, %v1344
    %v1432 = vpack.c.bf16 %v1424, %v1424
    %v1433 = vpack.c.bf16 %v1426, %v1426
    %v1434 = vld [vmem:[%s4] sm:$0xf]
    %v1437 = vunpack.c.l.s4 1966171168
    %v1438 = vunpack.c.0.s8 %v1437
    %v1439 = vlaneseq
    %v1440 = vshrl.u32 %v1439, 7
    %v1441 = vsub.s32 %v1438, %v1440
    %v1442 = vrot.slane %v1434, %v1441
    %v1443 = vcombine.high %v1442, %v1442
    %v1445 = vunpack.c.l.s4 1966171168
    %v1446 = vunpack.c.0.s8 %v1445
    %v1447 = vlaneseq
    %v1448 = vshrl.u32 %v1447, 7
    %v1449 = vsub.s32 %v1446, %v1448
    %v1450 = vrot.slane %v1442, %v1449
    %v1452 = vunpack.c.l.s4 1966171168
    %v1453 = vunpack.c.0.s8 %v1452
    %v1454 = vlaneseq
    %v1455 = vshrl.u32 %v1454, 7
    %v1456 = vsub.s32 %v1453, %v1455
    %v1457 = vrot.slane %v1443, %v1456
    %v1458 = vcombine.high %v1450, %v1450
    %v1459 = vcombine.high %v1457, %v1457
    %v1461 = vpack.i.b16 %v1450, %v1450
    %v1463 = vlaneseq
    %v1464 = vshrl.u32 %v1463, 7
    %v1465 = vsub.s32 0, %v1464
    %v1466 = vrot.slane %v1461, %v1465
    %v1468 = vpack.i.b16 %v1457, %v1457
    %v1470 = vlaneseq
    %v1471 = vshrl.u32 %v1470, 7
    %v1472 = vsub.s32 0, %v1471
    %v1473 = vrot.slane %v1468, %v1472
    %v1475 = vpack.i.b16 %v1458, %v1458
    %v1477 = vlaneseq
    %v1478 = vshrl.u32 %v1477, 7
    %v1479 = vsub.s32 0, %v1478
    %v1480 = vrot.slane %v1475, %v1479
    %v1482 = vpack.i.b16 %v1459, %v1459
    %v1484 = vlaneseq
    %v1485 = vshrl.u32 %v1484, 7
    %v1486 = vsub.s32 0, %v1485
    %v1487 = vrot.slane %v1482, %v1486
    %v1488 = vadd.bf16 %v1430, %v1466
    %v1489 = vadd.bf16 %v1431, %v1473
    %v1490 = vadd.bf16 %v1432, %v1480
    %v1491 = vadd.bf16 %v1433, %v1487
    %v1492 = vmax.bf16 %v1488, 0
    %v1493 = vmax.bf16 %v1489, 0
    %v1494 = vmax.bf16 %v1490, 0
    %v1495 = vmax.bf16 %v1491, 0
    %v1496 = vld [vmem:[#allocation7] sm:$0xff]
    %v1497 = vld [vmem:[#allocation7 + $0x8] sm:$0xff]
    %v1498 = vld [vmem:[#allocation7 + $0x10] sm:$0xff]
    %v1499 = vld [vmem:[#allocation7 + $0x18] sm:$0xff]
    %v1500 = vld [vmem:[#allocation7 + $0x20] sm:$0xff]
    %v1501 = vld [vmem:[#allocation7 + $0x28] sm:$0xff]
    %v1502 = vld [vmem:[#allocation7 + $0x30] sm:$0xff]
    %v1503 = vld [vmem:[#allocation7 + $0x38] sm:$0xff]
    %v1504 = vld [vmem:[#allocation7 + $0x40] sm:$0xff]
    %v1505 = vld [vmem:[#allocation7 + $0x48] sm:$0xff]
    %v1506 = vld [vmem:[#allocation7 + $0x50] sm:$0xff]
    %v1507 = vld [vmem:[#allocation7 + $0x58] sm:$0xff]
    %v1508 = vld [vmem:[#allocation7 + $0x60] sm:$0xff]
    %v1509 = vld [vmem:[#allocation7 + $0x68] sm:$0xff]
    %v1510 = vld [vmem:[#allocation7 + $0x70] sm:$0xff]
    %v1511 = vld [vmem:[#allocation7 + $0x78] sm:$0xff]
    %v1512 = vld [vmem:[#allocation7 + $0x80] sm:$0xff]
    %v1513 = vld [vmem:[#allocation7 + $0x88] sm:$0xff]
    %v1514 = vld [vmem:[#allocation7 + $0x90] sm:$0xff]
    %v1515 = vld [vmem:[#allocation7 + $0x98] sm:$0xff]
    %v1516 = vld [vmem:[#allocation7 + $0xa0] sm:$0xff]
    %v1517 = vld [vmem:[#allocation7 + $0xa8] sm:$0xff]
    %v1518 = vld [vmem:[#allocation7 + $0xb0] sm:$0xff]
    %v1519 = vld [vmem:[#allocation7 + $0xb8] sm:$0xff]
    %v1520 = vld [vmem:[#allocation7 + $0xc0] sm:$0xff]
    %v1521 = vld [vmem:[#allocation7 + $0xc8] sm:$0xff]
    %v1522 = vld [vmem:[#allocation7 + $0xd0] sm:$0xff]
    %v1523 = vld [vmem:[#allocation7 + $0xd8] sm:$0xff]
    %v1524 = vld [vmem:[#allocation7 + $0xe0] sm:$0xff]
    %v1525 = vld [vmem:[#allocation7 + $0xe8] sm:$0xff]
    %v1526 = vld [vmem:[#allocation7 + $0xf0] sm:$0xff]
    %v1527 = vld [vmem:[#allocation7 + $0xf8] sm:$0xff]
    %v1528 = vld [vmem:[#allocation7 + $0x100] sm:$0xff]
    %v1529 = vld [vmem:[#allocation7 + $0x108] sm:$0xff]
    %v1530 = vld [vmem:[#allocation7 + $0x110] sm:$0xff]
    %v1531 = vld [vmem:[#allocation7 + $0x118] sm:$0xff]
    %v1532 = vld [vmem:[#allocation7 + $0x120] sm:$0xff]
    %v1533 = vld [vmem:[#allocation7 + $0x128] sm:$0xff]
    %v1534 = vld [vmem:[#allocation7 + $0x130] sm:$0xff]
    %v1535 = vld [vmem:[#allocation7 + $0x138] sm:$0xff]
    %v1536 = vld [vmem:[#allocation7 + $0x140] sm:$0xff]
    %v1537 = vld [vmem:[#allocation7 + $0x148] sm:$0xff]
    %v1538 = vld [vmem:[#allocation7 + $0x150] sm:$0xff]
    %v1539 = vld [vmem:[#allocation7 + $0x158] sm:$0xff]
    %v1540 = vld [vmem:[#allocation7 + $0x160] sm:$0xff]
    %v1541 = vld [vmem:[#allocation7 + $0x168] sm:$0xff]
    %v1542 = vld [vmem:[#allocation7 + $0x170] sm:$0xff]
    %v1543 = vld [vmem:[#allocation7 + $0x178] sm:$0xff]
    %v1544 = vld [vmem:[#allocation7 + $0x180] sm:$0xff]
    %v1545 = vld [vmem:[#allocation7 + $0x188] sm:$0xff]
    %v1546 = vld [vmem:[#allocation7 + $0x190] sm:$0xff]
    %v1547 = vld [vmem:[#allocation7 + $0x198] sm:$0xff]
    %v1548 = vld [vmem:[#allocation7 + $0x1a0] sm:$0xff]
    %v1549 = vld [vmem:[#allocation7 + $0x1a8] sm:$0xff]
    %v1550 = vld [vmem:[#allocation7 + $0x1b0] sm:$0xff]
    %v1551 = vld [vmem:[#allocation7 + $0x1b8] sm:$0xff]
    %v1552 = vld [vmem:[#allocation7 + $0x1c0] sm:$0xff]
    %v1553 = vld [vmem:[#allocation7 + $0x1c8] sm:$0xff]
    %v1554 = vld [vmem:[#allocation7 + $0x1d0] sm:$0xff]
    %v1555 = vld [vmem:[#allocation7 + $0x1d8] sm:$0xff]
    %v1556 = vld [vmem:[#allocation7 + $0x1e0] sm:$0xff]
    %v1557 = vld [vmem:[#allocation7 + $0x1e8] sm:$0xff]
    %v1558 = vld [vmem:[#allocation7 + $0x1f0] sm:$0xff]
    %v1559 = vld [vmem:[#allocation7 + $0x1f8] sm:$0xff]
    %v1560 = vld [vmem:[#allocation7 + $0x200] sm:$0xff]
    %v1561 = vld [vmem:[#allocation7 + $0x208] sm:$0xff]
    %v1562 = vld [vmem:[#allocation7 + $0x210] sm:$0xff]
    %v1563 = vld [vmem:[#allocation7 + $0x218] sm:$0xff]
    %v1564 = vld [vmem:[#allocation7 + $0x220] sm:$0xff]
    %v1565 = vld [vmem:[#allocation7 + $0x228] sm:$0xff]
    %v1566 = vld [vmem:[#allocation7 + $0x230] sm:$0xff]
    %v1567 = vld [vmem:[#allocation7 + $0x238] sm:$0xff]
    %v1568 = vld [vmem:[#allocation7 + $0x240] sm:$0xff]
    %v1569 = vld [vmem:[#allocation7 + $0x248] sm:$0xff]
    %v1570 = vld [vmem:[#allocation7 + $0x250] sm:$0xff]
    %v1571 = vld [vmem:[#allocation7 + $0x258] sm:$0xff]
    %v1572 = vld [vmem:[#allocation7 + $0x260] sm:$0xff]
    %v1573 = vld [vmem:[#allocation7 + $0x268] sm:$0xff]
    %v1574 = vld [vmem:[#allocation7 + $0x270] sm:$0xff]
    %v1575 = vld [vmem:[#allocation7 + $0x278] sm:$0xff]
    %v1576 = vld [vmem:[#allocation7 + $0x280] sm:$0xff]
    %v1577 = vld [vmem:[#allocation7 + $0x288] sm:$0xff]
    %v1578 = vld [vmem:[#allocation7 + $0x290] sm:$0xff]
    %v1579 = vld [vmem:[#allocation7 + $0x298] sm:$0xff]
    %v1580 = vld [vmem:[#allocation7 + $0x2a0] sm:$0xff]
    %v1581 = vld [vmem:[#allocation7 + $0x2a8] sm:$0xff]
    %v1582 = vld [vmem:[#allocation7 + $0x2b0] sm:$0xff]
    %v1583 = vld [vmem:[#allocation7 + $0x2b8] sm:$0xff]
    %v1584 = vld [vmem:[#allocation7 + $0x2c0] sm:$0xff]
    %v1585 = vld [vmem:[#allocation7 + $0x2c8] sm:$0xff]
    %v1586 = vld [vmem:[#allocation7 + $0x2d0] sm:$0xff]
    %v1587 = vld [vmem:[#allocation7 + $0x2d8] sm:$0xff]
    %v1588 = vld [vmem:[#allocation7 + $0x2e0] sm:$0xff]
    %v1589 = vld [vmem:[#allocation7 + $0x2e8] sm:$0xff]
    %v1590 = vld [vmem:[#allocation7 + $0x2f0] sm:$0xff]
    %v1591 = vld [vmem:[#allocation7 + $0x2f8] sm:$0xff]
    %v1592 = vld [vmem:[#allocation7 + $0x300] sm:$0xff]
    %v1593 = vld [vmem:[#allocation7 + $0x308] sm:$0xff]
    %v1594 = vld [vmem:[#allocation7 + $0x310] sm:$0xff]
    %v1595 = vld [vmem:[#allocation7 + $0x318] sm:$0xff]
    %v1596 = vld [vmem:[#allocation7 + $0x320] sm:$0xff]
    %v1597 = vld [vmem:[#allocation7 + $0x328] sm:$0xff]
    %v1598 = vld [vmem:[#allocation7 + $0x330] sm:$0xff]
    %v1599 = vld [vmem:[#allocation7 + $0x338] sm:$0xff]
    %v1600 = vld [vmem:[#allocation7 + $0x340] sm:$0xff]
    %v1601 = vld [vmem:[#allocation7 + $0x348] sm:$0xff]
    %v1602 = vld [vmem:[#allocation7 + $0x350] sm:$0xff]
    %v1603 = vld [vmem:[#allocation7 + $0x358] sm:$0xff]
    %v1604 = vld [vmem:[#allocation7 + $0x360] sm:$0xff]
    %v1605 = vld [vmem:[#allocation7 + $0x368] sm:$0xff]
    %v1606 = vld [vmem:[#allocation7 + $0x370] sm:$0xff]
    %v1607 = vld [vmem:[#allocation7 + $0x378] sm:$0xff]
    %v1608 = vld [vmem:[#allocation7 + $0x380] sm:$0xff]
    %v1609 = vld [vmem:[#allocation7 + $0x388] sm:$0xff]
    %v1610 = vld [vmem:[#allocation7 + $0x390] sm:$0xff]
    %v1611 = vld [vmem:[#allocation7 + $0x398] sm:$0xff]
    %v1612 = vld [vmem:[#allocation7 + $0x3a0] sm:$0xff]
    %v1613 = vld [vmem:[#allocation7 + $0x3a8] sm:$0xff]
    %v1614 = vld [vmem:[#allocation7 + $0x3b0] sm:$0xff]
    %v1615 = vld [vmem:[#allocation7 + $0x3b8] sm:$0xff]
    %v1616 = vld [vmem:[#allocation7 + $0x3c0] sm:$0xff]
    %v1617 = vld [vmem:[#allocation7 + $0x3c8] sm:$0xff]
    %v1618 = vld [vmem:[#allocation7 + $0x3d0] sm:$0xff]
    %v1619 = vld [vmem:[#allocation7 + $0x3d8] sm:$0xff]
    %v1620 = vld [vmem:[#allocation7 + $0x3e0] sm:$0xff]
    %v1621 = vld [vmem:[#allocation7 + $0x3e8] sm:$0xff]
    %v1622 = vld [vmem:[#allocation7 + $0x3f0] sm:$0xff]
    %v1623 = vld [vmem:[#allocation7 + $0x3f8] sm:$0xff]
    %v1752 = vunpack.c.l.b16 %v1496
    %v1753 = vunpack.c.h.b16 %v1496
    %v1754 = vunpack.c.l.b16 %v1497
    %v1755 = vunpack.c.h.b16 %v1497
    %v1756 = vunpack.c.l.b16 %v1498
    %v1757 = vunpack.c.h.b16 %v1498
    %v1758 = vunpack.c.l.b16 %v1499
    %v1759 = vunpack.c.h.b16 %v1499
    %v1760 = vunpack.c.l.b16 %v1500
    %v1761 = vunpack.c.h.b16 %v1500
    %v1762 = vunpack.c.l.b16 %v1501
    %v1763 = vunpack.c.h.b16 %v1501
    %v1764 = vunpack.c.l.b16 %v1502
    %v1765 = vunpack.c.h.b16 %v1502
    %v1766 = vunpack.c.l.b16 %v1503
    %v1767 = vunpack.c.h.b16 %v1503
    %v1768 = vunpack.c.l.b16 %v1504
    %v1769 = vunpack.c.h.b16 %v1504
    %v1770 = vunpack.c.l.b16 %v1505
    %v1771 = vunpack.c.h.b16 %v1505
    %v1772 = vunpack.c.l.b16 %v1506
    %v1773 = vunpack.c.h.b16 %v1506
    %v1774 = vunpack.c.l.b16 %v1507
    %v1775 = vunpack.c.h.b16 %v1507
    %v1776 = vunpack.c.l.b16 %v1508
    %v1777 = vunpack.c.h.b16 %v1508
    %v1778 = vunpack.c.l.b16 %v1509
    %v1779 = vunpack.c.h.b16 %v1509
    %v1780 = vunpack.c.l.b16 %v1510
    %v1781 = vunpack.c.h.b16 %v1510
    %v1782 = vunpack.c.l.b16 %v1511
    %v1783 = vunpack.c.h.b16 %v1511
    %v1784 = vunpack.c.l.b16 %v1512
    %v1785 = vunpack.c.h.b16 %v1512
    %v1786 = vunpack.c.l.b16 %v1513
    %v1787 = vunpack.c.h.b16 %v1513
    %v1788 = vunpack.c.l.b16 %v1514
    %v1789 = vunpack.c.h.b16 %v1514
    %v1790 = vunpack.c.l.b16 %v1515
    %v1791 = vunpack.c.h.b16 %v1515
    %v1792 = vunpack.c.l.b16 %v1516
    %v1793 = vunpack.c.h.b16 %v1516
    %v1794 = vunpack.c.l.b16 %v1517
    %v1795 = vunpack.c.h.b16 %v1517
    %v1796 = vunpack.c.l.b16 %v1518
    %v1797 = vunpack.c.h.b16 %v1518
    %v1798 = vunpack.c.l.b16 %v1519
    %v1799 = vunpack.c.h.b16 %v1519
    %v1800 = vunpack.c.l.b16 %v1520
    %v1801 = vunpack.c.h.b16 %v1520
    %v1802 = vunpack.c.l.b16 %v1521
    %v1803 = vunpack.c.h.b16 %v1521
    %v1804 = vunpack.c.l.b16 %v1522
    %v1805 = vunpack.c.h.b16 %v1522
    %v1806 = vunpack.c.l.b16 %v1523
    %v1807 = vunpack.c.h.b16 %v1523
    %v1808 = vunpack.c.l.b16 %v1524
    %v1809 = vunpack.c.h.b16 %v1524
    %v1810 = vunpack.c.l.b16 %v1525
    %v1811 = vunpack.c.h.b16 %v1525
    %v1812 = vunpack.c.l.b16 %v1526
    %v1813 = vunpack.c.h.b16 %v1526
    %v1814 = vunpack.c.l.b16 %v1527
    %v1815 = vunpack.c.h.b16 %v1527
    %v1816 = vunpack.c.l.b16 %v1528
    %v1817 = vunpack.c.h.b16 %v1528
    %v1818 = vunpack.c.l.b16 %v1529
    %v1819 = vunpack.c.h.b16 %v1529
    %v1820 = vunpack.c.l.b16 %v1530
    %v1821 = vunpack.c.h.b16 %v1530
    %v1822 = vunpack.c.l.b16 %v1531
    %v1823 = vunpack.c.h.b16 %v1531
    %v1824 = vunpack.c.l.b16 %v1532
    %v1825 = vunpack.c.h.b16 %v1532
    %v1826 = vunpack.c.l.b16 %v1533
    %v1827 = vunpack.c.h.b16 %v1533
    %v1828 = vunpack.c.l.b16 %v1534
    %v1829 = vunpack.c.h.b16 %v1534
    %v1830 = vunpack.c.l.b16 %v1535
    %v1831 = vunpack.c.h.b16 %v1535
    %v1832 = vunpack.c.l.b16 %v1536
    %v1833 = vunpack.c.h.b16 %v1536
    %v1834 = vunpack.c.l.b16 %v1537
    %v1835 = vunpack.c.h.b16 %v1537
    %v1836 = vunpack.c.l.b16 %v1538
    %v1837 = vunpack.c.h.b16 %v1538
    %v1838 = vunpack.c.l.b16 %v1539
    %v1839 = vunpack.c.h.b16 %v1539
    %v1840 = vunpack.c.l.b16 %v1540
    %v1841 = vunpack.c.h.b16 %v1540
    %v1842 = vunpack.c.l.b16 %v1541
    %v1843 = vunpack.c.h.b16 %v1541
    %v1844 = vunpack.c.l.b16 %v1542
    %v1845 = vunpack.c.h.b16 %v1542
    %v1846 = vunpack.c.l.b16 %v1543
    %v1847 = vunpack.c.h.b16 %v1543
    %v1848 = vunpack.c.l.b16 %v1544
    %v1849 = vunpack.c.h.b16 %v1544
    %v1850 = vunpack.c.l.b16 %v1545
    %v1851 = vunpack.c.h.b16 %v1545
    %v1852 = vunpack.c.l.b16 %v1546
    %v1853 = vunpack.c.h.b16 %v1546
    %v1854 = vunpack.c.l.b16 %v1547
    %v1855 = vunpack.c.h.b16 %v1547
    %v1856 = vunpack.c.l.b16 %v1548
    %v1857 = vunpack.c.h.b16 %v1548
    %v1858 = vunpack.c.l.b16 %v1549
    %v1859 = vunpack.c.h.b16 %v1549
    %v1860 = vunpack.c.l.b16 %v1550
    %v1861 = vunpack.c.h.b16 %v1550
    %v1862 = vunpack.c.l.b16 %v1551
    %v1863 = vunpack.c.h.b16 %v1551
    %v1864 = vunpack.c.l.b16 %v1552
    %v1865 = vunpack.c.h.b16 %v1552
    %v1866 = vunpack.c.l.b16 %v1553
    %v1867 = vunpack.c.h.b16 %v1553
    %v1868 = vunpack.c.l.b16 %v1554
    %v1869 = vunpack.c.h.b16 %v1554
    %v1870 = vunpack.c.l.b16 %v1555
    %v1871 = vunpack.c.h.b16 %v1555
    %v1872 = vunpack.c.l.b16 %v1556
    %v1873 = vunpack.c.h.b16 %v1556
    %v1874 = vunpack.c.l.b16 %v1557
    %v1875 = vunpack.c.h.b16 %v1557
    %v1876 = vunpack.c.l.b16 %v1558
    %v1877 = vunpack.c.h.b16 %v1558
    %v1878 = vunpack.c.l.b16 %v1559
    %v1879 = vunpack.c.h.b16 %v1559
    %v1880 = vunpack.c.l.b16 %v1560
    %v1881 = vunpack.c.h.b16 %v1560
    %v1882 = vunpack.c.l.b16 %v1561
    %v1883 = vunpack.c.h.b16 %v1561
    %v1884 = vunpack.c.l.b16 %v1562
    %v1885 = vunpack.c.h.b16 %v1562
    %v1886 = vunpack.c.l.b16 %v1563
    %v1887 = vunpack.c.h.b16 %v1563
    %v1888 = vunpack.c.l.b16 %v1564
    %v1889 = vunpack.c.h.b16 %v1564
    %v1890 = vunpack.c.l.b16 %v1565
    %v1891 = vunpack.c.h.b16 %v1565
    %v1892 = vunpack.c.l.b16 %v1566
    %v1893 = vunpack.c.h.b16 %v1566
    %v1894 = vunpack.c.l.b16 %v1567
    %v1895 = vunpack.c.h.b16 %v1567
    %v1896 = vunpack.c.l.b16 %v1568
    %v1897 = vunpack.c.h.b16 %v1568
    %v1898 = vunpack.c.l.b16 %v1569
    %v1899 = vunpack.c.h.b16 %v1569
    %v1900 = vunpack.c.l.b16 %v1570
    %v1901 = vunpack.c.h.b16 %v1570
    %v1902 = vunpack.c.l.b16 %v1571
    %v1903 = vunpack.c.h.b16 %v1571
    %v1904 = vunpack.c.l.b16 %v1572
    %v1905 = vunpack.c.h.b16 %v1572
    %v1906 = vunpack.c.l.b16 %v1573
    %v1907 = vunpack.c.h.b16 %v1573
    %v1908 = vunpack.c.l.b16 %v1574
    %v1909 = vunpack.c.h.b16 %v1574
    %v1910 = vunpack.c.l.b16 %v1575
    %v1911 = vunpack.c.h.b16 %v1575
    %v1912 = vunpack.c.l.b16 %v1576
    %v1913 = vunpack.c.h.b16 %v1576
    %v1914 = vunpack.c.l.b16 %v1577
    %v1915 = vunpack.c.h.b16 %v1577
    %v1916 = vunpack.c.l.b16 %v1578
    %v1917 = vunpack.c.h.b16 %v1578
    %v1918 = vunpack.c.l.b16 %v1579
    %v1919 = vunpack.c.h.b16 %v1579
    %v1920 = vunpack.c.l.b16 %v1580
    %v1921 = vunpack.c.h.b16 %v1580
    %v1922 = vunpack.c.l.b16 %v1581
    %v1923 = vunpack.c.h.b16 %v1581
    %v1924 = vunpack.c.l.b16 %v1582
    %v1925 = vunpack.c.h.b16 %v1582
    %v1926 = vunpack.c.l.b16 %v1583
    %v1927 = vunpack.c.h.b16 %v1583
    %v1928 = vunpack.c.l.b16 %v1584
    %v1929 = vunpack.c.h.b16 %v1584
    %v1930 = vunpack.c.l.b16 %v1585
    %v1931 = vunpack.c.h.b16 %v1585
    %v1932 = vunpack.c.l.b16 %v1586
    %v1933 = vunpack.c.h.b16 %v1586
    %v1934 = vunpack.c.l.b16 %v1587
    %v1935 = vunpack.c.h.b16 %v1587
    %v1936 = vunpack.c.l.b16 %v1588
    %v1937 = vunpack.c.h.b16 %v1588
    %v1938 = vunpack.c.l.b16 %v1589
    %v1939 = vunpack.c.h.b16 %v1589
    %v1940 = vunpack.c.l.b16 %v1590
    %v1941 = vunpack.c.h.b16 %v1590
    %v1942 = vunpack.c.l.b16 %v1591
    %v1943 = vunpack.c.h.b16 %v1591
    %v1944 = vunpack.c.l.b16 %v1592
    %v1945 = vunpack.c.h.b16 %v1592
    %v1946 = vunpack.c.l.b16 %v1593
    %v1947 = vunpack.c.h.b16 %v1593
    %v1948 = vunpack.c.l.b16 %v1594
    %v1949 = vunpack.c.h.b16 %v1594
    %v1950 = vunpack.c.l.b16 %v1595
    %v1951 = vunpack.c.h.b16 %v1595
    %v1952 = vunpack.c.l.b16 %v1596
    %v1953 = vunpack.c.h.b16 %v1596
    %v1954 = vunpack.c.l.b16 %v1597
    %v1955 = vunpack.c.h.b16 %v1597
    %v1956 = vunpack.c.l.b16 %v1598
    %v1957 = vunpack.c.h.b16 %v1598
    %v1958 = vunpack.c.l.b16 %v1599
    %v1959 = vunpack.c.h.b16 %v1599
    %v1960 = vunpack.c.l.b16 %v1600
    %v1961 = vunpack.c.h.b16 %v1600
    %v1962 = vunpack.c.l.b16 %v1601
    %v1963 = vunpack.c.h.b16 %v1601
    %v1964 = vunpack.c.l.b16 %v1602
    %v1965 = vunpack.c.h.b16 %v1602
    %v1966 = vunpack.c.l.b16 %v1603
    %v1967 = vunpack.c.h.b16 %v1603
    %v1968 = vunpack.c.l.b16 %v1604
    %v1969 = vunpack.c.h.b16 %v1604
    %v1970 = vunpack.c.l.b16 %v1605
    %v1971 = vunpack.c.h.b16 %v1605
    %v1972 = vunpack.c.l.b16 %v1606
    %v1973 = vunpack.c.h.b16 %v1606
    %v1974 = vunpack.c.l.b16 %v1607
    %v1975 = vunpack.c.h.b16 %v1607
    %v1976 = vunpack.c.l.b16 %v1608
    %v1977 = vunpack.c.h.b16 %v1608
    %v1978 = vunpack.c.l.b16 %v1609
    %v1979 = vunpack.c.h.b16 %v1609
    %v1980 = vunpack.c.l.b16 %v1610
    %v1981 = vunpack.c.h.b16 %v1610
    %v1982 = vunpack.c.l.b16 %v1611
    %v1983 = vunpack.c.h.b16 %v1611
    %v1984 = vunpack.c.l.b16 %v1612
    %v1985 = vunpack.c.h.b16 %v1612
    %v1986 = vunpack.c.l.b16 %v1613
    %v1987 = vunpack.c.h.b16 %v1613
    %v1988 = vunpack.c.l.b16 %v1614
    %v1989 = vunpack.c.h.b16 %v1614
    %v1990 = vunpack.c.l.b16 %v1615
    %v1991 = vunpack.c.h.b16 %v1615
    %v1992 = vunpack.c.l.b16 %v1616
    %v1993 = vunpack.c.h.b16 %v1616
    %v1994 = vunpack.c.l.b16 %v1617
    %v1995 = vunpack.c.h.b16 %v1617
    %v1996 = vunpack.c.l.b16 %v1618
    %v1997 = vunpack.c.h.b16 %v1618
    %v1998 = vunpack.c.l.b16 %v1619
    %v1999 = vunpack.c.h.b16 %v1619
    %v2000 = vunpack.c.l.b16 %v1620
    %v2001 = vunpack.c.h.b16 %v1620
    %v2002 = vunpack.c.l.b16 %v1621
    %v2003 = vunpack.c.h.b16 %v1621
    %v2004 = vunpack.c.l.b16 %v1622
    %v2005 = vunpack.c.h.b16 %v1622
    %v2006 = vunpack.c.l.b16 %v1623
    %v2007 = vunpack.c.h.b16 %v1623
    %v2008 = vpack.c.b16 %v1756, %v1752
    %v2009 = vpack.c.b16 %v1757, %v1753
    %v2010 = vpack.c.b16 %v1758, %v1754
    %v2011 = vpack.c.b16 %v1759, %v1755
    %v2012 = vpack.c.b16 %v1764, %v1760
    %v2013 = vpack.c.b16 %v1765, %v1761
    %v2014 = vpack.c.b16 %v1766, %v1762
    %v2015 = vpack.c.b16 %v1767, %v1763
    %v2016 = vpack.c.b16 %v1772, %v1768
    %v2017 = vpack.c.b16 %v1773, %v1769
    %v2018 = vpack.c.b16 %v1774, %v1770
    %v2019 = vpack.c.b16 %v1775, %v1771
    %v2020 = vpack.c.b16 %v1780, %v1776
    %v2021 = vpack.c.b16 %v1781, %v1777
    %v2022 = vpack.c.b16 %v1782, %v1778
    %v2023 = vpack.c.b16 %v1783, %v1779
    %v2024 = vpack.c.b16 %v1788, %v1784
    %v2025 = vpack.c.b16 %v1789, %v1785
    %v2026 = vpack.c.b16 %v1790, %v1786
    %v2027 = vpack.c.b16 %v1791, %v1787
    %v2028 = vpack.c.b16 %v1796, %v1792
    %v2029 = vpack.c.b16 %v1797, %v1793
    %v2030 = vpack.c.b16 %v1798, %v1794
    %v2031 = vpack.c.b16 %v1799, %v1795
    %v2032 = vpack.c.b16 %v1804, %v1800
    %v2033 = vpack.c.b16 %v1805, %v1801
    %v2034 = vpack.c.b16 %v1806, %v1802
    %v2035 = vpack.c.b16 %v1807, %v1803
    %v2036 = vpack.c.b16 %v1812, %v1808
    %v2037 = vpack.c.b16 %v1813, %v1809
    %v2038 = vpack.c.b16 %v1814, %v1810
    %v2039 = vpack.c.b16 %v1815, %v1811
    %v2040 = vpack.c.b16 %v1820, %v1816
    %v2041 = vpack.c.b16 %v1821, %v1817
    %v2042 = vpack.c.b16 %v1822, %v1818
    %v2043 = vpack.c.b16 %v1823, %v1819
    %v2044 = vpack.c.b16 %v1828, %v1824
    %v2045 = vpack.c.b16 %v1829, %v1825
    %v2046 = vpack.c.b16 %v1830, %v1826
    %v2047 = vpack.c.b16 %v1831, %v1827
    %v2048 = vpack.c.b16 %v1836, %v1832
    %v2049 = vpack.c.b16 %v1837, %v1833
    %v2050 = vpack.c.b16 %v1838, %v1834
    %v2051 = vpack.c.b16 %v1839, %v1835
    %v2052 = vpack.c.b16 %v1844, %v1840
    %v2053 = vpack.c.b16 %v1845, %v1841
    %v2054 = vpack.c.b16 %v1846, %v1842
    %v2055 = vpack.c.b16 %v1847, %v1843
    %v2056 = vpack.c.b16 %v1852, %v1848
    %v2057 = vpack.c.b16 %v1853, %v1849
    %v2058 = vpack.c.b16 %v1854, %v1850
    %v2059 = vpack.c.b16 %v1855, %v1851
    %v2060 = vpack.c.b16 %v1860, %v1856
    %v2061 = vpack.c.b16 %v1861, %v1857
    %v2062 = vpack.c.b16 %v1862, %v1858
    %v2063 = vpack.c.b16 %v1863, %v1859
    %v2064 = vpack.c.b16 %v1868, %v1864
    %v2065 = vpack.c.b16 %v1869, %v1865
    %v2066 = vpack.c.b16 %v1870, %v1866
    %v2067 = vpack.c.b16 %v1871, %v1867
    %v2068 = vpack.c.b16 %v1876, %v1872
    %v2069 = vpack.c.b16 %v1877, %v1873
    %v2070 = vpack.c.b16 %v1878, %v1874
    %v2071 = vpack.c.b16 %v1879, %v1875
    %v2072 = vpack.c.b16 %v1884, %v1880
    %v2073 = vpack.c.b16 %v1885, %v1881
    %v2074 = vpack.c.b16 %v1886, %v1882
    %v2075 = vpack.c.b16 %v1887, %v1883
    %v2076 = vpack.c.b16 %v1892, %v1888
    %v2077 = vpack.c.b16 %v1893, %v1889
    %v2078 = vpack.c.b16 %v1894, %v1890
    %v2079 = vpack.c.b16 %v1895, %v1891
    %v2080 = vpack.c.b16 %v1900, %v1896
    %v2081 = vpack.c.b16 %v1901, %v1897
    %v2082 = vpack.c.b16 %v1902, %v1898
    %v2083 = vpack.c.b16 %v1903, %v1899
    %v2084 = vpack.c.b16 %v1908, %v1904
    %v2085 = vpack.c.b16 %v1909, %v1905
    %v2086 = vpack.c.b16 %v1910, %v1906
    %v2087 = vpack.c.b16 %v1911, %v1907
    %v2088 = vpack.c.b16 %v1916, %v1912
    %v2089 = vpack.c.b16 %v1917, %v1913
    %v2090 = vpack.c.b16 %v1918, %v1914
    %v2091 = vpack.c.b16 %v1919, %v1915
    %v2092 = vpack.c.b16 %v1924, %v1920
    %v2093 = vpack.c.b16 %v1925, %v1921
    %v2094 = vpack.c.b16 %v1926, %v1922
    %v2095 = vpack.c.b16 %v1927, %v1923
    %v2096 = vpack.c.b16 %v1932, %v1928
    %v2097 = vpack.c.b16 %v1933, %v1929
    %v2098 = vpack.c.b16 %v1934, %v1930
    %v2099 = vpack.c.b16 %v1935, %v1931
    %v2100 = vpack.c.b16 %v1940, %v1936
    %v2101 = vpack.c.b16 %v1941, %v1937
    %v2102 = vpack.c.b16 %v1942, %v1938
    %v2103 = vpack.c.b16 %v1943, %v1939
    %v2104 = vpack.c.b16 %v1948, %v1944
    %v2105 = vpack.c.b16 %v1949, %v1945
    %v2106 = vpack.c.b16 %v1950, %v1946
    %v2107 = vpack.c.b16 %v1951, %v1947
    %v2108 = vpack.c.b16 %v1956, %v1952
    %v2109 = vpack.c.b16 %v1957, %v1953
    %v2110 = vpack.c.b16 %v1958, %v1954
    %v2111 = vpack.c.b16 %v1959, %v1955
    %v2112 = vpack.c.b16 %v1964, %v1960
    %v2113 = vpack.c.b16 %v1965, %v1961
    %v2114 = vpack.c.b16 %v1966, %v1962
    %v2115 = vpack.c.b16 %v1967, %v1963
    %v2116 = vpack.c.b16 %v1972, %v1968
    %v2117 = vpack.c.b16 %v1973, %v1969
    %v2118 = vpack.c.b16 %v1974, %v1970
    %v2119 = vpack.c.b16 %v1975, %v1971
    %v2120 = vpack.c.b16 %v1980, %v1976
    %v2121 = vpack.c.b16 %v1981, %v1977
    %v2122 = vpack.c.b16 %v1982, %v1978
    %v2123 = vpack.c.b16 %v1983, %v1979
    %v2124 = vpack.c.b16 %v1988, %v1984
    %v2125 = vpack.c.b16 %v1989, %v1985
    %v2126 = vpack.c.b16 %v1990, %v1986
    %v2127 = vpack.c.b16 %v1991, %v1987
    %v2128 = vpack.c.b16 %v1996, %v1992
    %v2129 = vpack.c.b16 %v1997, %v1993
    %v2130 = vpack.c.b16 %v1998, %v1994
    %v2131 = vpack.c.b16 %v1999, %v1995
    %v2132 = vpack.c.b16 %v2004, %v2000
    %v2133 = vpack.c.b16 %v2005, %v2001
    %v2134 = vpack.c.b16 %v2006, %v2002
    %v2135 = vpack.c.b16 %v2007, %v2003
    %2264 = vmatprep.subr.bf16.mxu0 %v2037
    %2265 = vmatpush1.bf16.msra.mxu0 %v2036
    %2266 = vmatprep.subr.bf16.mxu0 %v2033
    %2267 = vmatpush1.bf16.msra.mxu0 %v2032
    %2268 = vmatprep.subr.bf16.mxu0 %v2029
    %2269 = vmatpush1.bf16.msra.mxu0 %v2028
    %2270 = vmatprep.subr.bf16.mxu0 %v2025
    %2271 = vmatpush1.bf16.msra.mxu0 %v2024
    %2272 = vmatprep.subr.bf16.mxu0 %v2021
    %2273 = vmatpush1.bf16.msra.mxu0 %v2020
    %2274 = vmatprep.subr.bf16.mxu0 %v2017
    %2275 = vmatpush1.bf16.msra.mxu0 %v2016
    %2276 = vmatprep.subr.bf16.mxu0 %v2013
    %2277 = vmatpush1.bf16.msra.mxu0 %v2012
    %2278 = vmatprep.subr.bf16.mxu0 %v2009
    %2279 = vmatpush1.bf16.msra.mxu0 %v2008
    %2280 = vmatprep.subr.bf16.mxu0 %v2069
    %2281 = vmatpush2.bf16.msra.mxu0 %v2068
    %2282 = vmatprep.subr.bf16.mxu0 %v2065
    %2283 = vmatpush2.bf16.msra.mxu0 %v2064
    %2284 = vmatprep.subr.bf16.mxu0 %v2061
    %2285 = vmatpush2.bf16.msra.mxu0 %v2060
    %2286 = vmatprep.subr.bf16.mxu0 %v2057
    %2287 = vmatpush2.bf16.msra.mxu0 %v2056
    %2288 = vmatprep.subr.bf16.mxu0 %v2053
    %2289 = vmatpush2.bf16.msra.mxu0 %v2052
    %2290 = vmatprep.subr.bf16.mxu0 %v2049
    %2291 = vmatpush2.bf16.msra.mxu0 %v2048
    %2292 = vmatprep.subr.bf16.mxu0 %v2045
    %2293 = vmatpush2.bf16.msra.mxu0 %v2044
    %2294 = vmatprep.subr.bf16.mxu0 %v2041
    %2295 = vmatpush2.bf16.msra.mxu0 %v2040
    %2296 = vmatprep.mubr.bf16.mxu0 %v495
    %2297 = vmatmul.mubr.bf16.gmra.mxu0 %v494
    %v2298 = vpop.f32.mrf.mxu0
    %v2299 = vadd.f32 0.0, %v2298
    %v2300 = vpop.f32.mrf.mxu0
    %v2301 = vadd.f32 0.0, %v2300
    %v2302 = vpop.f32.mrf.mxu0
    %v2303 = vpop.f32.mrf.mxu0
    %2304 = vdwg.mxu0
    %2305 = vmatprep.subr.bf16.mxu0 %v2101
    %2306 = vmatpush1.bf16.msra.mxu0 %v2100
    %2307 = vmatprep.subr.bf16.mxu0 %v2097
    %2308 = vmatpush1.bf16.msra.mxu0 %v2096
    %2309 = vmatprep.subr.bf16.mxu0 %v2093
    %2310 = vmatpush1.bf16.msra.mxu0 %v2092
    %2311 = vmatprep.subr.bf16.mxu0 %v2089
    %2312 = vmatpush1.bf16.msra.mxu0 %v2088
    %2313 = vmatprep.subr.bf16.mxu0 %v2085
    %2314 = vmatpush1.bf16.msra.mxu0 %v2084
    %2315 = vmatprep.subr.bf16.mxu0 %v2081
    %2316 = vmatpush1.bf16.msra.mxu0 %v2080
    %2317 = vmatprep.subr.bf16.mxu0 %v2077
    %2318 = vmatpush1.bf16.msra.mxu0 %v2076
    %2319 = vmatprep.subr.bf16.mxu0 %v2073
    %2320 = vmatpush1.bf16.msra.mxu0 %v2072
    %2321 = vmatprep.subr.bf16.mxu0 %v2133
    %2322 = vmatpush2.bf16.msra.mxu0 %v2132
    %2323 = vmatprep.subr.bf16.mxu0 %v2129
    %2324 = vmatpush2.bf16.msra.mxu0 %v2128
    %2325 = vmatprep.subr.bf16.mxu0 %v2125
    %2326 = vmatpush2.bf16.msra.mxu0 %v2124
    %2327 = vmatprep.subr.bf16.mxu0 %v2121
    %2328 = vmatpush2.bf16.msra.mxu0 %v2120
    %2329 = vmatprep.subr.bf16.mxu0 %v2117
    %2330 = vmatpush2.bf16.msra.mxu0 %v2116
    %2331 = vmatprep.subr.bf16.mxu0 %v2113
    %2332 = vmatpush2.bf16.msra.mxu0 %v2112
    %2333 = vmatprep.subr.bf16.mxu0 %v2109
    %2334 = vmatpush2.bf16.msra.mxu0 %v2108
    %2335 = vmatprep.subr.bf16.mxu0 %v2105
    %2336 = vmatpush2.bf16.msra.mxu0 %v2104
    %2337 = vmatprep.mubr.bf16.mxu0 %v497
    %2338 = vmatmul.mubr.bf16.gmra.mxu0 %v496
    %v2339 = vpop.f32.mrf.mxu0
    %v2340 = vadd.f32 %v2299, %v2339
    %v2341 = vpop.f32.mrf.mxu0
    %v2342 = vadd.f32 %v2301, %v2341
    %v2343 = vpop.f32.mrf.mxu0
    %v2344 = vpop.f32.mrf.mxu0
    %2345 = vdwg.mxu0
    %2346 = vmatprep.subr.bf16.mxu0 %v2039
    %2347 = vmatpush1.bf16.msra.mxu0 %v2038
    %2348 = vmatprep.subr.bf16.mxu0 %v2035
    %2349 = vmatpush1.bf16.msra.mxu0 %v2034
    %2350 = vmatprep.subr.bf16.mxu0 %v2031
    %2351 = vmatpush1.bf16.msra.mxu0 %v2030
    %2352 = vmatprep.subr.bf16.mxu0 %v2027
    %2353 = vmatpush1.bf16.msra.mxu0 %v2026
    %2354 = vmatprep.subr.bf16.mxu0 %v2023
    %2355 = vmatpush1.bf16.msra.mxu0 %v2022
    %2356 = vmatprep.subr.bf16.mxu0 %v2019
    %2357 = vmatpush1.bf16.msra.mxu0 %v2018
    %2358 = vmatprep.subr.bf16.mxu0 %v2015
    %2359 = vmatpush1.bf16.msra.mxu0 %v2014
    %2360 = vmatprep.subr.bf16.mxu0 %v2011
    %2361 = vmatpush1.bf16.msra.mxu0 %v2010
    %2362 = vmatprep.subr.bf16.mxu0 %v2071
    %2363 = vmatpush2.bf16.msra.mxu0 %v2070
    %2364 = vmatprep.subr.bf16.mxu0 %v2067
    %2365 = vmatpush2.bf16.msra.mxu0 %v2066
    %2366 = vmatprep.subr.bf16.mxu0 %v2063
    %2367 = vmatpush2.bf16.msra.mxu0 %v2062
    %2368 = vmatprep.subr.bf16.mxu0 %v2059
    %2369 = vmatpush2.bf16.msra.mxu0 %v2058
    %2370 = vmatprep.subr.bf16.mxu0 %v2055
    %2371 = vmatpush2.bf16.msra.mxu0 %v2054
    %2372 = vmatprep.subr.bf16.mxu0 %v2051
    %2373 = vmatpush2.bf16.msra.mxu0 %v2050
    %2374 = vmatprep.subr.bf16.mxu0 %v2047
    %2375 = vmatpush2.bf16.msra.mxu0 %v2046
    %2376 = vmatprep.subr.bf16.mxu0 %v2043
    %2377 = vmatpush2.bf16.msra.mxu0 %v2042
    %2378 = vmatprep.mubr.bf16.mxu0 %v495
    %2379 = vmatmul.mubr.bf16.gmra.mxu0 %v494
    %v2380 = vpop.f32.mrf.mxu0
    %v2381 = vadd.f32 0.0, %v2380
    %v2382 = vpop.f32.mrf.mxu0
    %v2383 = vadd.f32 0.0, %v2382
    %v2384 = vpop.f32.mrf.mxu0
    %v2385 = vpop.f32.mrf.mxu0
    %2386 = vdwg.mxu0
    %2387 = vmatprep.subr.bf16.mxu0 %v2103
    %2388 = vmatpush1.bf16.msra.mxu0 %v2102
    %2389 = vmatprep.subr.bf16.mxu0 %v2099
    %2390 = vmatpush1.bf16.msra.mxu0 %v2098
    %2391 = vmatprep.subr.bf16.mxu0 %v2095
    %2392 = vmatpush1.bf16.msra.mxu0 %v2094
    %2393 = vmatprep.subr.bf16.mxu0 %v2091
    %2394 = vmatpush1.bf16.msra.mxu0 %v2090
    %2395 = vmatprep.subr.bf16.mxu0 %v2087
    %2396 = vmatpush1.bf16.msra.mxu0 %v2086
    %2397 = vmatprep.subr.bf16.mxu0 %v2083
    %2398 = vmatpush1.bf16.msra.mxu0 %v2082
    %2399 = vmatprep.subr.bf16.mxu0 %v2079
    %2400 = vmatpush1.bf16.msra.mxu0 %v2078
    %2401 = vmatprep.subr.bf16.mxu0 %v2075
    %2402 = vmatpush1.bf16.msra.mxu0 %v2074
    %2403 = vmatprep.subr.bf16.mxu0 %v2135
    %2404 = vmatpush2.bf16.msra.mxu0 %v2134
    %2405 = vmatprep.subr.bf16.mxu0 %v2131
    %2406 = vmatpush2.bf16.msra.mxu0 %v2130
    %2407 = vmatprep.subr.bf16.mxu0 %v2127
    %2408 = vmatpush2.bf16.msra.mxu0 %v2126
    %2409 = vmatprep.subr.bf16.mxu0 %v2123
    %2410 = vmatpush2.bf16.msra.mxu0 %v2122
    %2411 = vmatprep.subr.bf16.mxu0 %v2119
    %2412 = vmatpush2.bf16.msra.mxu0 %v2118
    %2413 = vmatprep.subr.bf16.mxu0 %v2115
    %2414 = vmatpush2.bf16.msra.mxu0 %v2114
    %2415 = vmatprep.subr.bf16.mxu0 %v2111
    %2416 = vmatpush2.bf16.msra.mxu0 %v2110
    %2417 = vmatprep.subr.bf16.mxu0 %v2107
    %2418 = vmatpush2.bf16.msra.mxu0 %v2106
    %2419 = vmatprep.mubr.bf16.mxu0 %v497
    %2420 = vmatmul.mubr.bf16.gmra.mxu0 %v496
    %v2421 = vpop.f32.mrf.mxu0
    %v2422 = vadd.f32 %v2381, %v2421
    %v2423 = vpop.f32.mrf.mxu0
    %v2424 = vadd.f32 %v2383, %v2423
    %v2425 = vpop.f32.mrf.mxu0
    %v2426 = vpop.f32.mrf.mxu0
    %2427 = vdwg.mxu0
    %v2428 = vpack.c.bf16 %v2340, %v2340
    %v2429 = vpack.c.bf16 %v2342, %v2342
    %v2430 = vpack.c.bf16 %v2422, %v2422
    %v2431 = vpack.c.bf16 %v2424, %v2424
    %v2432 = vld [vmem:[%s8] sm:$0xf]
    %v2435 = vunpack.c.l.s4 1966171168
    %v2436 = vunpack.c.0.s8 %v2435
    %v2437 = vlaneseq
    %v2438 = vshrl.u32 %v2437, 7
    %v2439 = vsub.s32 %v2436, %v2438
    %v2440 = vrot.slane %v2432, %v2439
    %v2441 = vcombine.high %v2440, %v2440
    %v2443 = vunpack.c.l.s4 1966171168
    %v2444 = vunpack.c.0.s8 %v2443
    %v2445 = vlaneseq
    %v2446 = vshrl.u32 %v2445, 7
    %v2447 = vsub.s32 %v2444, %v2446
    %v2448 = vrot.slane %v2440, %v2447
    %v2450 = vunpack.c.l.s4 1966171168
    %v2451 = vunpack.c.0.s8 %v2450
    %v2452 = vlaneseq
    %v2453 = vshrl.u32 %v2452, 7
    %v2454 = vsub.s32 %v2451, %v2453
    %v2455 = vrot.slane %v2441, %v2454
    %v2456 = vcombine.high %v2448, %v2448
    %v2457 = vcombine.high %v2455, %v2455
    %v2459 = vpack.i.b16 %v2448, %v2448
    %v2461 = vlaneseq
    %v2462 = vshrl.u32 %v2461, 7
    %v2463 = vsub.s32 0, %v2462
    %v2464 = vrot.slane %v2459, %v2463
    %v2466 = vpack.i.b16 %v2455, %v2455
    %v2468 = vlaneseq
    %v2469 = vshrl.u32 %v2468, 7
    %v2470 = vsub.s32 0, %v2469
    %v2471 = vrot.slane %v2466, %v2470
    %v2473 = vpack.i.b16 %v2456, %v2456
    %v2475 = vlaneseq
    %v2476 = vshrl.u32 %v2475, 7
    %v2477 = vsub.s32 0, %v2476
    %v2478 = vrot.slane %v2473, %v2477
    %v2480 = vpack.i.b16 %v2457, %v2457
    %v2482 = vlaneseq
    %v2483 = vshrl.u32 %v2482, 7
    %v2484 = vsub.s32 0, %v2483
    %v2485 = vrot.slane %v2480, %v2484
    %v2486 = vadd.bf16 %v2428, %v2464
    %v2487 = vadd.bf16 %v2429, %v2471
    %v2488 = vadd.bf16 %v2430, %v2478
    %v2489 = vadd.bf16 %v2431, %v2485
    %v2490 = vmax.bf16 %v2486, 0
    %v2491 = vmax.bf16 %v2487, 0
    %v2492 = vmax.bf16 %v2488, 0
    %v2493 = vmax.bf16 %v2489, 0
    %v2494 = vld [vmem:[#allocation5] sm:$0xff]
    %v2495 = vld [vmem:[#allocation5 + $0x8] sm:$0xff]
    %v2496 = vld [vmem:[#allocation5 + $0x10] sm:$0xff]
    %v2497 = vld [vmem:[#allocation5 + $0x18] sm:$0xff]
    %v2498 = vld [vmem:[#allocation5 + $0x20] sm:$0xff]
    %v2499 = vld [vmem:[#allocation5 + $0x28] sm:$0xff]
    %v2500 = vld [vmem:[#allocation5 + $0x30] sm:$0xff]
    %v2501 = vld [vmem:[#allocation5 + $0x38] sm:$0xff]
    %v2502 = vld [vmem:[#allocation5 + $0x40] sm:$0xff]
    %v2503 = vld [vmem:[#allocation5 + $0x48] sm:$0xff]
    %v2504 = vld [vmem:[#allocation5 + $0x50] sm:$0xff]
    %v2505 = vld [vmem:[#allocation5 + $0x58] sm:$0xff]
    %v2506 = vld [vmem:[#allocation5 + $0x60] sm:$0xff]
    %v2507 = vld [vmem:[#allocation5 + $0x68] sm:$0xff]
    %v2508 = vld [vmem:[#allocation5 + $0x70] sm:$0xff]
    %v2509 = vld [vmem:[#allocation5 + $0x78] sm:$0xff]
    %v2510 = vld [vmem:[#allocation5 + $0x80] sm:$0xff]
    %v2511 = vld [vmem:[#allocation5 + $0x88] sm:$0xff]
    %v2512 = vld [vmem:[#allocation5 + $0x90] sm:$0xff]
    %v2513 = vld [vmem:[#allocation5 + $0x98] sm:$0xff]
    %v2514 = vld [vmem:[#allocation5 + $0xa0] sm:$0xff]
    %v2515 = vld [vmem:[#allocation5 + $0xa8] sm:$0xff]
    %v2516 = vld [vmem:[#allocation5 + $0xb0] sm:$0xff]
    %v2517 = vld [vmem:[#allocation5 + $0xb8] sm:$0xff]
    %v2518 = vld [vmem:[#allocation5 + $0xc0] sm:$0xff]
    %v2519 = vld [vmem:[#allocation5 + $0xc8] sm:$0xff]
    %v2520 = vld [vmem:[#allocation5 + $0xd0] sm:$0xff]
    %v2521 = vld [vmem:[#allocation5 + $0xd8] sm:$0xff]
    %v2522 = vld [vmem:[#allocation5 + $0xe0] sm:$0xff]
    %v2523 = vld [vmem:[#allocation5 + $0xe8] sm:$0xff]
    %v2524 = vld [vmem:[#allocation5 + $0xf0] sm:$0xff]
    %v2525 = vld [vmem:[#allocation5 + $0xf8] sm:$0xff]
    %v2526 = vld [vmem:[#allocation5 + $0x100] sm:$0xff]
    %v2527 = vld [vmem:[#allocation5 + $0x108] sm:$0xff]
    %v2528 = vld [vmem:[#allocation5 + $0x110] sm:$0xff]
    %v2529 = vld [vmem:[#allocation5 + $0x118] sm:$0xff]
    %v2530 = vld [vmem:[#allocation5 + $0x120] sm:$0xff]
    %v2531 = vld [vmem:[#allocation5 + $0x128] sm:$0xff]
    %v2532 = vld [vmem:[#allocation5 + $0x130] sm:$0xff]
    %v2533 = vld [vmem:[#allocation5 + $0x138] sm:$0xff]
    %v2534 = vld [vmem:[#allocation5 + $0x140] sm:$0xff]
    %v2535 = vld [vmem:[#allocation5 + $0x148] sm:$0xff]
    %v2536 = vld [vmem:[#allocation5 + $0x150] sm:$0xff]
    %v2537 = vld [vmem:[#allocation5 + $0x158] sm:$0xff]
    %v2538 = vld [vmem:[#allocation5 + $0x160] sm:$0xff]
    %v2539 = vld [vmem:[#allocation5 + $0x168] sm:$0xff]
    %v2540 = vld [vmem:[#allocation5 + $0x170] sm:$0xff]
    %v2541 = vld [vmem:[#allocation5 + $0x178] sm:$0xff]
    %v2542 = vld [vmem:[#allocation5 + $0x180] sm:$0xff]
    %v2543 = vld [vmem:[#allocation5 + $0x188] sm:$0xff]
    %v2544 = vld [vmem:[#allocation5 + $0x190] sm:$0xff]
    %v2545 = vld [vmem:[#allocation5 + $0x198] sm:$0xff]
    %v2546 = vld [vmem:[#allocation5 + $0x1a0] sm:$0xff]
    %v2547 = vld [vmem:[#allocation5 + $0x1a8] sm:$0xff]
    %v2548 = vld [vmem:[#allocation5 + $0x1b0] sm:$0xff]
    %v2549 = vld [vmem:[#allocation5 + $0x1b8] sm:$0xff]
    %v2550 = vld [vmem:[#allocation5 + $0x1c0] sm:$0xff]
    %v2551 = vld [vmem:[#allocation5 + $0x1c8] sm:$0xff]
    %v2552 = vld [vmem:[#allocation5 + $0x1d0] sm:$0xff]
    %v2553 = vld [vmem:[#allocation5 + $0x1d8] sm:$0xff]
    %v2554 = vld [vmem:[#allocation5 + $0x1e0] sm:$0xff]
    %v2555 = vld [vmem:[#allocation5 + $0x1e8] sm:$0xff]
    %v2556 = vld [vmem:[#allocation5 + $0x1f0] sm:$0xff]
    %v2557 = vld [vmem:[#allocation5 + $0x1f8] sm:$0xff]
    %v2622 = vunpack.c.l.b16 %v2494
    %v2623 = vunpack.c.h.b16 %v2494
    %v2624 = vunpack.c.l.b16 %v2495
    %v2625 = vunpack.c.h.b16 %v2495
    %v2626 = vunpack.c.l.b16 %v2496
    %v2627 = vunpack.c.h.b16 %v2496
    %v2628 = vunpack.c.l.b16 %v2497
    %v2629 = vunpack.c.h.b16 %v2497
    %v2630 = vunpack.c.l.b16 %v2498
    %v2631 = vunpack.c.h.b16 %v2498
    %v2632 = vunpack.c.l.b16 %v2499
    %v2633 = vunpack.c.h.b16 %v2499
    %v2634 = vunpack.c.l.b16 %v2500
    %v2635 = vunpack.c.h.b16 %v2500
    %v2636 = vunpack.c.l.b16 %v2501
    %v2637 = vunpack.c.h.b16 %v2501
    %v2638 = vunpack.c.l.b16 %v2502
    %v2639 = vunpack.c.h.b16 %v2502
    %v2640 = vunpack.c.l.b16 %v2503
    %v2641 = vunpack.c.h.b16 %v2503
    %v2642 = vunpack.c.l.b16 %v2504
    %v2643 = vunpack.c.h.b16 %v2504
    %v2644 = vunpack.c.l.b16 %v2505
    %v2645 = vunpack.c.h.b16 %v2505
    %v2646 = vunpack.c.l.b16 %v2506
    %v2647 = vunpack.c.h.b16 %v2506
    %v2648 = vunpack.c.l.b16 %v2507
    %v2649 = vunpack.c.h.b16 %v2507
    %v2650 = vunpack.c.l.b16 %v2508
    %v2651 = vunpack.c.h.b16 %v2508
    %v2652 = vunpack.c.l.b16 %v2509
    %v2653 = vunpack.c.h.b16 %v2509
    %v2654 = vunpack.c.l.b16 %v2510
    %v2655 = vunpack.c.h.b16 %v2510
    %v2656 = vunpack.c.l.b16 %v2511
    %v2657 = vunpack.c.h.b16 %v2511
    %v2658 = vunpack.c.l.b16 %v2512
    %v2659 = vunpack.c.h.b16 %v2512
    %v2660 = vunpack.c.l.b16 %v2513
    %v2661 = vunpack.c.h.b16 %v2513
    %v2662 = vunpack.c.l.b16 %v2514
    %v2663 = vunpack.c.h.b16 %v2514
    %v2664 = vunpack.c.l.b16 %v2515
    %v2665 = vunpack.c.h.b16 %v2515
    %v2666 = vunpack.c.l.b16 %v2516
    %v2667 = vunpack.c.h.b16 %v2516
    %v2668 = vunpack.c.l.b16 %v2517
    %v2669 = vunpack.c.h.b16 %v2517
    %v2670 = vunpack.c.l.b16 %v2518
    %v2671 = vunpack.c.h.b16 %v2518
    %v2672 = vunpack.c.l.b16 %v2519
    %v2673 = vunpack.c.h.b16 %v2519
    %v2674 = vunpack.c.l.b16 %v2520
    %v2675 = vunpack.c.h.b16 %v2520
    %v2676 = vunpack.c.l.b16 %v2521
    %v2677 = vunpack.c.h.b16 %v2521
    %v2678 = vunpack.c.l.b16 %v2522
    %v2679 = vunpack.c.h.b16 %v2522
    %v2680 = vunpack.c.l.b16 %v2523
    %v2681 = vunpack.c.h.b16 %v2523
    %v2682 = vunpack.c.l.b16 %v2524
    %v2683 = vunpack.c.h.b16 %v2524
    %v2684 = vunpack.c.l.b16 %v2525
    %v2685 = vunpack.c.h.b16 %v2525
    %v2686 = vunpack.c.l.b16 %v2526
    %v2687 = vunpack.c.h.b16 %v2526
    %v2688 = vunpack.c.l.b16 %v2527
    %v2689 = vunpack.c.h.b16 %v2527
    %v2690 = vunpack.c.l.b16 %v2528
    %v2691 = vunpack.c.h.b16 %v2528
    %v2692 = vunpack.c.l.b16 %v2529
    %v2693 = vunpack.c.h.b16 %v2529
    %v2694 = vunpack.c.l.b16 %v2530
    %v2695 = vunpack.c.h.b16 %v2530
    %v2696 = vunpack.c.l.b16 %v2531
    %v2697 = vunpack.c.h.b16 %v2531
    %v2698 = vunpack.c.l.b16 %v2532
    %v2699 = vunpack.c.h.b16 %v2532
    %v2700 = vunpack.c.l.b16 %v2533
    %v2701 = vunpack.c.h.b16 %v2533
    %v2702 = vunpack.c.l.b16 %v2534
    %v2703 = vunpack.c.h.b16 %v2534
    %v2704 = vunpack.c.l.b16 %v2535
    %v2705 = vunpack.c.h.b16 %v2535
    %v2706 = vunpack.c.l.b16 %v2536
    %v2707 = vunpack.c.h.b16 %v2536
    %v2708 = vunpack.c.l.b16 %v2537
    %v2709 = vunpack.c.h.b16 %v2537
    %v2710 = vunpack.c.l.b16 %v2538
    %v2711 = vunpack.c.h.b16 %v2538
    %v2712 = vunpack.c.l.b16 %v2539
    %v2713 = vunpack.c.h.b16 %v2539
    %v2714 = vunpack.c.l.b16 %v2540
    %v2715 = vunpack.c.h.b16 %v2540
    %v2716 = vunpack.c.l.b16 %v2541
    %v2717 = vunpack.c.h.b16 %v2541
    %v2718 = vunpack.c.l.b16 %v2542
    %v2719 = vunpack.c.h.b16 %v2542
    %v2720 = vunpack.c.l.b16 %v2543
    %v2721 = vunpack.c.h.b16 %v2543
    %v2722 = vunpack.c.l.b16 %v2544
    %v2723 = vunpack.c.h.b16 %v2544
    %v2724 = vunpack.c.l.b16 %v2545
    %v2725 = vunpack.c.h.b16 %v2545
    %v2726 = vunpack.c.l.b16 %v2546
    %v2727 = vunpack.c.h.b16 %v2546
    %v2728 = vunpack.c.l.b16 %v2547
    %v2729 = vunpack.c.h.b16 %v2547
    %v2730 = vunpack.c.l.b16 %v2548
    %v2731 = vunpack.c.h.b16 %v2548
    %v2732 = vunpack.c.l.b16 %v2549
    %v2733 = vunpack.c.h.b16 %v2549
    %v2734 = vunpack.c.l.b16 %v2550
    %v2735 = vunpack.c.h.b16 %v2550
    %v2736 = vunpack.c.l.b16 %v2551
    %v2737 = vunpack.c.h.b16 %v2551
    %v2738 = vunpack.c.l.b16 %v2552
    %v2739 = vunpack.c.h.b16 %v2552
    %v2740 = vunpack.c.l.b16 %v2553
    %v2741 = vunpack.c.h.b16 %v2553
    %v2742 = vunpack.c.l.b16 %v2554
    %v2743 = vunpack.c.h.b16 %v2554
    %v2744 = vunpack.c.l.b16 %v2555
    %v2745 = vunpack.c.h.b16 %v2555
    %v2746 = vunpack.c.l.b16 %v2556
    %v2747 = vunpack.c.h.b16 %v2556
    %v2748 = vunpack.c.l.b16 %v2557
    %v2749 = vunpack.c.h.b16 %v2557
    %v2750 = vpack.c.b16 %v2624, %v2622
    %v2751 = vpack.c.b16 %v2625, %v2623
    %v2752 = vpack.c.b16 %v2628, %v2626
    %v2753 = vpack.c.b16 %v2629, %v2627
    %v2754 = vpack.c.b16 %v2632, %v2630
    %v2755 = vpack.c.b16 %v2633, %v2631
    %v2756 = vpack.c.b16 %v2636, %v2634
    %v2757 = vpack.c.b16 %v2637, %v2635
    %v2758 = vpack.c.b16 %v2640, %v2638
    %v2759 = vpack.c.b16 %v2641, %v2639
    %v2760 = vpack.c.b16 %v2644, %v2642
    %v2761 = vpack.c.b16 %v2645, %v2643
    %v2762 = vpack.c.b16 %v2648, %v2646
    %v2763 = vpack.c.b16 %v2649, %v2647
    %v2764 = vpack.c.b16 %v2652, %v2650
    %v2765 = vpack.c.b16 %v2653, %v2651
    %v2766 = vpack.c.b16 %v2656, %v2654
    %v2767 = vpack.c.b16 %v2657, %v2655
    %v2768 = vpack.c.b16 %v2660, %v2658
    %v2769 = vpack.c.b16 %v2661, %v2659
    %v2770 = vpack.c.b16 %v2664, %v2662
    %v2771 = vpack.c.b16 %v2665, %v2663
    %v2772 = vpack.c.b16 %v2668, %v2666
    %v2773 = vpack.c.b16 %v2669, %v2667
    %v2774 = vpack.c.b16 %v2672, %v2670
    %v2775 = vpack.c.b16 %v2673, %v2671
    %v2776 = vpack.c.b16 %v2676, %v2674
    %v2777 = vpack.c.b16 %v2677, %v2675
    %v2778 = vpack.c.b16 %v2680, %v2678
    %v2779 = vpack.c.b16 %v2681, %v2679
    %v2780 = vpack.c.b16 %v2684, %v2682
    %v2781 = vpack.c.b16 %v2685, %v2683
    %v2782 = vpack.c.b16 %v2688, %v2686
    %v2783 = vpack.c.b16 %v2689, %v2687
    %v2784 = vpack.c.b16 %v2692, %v2690
    %v2785 = vpack.c.b16 %v2693, %v2691
    %v2786 = vpack.c.b16 %v2696, %v2694
    %v2787 = vpack.c.b16 %v2697, %v2695
    %v2788 = vpack.c.b16 %v2700, %v2698
    %v2789 = vpack.c.b16 %v2701, %v2699
    %v2790 = vpack.c.b16 %v2704, %v2702
    %v2791 = vpack.c.b16 %v2705, %v2703
    %v2792 = vpack.c.b16 %v2708, %v2706
    %v2793 = vpack.c.b16 %v2709, %v2707
    %v2794 = vpack.c.b16 %v2712, %v2710
    %v2795 = vpack.c.b16 %v2713, %v2711
    %v2796 = vpack.c.b16 %v2716, %v2714
    %v2797 = vpack.c.b16 %v2717, %v2715
    %v2798 = vpack.c.b16 %v2720, %v2718
    %v2799 = vpack.c.b16 %v2721, %v2719
    %v2800 = vpack.c.b16 %v2724, %v2722
    %v2801 = vpack.c.b16 %v2725, %v2723
    %v2802 = vpack.c.b16 %v2728, %v2726
    %v2803 = vpack.c.b16 %v2729, %v2727
    %v2804 = vpack.c.b16 %v2732, %v2730
    %v2805 = vpack.c.b16 %v2733, %v2731
    %v2806 = vpack.c.b16 %v2736, %v2734
    %v2807 = vpack.c.b16 %v2737, %v2735
    %v2808 = vpack.c.b16 %v2740, %v2738
    %v2809 = vpack.c.b16 %v2741, %v2739
    %v2810 = vpack.c.b16 %v2744, %v2742
    %v2811 = vpack.c.b16 %v2745, %v2743
    %v2812 = vpack.c.b16 %v2748, %v2746
    %v2813 = vpack.c.b16 %v2749, %v2747
    %2878 = vmatprep.subr.bf16.mxu0 %v2765
    %2879 = vmatpush1.bf16.msra.mxu0 %v2764
    %2880 = vmatprep.subr.bf16.mxu0 %v2763
    %2881 = vmatpush1.bf16.msra.mxu0 %v2762
    %2882 = vmatprep.subr.bf16.mxu0 %v2761
    %2883 = vmatpush1.bf16.msra.mxu0 %v2760
    %2884 = vmatprep.subr.bf16.mxu0 %v2759
    %2885 = vmatpush1.bf16.msra.mxu0 %v2758
    %2886 = vmatprep.subr.bf16.mxu0 %v2757
    %2887 = vmatpush1.bf16.msra.mxu0 %v2756
    %2888 = vmatprep.subr.bf16.mxu0 %v2755
    %2889 = vmatpush1.bf16.msra.mxu0 %v2754
    %2890 = vmatprep.subr.bf16.mxu0 %v2753
    %2891 = vmatpush1.bf16.msra.mxu0 %v2752
    %2892 = vmatprep.subr.bf16.mxu0 %v2751
    %2893 = vmatpush1.bf16.msra.mxu0 %v2750
    %2894 = vmatprep.subr.bf16.mxu0 %v2781
    %2895 = vmatpush2.bf16.msra.mxu0 %v2780
    %2896 = vmatprep.subr.bf16.mxu0 %v2779
    %2897 = vmatpush2.bf16.msra.mxu0 %v2778
    %2898 = vmatprep.subr.bf16.mxu0 %v2777
    %2899 = vmatpush2.bf16.msra.mxu0 %v2776
    %2900 = vmatprep.subr.bf16.mxu0 %v2775
    %2901 = vmatpush2.bf16.msra.mxu0 %v2774
    %2902 = vmatprep.subr.bf16.mxu0 %v2773
    %2903 = vmatpush2.bf16.msra.mxu0 %v2772
    %2904 = vmatprep.subr.bf16.mxu0 %v2771
    %2905 = vmatpush2.bf16.msra.mxu0 %v2770
    %2906 = vmatprep.subr.bf16.mxu0 %v2769
    %2907 = vmatpush2.bf16.msra.mxu0 %v2768
    %2908 = vmatprep.subr.bf16.mxu0 %v2767
    %2909 = vmatpush2.bf16.msra.mxu0 %v2766
    %2910 = vmatprep.mubr.bf16.mxu0 %v1493
    %2911 = vmatmul.mubr.bf16.gmra.mxu0 %v1492
    %v2912 = vpop.f32.mrf.mxu0
    %v2913 = vadd.f32 0.0, %v2912
    %v2914 = vpop.f32.mrf.mxu0
    %v2915 = vadd.f32 0.0, %v2914
    %v2916 = vpop.f32.mrf.mxu0
    %v2917 = vpop.f32.mrf.mxu0
    %2918 = vdwg.mxu0
    %2919 = vmatprep.subr.bf16.mxu0 %v2797
    %2920 = vmatpush1.bf16.msra.mxu0 %v2796
    %2921 = vmatprep.subr.bf16.mxu0 %v2795
    %2922 = vmatpush1.bf16.msra.mxu0 %v2794
    %2923 = vmatprep.subr.bf16.mxu0 %v2793
    %2924 = vmatpush1.bf16.msra.mxu0 %v2792
    %2925 = vmatprep.subr.bf16.mxu0 %v2791
    %2926 = vmatpush1.bf16.msra.mxu0 %v2790
    %2927 = vmatprep.subr.bf16.mxu0 %v2789
    %2928 = vmatpush1.bf16.msra.mxu0 %v2788
    %2929 = vmatprep.subr.bf16.mxu0 %v2787
    %2930 = vmatpush1.bf16.msra.mxu0 %v2786
    %2931 = vmatprep.subr.bf16.mxu0 %v2785
    %2932 = vmatpush1.bf16.msra.mxu0 %v2784
    %2933 = vmatprep.subr.bf16.mxu0 %v2783
    %2934 = vmatpush1.bf16.msra.mxu0 %v2782
    %2935 = vmatprep.subr.bf16.mxu0 %v2813
    %2936 = vmatpush2.bf16.msra.mxu0 %v2812
    %2937 = vmatprep.subr.bf16.mxu0 %v2811
    %2938 = vmatpush2.bf16.msra.mxu0 %v2810
    %2939 = vmatprep.subr.bf16.mxu0 %v2809
    %2940 = vmatpush2.bf16.msra.mxu0 %v2808
    %2941 = vmatprep.subr.bf16.mxu0 %v2807
    %2942 = vmatpush2.bf16.msra.mxu0 %v2806
    %2943 = vmatprep.subr.bf16.mxu0 %v2805
    %2944 = vmatpush2.bf16.msra.mxu0 %v2804
    %2945 = vmatprep.subr.bf16.mxu0 %v2803
    %2946 = vmatpush2.bf16.msra.mxu0 %v2802
    %2947 = vmatprep.subr.bf16.mxu0 %v2801
    %2948 = vmatpush2.bf16.msra.mxu0 %v2800
    %2949 = vmatprep.subr.bf16.mxu0 %v2799
    %2950 = vmatpush2.bf16.msra.mxu0 %v2798
    %2951 = vmatprep.mubr.bf16.mxu0 %v1495
    %2952 = vmatmul.mubr.bf16.gmra.mxu0 %v1494
    %v2953 = vpop.f32.mrf.mxu0
    %v2954 = vadd.f32 %v2913, %v2953
    %v2955 = vpop.f32.mrf.mxu0
    %v2956 = vadd.f32 %v2915, %v2955
    %v2957 = vpop.f32.mrf.mxu0
    %v2958 = vpop.f32.mrf.mxu0
    %2959 = vdwg.mxu0
    %v2960 = vpack.c.bf16 %v2954, %v2954
    %v2961 = vpack.c.bf16 %v2956, %v2956
    %v2962 = vld [vmem:[%s6] sm:$0x3]
    %v2965 = vunpack.c.l.s4 1966171168
    %v2966 = vunpack.c.0.s8 %v2965
    %v2967 = vlaneseq
    %v2968 = vshrl.u32 %v2967, 7
    %v2969 = vsub.s32 %v2966, %v2968
    %v2970 = vrot.slane %v2962, %v2969
    %v2971 = vcombine.high %v2970, %v2970
    %v2973 = vunpack.c.l.s4 1966171168
    %v2974 = vunpack.c.0.s8 %v2973
    %v2975 = vlaneseq
    %v2976 = vshrl.u32 %v2975, 7
    %v2977 = vsub.s32 %v2974, %v2976
    %v2978 = vrot.slane %v2970, %v2977
    %v2980 = vunpack.c.l.s4 1966171168
    %v2981 = vunpack.c.0.s8 %v2980
    %v2982 = vlaneseq
    %v2983 = vshrl.u32 %v2982, 7
    %v2984 = vsub.s32 %v2981, %v2983
    %v2985 = vrot.slane %v2971, %v2984
    %v2987 = vpack.i.b16 %v2978, %v2978
    %v2989 = vlaneseq
    %v2990 = vshrl.u32 %v2989, 7
    %v2991 = vsub.s32 0, %v2990
    %v2992 = vrot.slane %v2987, %v2991
    %v2994 = vpack.i.b16 %v2985, %v2985
    %v2996 = vlaneseq
    %v2997 = vshrl.u32 %v2996, 7
    %v2998 = vsub.s32 0, %v2997
    %v2999 = vrot.slane %v2994, %v2998
    %v3000 = vadd.bf16 %v2960, %v2992
    %v3001 = vadd.bf16 %v2961, %v2999
    %v3002 = vmax.bf16 %v3000, 0
    %v3003 = vmax.bf16 %v3001, 0
    %v3004 = vld [vmem:[#allocation8] sm:$0xff]
    %v3005 = vld [vmem:[#allocation8 + $0x8] sm:$0xff]
    %v3006 = vld [vmem:[#allocation8 + $0x10] sm:$0xff]
    %v3007 = vld [vmem:[#allocation8 + $0x18] sm:$0xff]
    %v3008 = vld [vmem:[#allocation8 + $0x20] sm:$0xff]
    %v3009 = vld [vmem:[#allocation8 + $0x28] sm:$0xff]
    %v3010 = vld [vmem:[#allocation8 + $0x30] sm:$0xff]
    %v3011 = vld [vmem:[#allocation8 + $0x38] sm:$0xff]
    %v3012 = vld [vmem:[#allocation8 + $0x40] sm:$0xff]
    %v3013 = vld [vmem:[#allocation8 + $0x48] sm:$0xff]
    %v3014 = vld [vmem:[#allocation8 + $0x50] sm:$0xff]
    %v3015 = vld [vmem:[#allocation8 + $0x58] sm:$0xff]
    %v3016 = vld [vmem:[#allocation8 + $0x60] sm:$0xff]
    %v3017 = vld [vmem:[#allocation8 + $0x68] sm:$0xff]
    %v3018 = vld [vmem:[#allocation8 + $0x70] sm:$0xff]
    %v3019 = vld [vmem:[#allocation8 + $0x78] sm:$0xff]
    %v3020 = vld [vmem:[#allocation8 + $0x80] sm:$0xff]
    %v3021 = vld [vmem:[#allocation8 + $0x88] sm:$0xff]
    %v3022 = vld [vmem:[#allocation8 + $0x90] sm:$0xff]
    %v3023 = vld [vmem:[#allocation8 + $0x98] sm:$0xff]
    %v3024 = vld [vmem:[#allocation8 + $0xa0] sm:$0xff]
    %v3025 = vld [vmem:[#allocation8 + $0xa8] sm:$0xff]
    %v3026 = vld [vmem:[#allocation8 + $0xb0] sm:$0xff]
    %v3027 = vld [vmem:[#allocation8 + $0xb8] sm:$0xff]
    %v3028 = vld [vmem:[#allocation8 + $0xc0] sm:$0xff]
    %v3029 = vld [vmem:[#allocation8 + $0xc8] sm:$0xff]
    %v3030 = vld [vmem:[#allocation8 + $0xd0] sm:$0xff]
    %v3031 = vld [vmem:[#allocation8 + $0xd8] sm:$0xff]
    %v3032 = vld [vmem:[#allocation8 + $0xe0] sm:$0xff]
    %v3033 = vld [vmem:[#allocation8 + $0xe8] sm:$0xff]
    %v3034 = vld [vmem:[#allocation8 + $0xf0] sm:$0xff]
    %v3035 = vld [vmem:[#allocation8 + $0xf8] sm:$0xff]
    %v3036 = vld [vmem:[#allocation8 + $0x100] sm:$0xff]
    %v3037 = vld [vmem:[#allocation8 + $0x108] sm:$0xff]
    %v3038 = vld [vmem:[#allocation8 + $0x110] sm:$0xff]
    %v3039 = vld [vmem:[#allocation8 + $0x118] sm:$0xff]
    %v3040 = vld [vmem:[#allocation8 + $0x120] sm:$0xff]
    %v3041 = vld [vmem:[#allocation8 + $0x128] sm:$0xff]
    %v3042 = vld [vmem:[#allocation8 + $0x130] sm:$0xff]
    %v3043 = vld [vmem:[#allocation8 + $0x138] sm:$0xff]
    %v3044 = vld [vmem:[#allocation8 + $0x140] sm:$0xff]
    %v3045 = vld [vmem:[#allocation8 + $0x148] sm:$0xff]
    %v3046 = vld [vmem:[#allocation8 + $0x150] sm:$0xff]
    %v3047 = vld [vmem:[#allocation8 + $0x158] sm:$0xff]
    %v3048 = vld [vmem:[#allocation8 + $0x160] sm:$0xff]
    %v3049 = vld [vmem:[#allocation8 + $0x168] sm:$0xff]
    %v3050 = vld [vmem:[#allocation8 + $0x170] sm:$0xff]
    %v3051 = vld [vmem:[#allocation8 + $0x178] sm:$0xff]
    %v3052 = vld [vmem:[#allocation8 + $0x180] sm:$0xff]
    %v3053 = vld [vmem:[#allocation8 + $0x188] sm:$0xff]
    %v3054 = vld [vmem:[#allocation8 + $0x190] sm:$0xff]
    %v3055 = vld [vmem:[#allocation8 + $0x198] sm:$0xff]
    %v3056 = vld [vmem:[#allocation8 + $0x1a0] sm:$0xff]
    %v3057 = vld [vmem:[#allocation8 + $0x1a8] sm:$0xff]
    %v3058 = vld [vmem:[#allocation8 + $0x1b0] sm:$0xff]
    %v3059 = vld [vmem:[#allocation8 + $0x1b8] sm:$0xff]
    %v3060 = vld [vmem:[#allocation8 + $0x1c0] sm:$0xff]
    %v3061 = vld [vmem:[#allocation8 + $0x1c8] sm:$0xff]
    %v3062 = vld [vmem:[#allocation8 + $0x1d0] sm:$0xff]
    %v3063 = vld [vmem:[#allocation8 + $0x1d8] sm:$0xff]
    %v3064 = vld [vmem:[#allocation8 + $0x1e0] sm:$0xff]
    %v3065 = vld [vmem:[#allocation8 + $0x1e8] sm:$0xff]
    %v3066 = vld [vmem:[#allocation8 + $0x1f0] sm:$0xff]
    %v3067 = vld [vmem:[#allocation8 + $0x1f8] sm:$0xff]
    %v3132 = vunpack.c.l.b16 %v3004
    %v3133 = vunpack.c.h.b16 %v3004
    %v3134 = vunpack.c.l.b16 %v3005
    %v3135 = vunpack.c.h.b16 %v3005
    %v3136 = vunpack.c.l.b16 %v3006
    %v3137 = vunpack.c.h.b16 %v3006
    %v3138 = vunpack.c.l.b16 %v3007
    %v3139 = vunpack.c.h.b16 %v3007
    %v3140 = vunpack.c.l.b16 %v3008
    %v3141 = vunpack.c.h.b16 %v3008
    %v3142 = vunpack.c.l.b16 %v3009
    %v3143 = vunpack.c.h.b16 %v3009
    %v3144 = vunpack.c.l.b16 %v3010
    %v3145 = vunpack.c.h.b16 %v3010
    %v3146 = vunpack.c.l.b16 %v3011
    %v3147 = vunpack.c.h.b16 %v3011
    %v3148 = vunpack.c.l.b16 %v3012
    %v3149 = vunpack.c.h.b16 %v3012
    %v3150 = vunpack.c.l.b16 %v3013
    %v3151 = vunpack.c.h.b16 %v3013
    %v3152 = vunpack.c.l.b16 %v3014
    %v3153 = vunpack.c.h.b16 %v3014
    %v3154 = vunpack.c.l.b16 %v3015
    %v3155 = vunpack.c.h.b16 %v3015
    %v3156 = vunpack.c.l.b16 %v3016
    %v3157 = vunpack.c.h.b16 %v3016
    %v3158 = vunpack.c.l.b16 %v3017
    %v3159 = vunpack.c.h.b16 %v3017
    %v3160 = vunpack.c.l.b16 %v3018
    %v3161 = vunpack.c.h.b16 %v3018
    %v3162 = vunpack.c.l.b16 %v3019
    %v3163 = vunpack.c.h.b16 %v3019
    %v3164 = vunpack.c.l.b16 %v3020
    %v3165 = vunpack.c.h.b16 %v3020
    %v3166 = vunpack.c.l.b16 %v3021
    %v3167 = vunpack.c.h.b16 %v3021
    %v3168 = vunpack.c.l.b16 %v3022
    %v3169 = vunpack.c.h.b16 %v3022
    %v3170 = vunpack.c.l.b16 %v3023
    %v3171 = vunpack.c.h.b16 %v3023
    %v3172 = vunpack.c.l.b16 %v3024
    %v3173 = vunpack.c.h.b16 %v3024
    %v3174 = vunpack.c.l.b16 %v3025
    %v3175 = vunpack.c.h.b16 %v3025
    %v3176 = vunpack.c.l.b16 %v3026
    %v3177 = vunpack.c.h.b16 %v3026
    %v3178 = vunpack.c.l.b16 %v3027
    %v3179 = vunpack.c.h.b16 %v3027
    %v3180 = vunpack.c.l.b16 %v3028
    %v3181 = vunpack.c.h.b16 %v3028
    %v3182 = vunpack.c.l.b16 %v3029
    %v3183 = vunpack.c.h.b16 %v3029
    %v3184 = vunpack.c.l.b16 %v3030
    %v3185 = vunpack.c.h.b16 %v3030
    %v3186 = vunpack.c.l.b16 %v3031
    %v3187 = vunpack.c.h.b16 %v3031
    %v3188 = vunpack.c.l.b16 %v3032
    %v3189 = vunpack.c.h.b16 %v3032
    %v3190 = vunpack.c.l.b16 %v3033
    %v3191 = vunpack.c.h.b16 %v3033
    %v3192 = vunpack.c.l.b16 %v3034
    %v3193 = vunpack.c.h.b16 %v3034
    %v3194 = vunpack.c.l.b16 %v3035
    %v3195 = vunpack.c.h.b16 %v3035
    %v3196 = vunpack.c.l.b16 %v3036
    %v3197 = vunpack.c.h.b16 %v3036
    %v3198 = vunpack.c.l.b16 %v3037
    %v3199 = vunpack.c.h.b16 %v3037
    %v3200 = vunpack.c.l.b16 %v3038
    %v3201 = vunpack.c.h.b16 %v3038
    %v3202 = vunpack.c.l.b16 %v3039
    %v3203 = vunpack.c.h.b16 %v3039
    %v3204 = vunpack.c.l.b16 %v3040
    %v3205 = vunpack.c.h.b16 %v3040
    %v3206 = vunpack.c.l.b16 %v3041
    %v3207 = vunpack.c.h.b16 %v3041
    %v3208 = vunpack.c.l.b16 %v3042
    %v3209 = vunpack.c.h.b16 %v3042
    %v3210 = vunpack.c.l.b16 %v3043
    %v3211 = vunpack.c.h.b16 %v3043
    %v3212 = vunpack.c.l.b16 %v3044
    %v3213 = vunpack.c.h.b16 %v3044
    %v3214 = vunpack.c.l.b16 %v3045
    %v3215 = vunpack.c.h.b16 %v3045
    %v3216 = vunpack.c.l.b16 %v3046
    %v3217 = vunpack.c.h.b16 %v3046
    %v3218 = vunpack.c.l.b16 %v3047
    %v3219 = vunpack.c.h.b16 %v3047
    %v3220 = vunpack.c.l.b16 %v3048
    %v3221 = vunpack.c.h.b16 %v3048
    %v3222 = vunpack.c.l.b16 %v3049
    %v3223 = vunpack.c.h.b16 %v3049
    %v3224 = vunpack.c.l.b16 %v3050
    %v3225 = vunpack.c.h.b16 %v3050
    %v3226 = vunpack.c.l.b16 %v3051
    %v3227 = vunpack.c.h.b16 %v3051
    %v3228 = vunpack.c.l.b16 %v3052
    %v3229 = vunpack.c.h.b16 %v3052
    %v3230 = vunpack.c.l.b16 %v3053
    %v3231 = vunpack.c.h.b16 %v3053
    %v3232 = vunpack.c.l.b16 %v3054
    %v3233 = vunpack.c.h.b16 %v3054
    %v3234 = vunpack.c.l.b16 %v3055
    %v3235 = vunpack.c.h.b16 %v3055
    %v3236 = vunpack.c.l.b16 %v3056
    %v3237 = vunpack.c.h.b16 %v3056
    %v3238 = vunpack.c.l.b16 %v3057
    %v3239 = vunpack.c.h.b16 %v3057
    %v3240 = vunpack.c.l.b16 %v3058
    %v3241 = vunpack.c.h.b16 %v3058
    %v3242 = vunpack.c.l.b16 %v3059
    %v3243 = vunpack.c.h.b16 %v3059
    %v3244 = vunpack.c.l.b16 %v3060
    %v3245 = vunpack.c.h.b16 %v3060
    %v3246 = vunpack.c.l.b16 %v3061
    %v3247 = vunpack.c.h.b16 %v3061
    %v3248 = vunpack.c.l.b16 %v3062
    %v3249 = vunpack.c.h.b16 %v3062
    %v3250 = vunpack.c.l.b16 %v3063
    %v3251 = vunpack.c.h.b16 %v3063
    %v3252 = vunpack.c.l.b16 %v3064
    %v3253 = vunpack.c.h.b16 %v3064
    %v3254 = vunpack.c.l.b16 %v3065
    %v3255 = vunpack.c.h.b16 %v3065
    %v3256 = vunpack.c.l.b16 %v3066
    %v3257 = vunpack.c.h.b16 %v3066
    %v3258 = vunpack.c.l.b16 %v3067
    %v3259 = vunpack.c.h.b16 %v3067
    %v3260 = vpack.c.b16 %v3134, %v3132
    %v3261 = vpack.c.b16 %v3135, %v3133
    %v3262 = vpack.c.b16 %v3138, %v3136
    %v3263 = vpack.c.b16 %v3139, %v3137
    %v3264 = vpack.c.b16 %v3142, %v3140
    %v3265 = vpack.c.b16 %v3143, %v3141
    %v3266 = vpack.c.b16 %v3146, %v3144
    %v3267 = vpack.c.b16 %v3147, %v3145
    %v3268 = vpack.c.b16 %v3150, %v3148
    %v3269 = vpack.c.b16 %v3151, %v3149
    %v3270 = vpack.c.b16 %v3154, %v3152
    %v3271 = vpack.c.b16 %v3155, %v3153
    %v3272 = vpack.c.b16 %v3158, %v3156
    %v3273 = vpack.c.b16 %v3159, %v3157
    %v3274 = vpack.c.b16 %v3162, %v3160
    %v3275 = vpack.c.b16 %v3163, %v3161
    %v3276 = vpack.c.b16 %v3166, %v3164
    %v3277 = vpack.c.b16 %v3167, %v3165
    %v3278 = vpack.c.b16 %v3170, %v3168
    %v3279 = vpack.c.b16 %v3171, %v3169
    %v3280 = vpack.c.b16 %v3174, %v3172
    %v3281 = vpack.c.b16 %v3175, %v3173
    %v3282 = vpack.c.b16 %v3178, %v3176
    %v3283 = vpack.c.b16 %v3179, %v3177
    %v3284 = vpack.c.b16 %v3182, %v3180
    %v3285 = vpack.c.b16 %v3183, %v3181
    %v3286 = vpack.c.b16 %v3186, %v3184
    %v3287 = vpack.c.b16 %v3187, %v3185
    %v3288 = vpack.c.b16 %v3190, %v3188
    %v3289 = vpack.c.b16 %v3191, %v3189
    %v3290 = vpack.c.b16 %v3194, %v3192
    %v3291 = vpack.c.b16 %v3195, %v3193
    %v3292 = vpack.c.b16 %v3198, %v3196
    %v3293 = vpack.c.b16 %v3199, %v3197
    %v3294 = vpack.c.b16 %v3202, %v3200
    %v3295 = vpack.c.b16 %v3203, %v3201
    %v3296 = vpack.c.b16 %v3206, %v3204
    %v3297 = vpack.c.b16 %v3207, %v3205
    %v3298 = vpack.c.b16 %v3210, %v3208
    %v3299 = vpack.c.b16 %v3211, %v3209
    %v3300 = vpack.c.b16 %v3214, %v3212
    %v3301 = vpack.c.b16 %v3215, %v3213
    %v3302 = vpack.c.b16 %v3218, %v3216
    %v3303 = vpack.c.b16 %v3219, %v3217
    %v3304 = vpack.c.b16 %v3222, %v3220
    %v3305 = vpack.c.b16 %v3223, %v3221
    %v3306 = vpack.c.b16 %v3226, %v3224
    %v3307 = vpack.c.b16 %v3227, %v3225
    %v3308 = vpack.c.b16 %v3230, %v3228
    %v3309 = vpack.c.b16 %v3231, %v3229
    %v3310 = vpack.c.b16 %v3234, %v3232
    %v3311 = vpack.c.b16 %v3235, %v3233
    %v3312 = vpack.c.b16 %v3238, %v3236
    %v3313 = vpack.c.b16 %v3239, %v3237
    %v3314 = vpack.c.b16 %v3242, %v3240
    %v3315 = vpack.c.b16 %v3243, %v3241
    %v3316 = vpack.c.b16 %v3246, %v3244
    %v3317 = vpack.c.b16 %v3247, %v3245
    %v3318 = vpack.c.b16 %v3250, %v3248
    %v3319 = vpack.c.b16 %v3251, %v3249
    %v3320 = vpack.c.b16 %v3254, %v3252
    %v3321 = vpack.c.b16 %v3255, %v3253
    %v3322 = vpack.c.b16 %v3258, %v3256
    %v3323 = vpack.c.b16 %v3259, %v3257
    %3388 = vmatprep.subr.bf16.mxu0 %v3275
    %3389 = vmatpush1.bf16.msra.mxu0 %v3274
    %3390 = vmatprep.subr.bf16.mxu0 %v3273
    %3391 = vmatpush1.bf16.msra.mxu0 %v3272
    %3392 = vmatprep.subr.bf16.mxu0 %v3271
    %3393 = vmatpush1.bf16.msra.mxu0 %v3270
    %3394 = vmatprep.subr.bf16.mxu0 %v3269
    %3395 = vmatpush1.bf16.msra.mxu0 %v3268
    %3396 = vmatprep.subr.bf16.mxu0 %v3267
    %3397 = vmatpush1.bf16.msra.mxu0 %v3266
    %3398 = vmatprep.subr.bf16.mxu0 %v3265
    %3399 = vmatpush1.bf16.msra.mxu0 %v3264
    %3400 = vmatprep.subr.bf16.mxu0 %v3263
    %3401 = vmatpush1.bf16.msra.mxu0 %v3262
    %3402 = vmatprep.subr.bf16.mxu0 %v3261
    %3403 = vmatpush1.bf16.msra.mxu0 %v3260
    %3404 = vmatprep.subr.bf16.mxu0 %v3291
    %3405 = vmatpush2.bf16.msra.mxu0 %v3290
    %3406 = vmatprep.subr.bf16.mxu0 %v3289
    %3407 = vmatpush2.bf16.msra.mxu0 %v3288
    %3408 = vmatprep.subr.bf16.mxu0 %v3287
    %3409 = vmatpush2.bf16.msra.mxu0 %v3286
    %3410 = vmatprep.subr.bf16.mxu0 %v3285
    %3411 = vmatpush2.bf16.msra.mxu0 %v3284
    %3412 = vmatprep.subr.bf16.mxu0 %v3283
    %3413 = vmatpush2.bf16.msra.mxu0 %v3282
    %3414 = vmatprep.subr.bf16.mxu0 %v3281
    %3415 = vmatpush2.bf16.msra.mxu0 %v3280
    %3416 = vmatprep.subr.bf16.mxu0 %v3279
    %3417 = vmatpush2.bf16.msra.mxu0 %v3278
    %3418 = vmatprep.subr.bf16.mxu0 %v3277
    %3419 = vmatpush2.bf16.msra.mxu0 %v3276
    %3420 = vmatprep.mubr.bf16.mxu0 %v2491
    %3421 = vmatmul.mubr.bf16.gmra.mxu0 %v2490
    %v3422 = vpop.f32.mrf.mxu0
    %v3423 = vadd.f32 0.0, %v3422
    %v3424 = vpop.f32.mrf.mxu0
    %v3425 = vadd.f32 0.0, %v3424
    %v3426 = vpop.f32.mrf.mxu0
    %v3427 = vpop.f32.mrf.mxu0
    %3428 = vdwg.mxu0
    %3429 = vmatprep.subr.bf16.mxu0 %v3307
    %3430 = vmatpush1.bf16.msra.mxu0 %v3306
    %3431 = vmatprep.subr.bf16.mxu0 %v3305
    %3432 = vmatpush1.bf16.msra.mxu0 %v3304
    %3433 = vmatprep.subr.bf16.mxu0 %v3303
    %3434 = vmatpush1.bf16.msra.mxu0 %v3302
    %3435 = vmatprep.subr.bf16.mxu0 %v3301
    %3436 = vmatpush1.bf16.msra.mxu0 %v3300
    %3437 = vmatprep.subr.bf16.mxu0 %v3299
    %3438 = vmatpush1.bf16.msra.mxu0 %v3298
    %3439 = vmatprep.subr.bf16.mxu0 %v3297
    %3440 = vmatpush1.bf16.msra.mxu0 %v3296
    %3441 = vmatprep.subr.bf16.mxu0 %v3295
    %3442 = vmatpush1.bf16.msra.mxu0 %v3294
    %3443 = vmatprep.subr.bf16.mxu0 %v3293
    %3444 = vmatpush1.bf16.msra.mxu0 %v3292
    %3445 = vmatprep.subr.bf16.mxu0 %v3323
    %3446 = vmatpush2.bf16.msra.mxu0 %v3322
    %3447 = vmatprep.subr.bf16.mxu0 %v3321
    %3448 = vmatpush2.bf16.msra.mxu0 %v3320
    %3449 = vmatprep.subr.bf16.mxu0 %v3319
    %3450 = vmatpush2.bf16.msra.mxu0 %v3318
    %3451 = vmatprep.subr.bf16.mxu0 %v3317
    %3452 = vmatpush2.bf16.msra.mxu0 %v3316
    %3453 = vmatprep.subr.bf16.mxu0 %v3315
    %3454 = vmatpush2.bf16.msra.mxu0 %v3314
    %3455 = vmatprep.subr.bf16.mxu0 %v3313
    %3456 = vmatpush2.bf16.msra.mxu0 %v3312
    %3457 = vmatprep.subr.bf16.mxu0 %v3311
    %3458 = vmatpush2.bf16.msra.mxu0 %v3310
    %3459 = vmatprep.subr.bf16.mxu0 %v3309
    %3460 = vmatpush2.bf16.msra.mxu0 %v3308
    %3461 = vmatprep.mubr.bf16.mxu0 %v2493
    %3462 = vmatmul.mubr.bf16.gmra.mxu0 %v2492
    %v3463 = vpop.f32.mrf.mxu0
    %v3464 = vadd.f32 %v3423, %v3463
    %v3465 = vpop.f32.mrf.mxu0
    %v3466 = vadd.f32 %v3425, %v3465
    %v3467 = vpop.f32.mrf.mxu0
    %v3468 = vpop.f32.mrf.mxu0
    %3469 = vdwg.mxu0
    %v3470 = vpack.c.bf16 %v3464, %v3464
    %v3471 = vpack.c.bf16 %v3466, %v3466
    %v3472 = vld [vmem:[%s10] sm:$0x3]
    %v3475 = vunpack.c.l.s4 1966171168
    %v3476 = vunpack.c.0.s8 %v3475
    %v3477 = vlaneseq
    %v3478 = vshrl.u32 %v3477, 7
    %v3479 = vsub.s32 %v3476, %v3478
    %v3480 = vrot.slane %v3472, %v3479
    %v3481 = vcombine.high %v3480, %v3480
    %v3483 = vunpack.c.l.s4 1966171168
    %v3484 = vunpack.c.0.s8 %v3483
    %v3485 = vlaneseq
    %v3486 = vshrl.u32 %v3485, 7
    %v3487 = vsub.s32 %v3484, %v3486
    %v3488 = vrot.slane %v3480, %v3487
    %v3490 = vunpack.c.l.s4 1966171168
    %v3491 = vunpack.c.0.s8 %v3490
    %v3492 = vlaneseq
    %v3493 = vshrl.u32 %v3492, 7
    %v3494 = vsub.s32 %v3491, %v3493
    %v3495 = vrot.slane %v3481, %v3494
    %v3497 = vpack.i.b16 %v3488, %v3488
    %v3499 = vlaneseq
    %v3500 = vshrl.u32 %v3499, 7
    %v3501 = vsub.s32 0, %v3500
    %v3502 = vrot.slane %v3497, %v3501
    %v3504 = vpack.i.b16 %v3495, %v3495
    %v3506 = vlaneseq
    %v3507 = vshrl.u32 %v3506, 7
    %v3508 = vsub.s32 0, %v3507
    %v3509 = vrot.slane %v3504, %v3508
    %v3510 = vadd.bf16 %v3470, %v3502
    %v3511 = vadd.bf16 %v3471, %v3509
    %v3512 = vmax.bf16 %v3510, 0
    %v3513 = vmax.bf16 %v3511, 0
    %v3514 = vld [vmem:[%s11] sm:$0xf]
    %v3515 = vld [vmem:[%s11 + $0x4] sm:$0xf]
    %v3516 = vld [vmem:[%s11 + $0x8] sm:$0xf]
    %v3517 = vld [vmem:[%s11 + $0xc] sm:$0xf]
    %v3518 = vld [vmem:[%s11 + $0x10] sm:$0xf]
    %v3519 = vld [vmem:[%s11 + $0x14] sm:$0xf]
    %v3520 = vld [vmem:[%s11 + $0x18] sm:$0xf]
    %v3521 = vld [vmem:[%s11 + $0x1c] sm:$0xf]
    %v3522 = vld [vmem:[%s11 + $0x20] sm:$0xf]
    %v3523 = vld [vmem:[%s11 + $0x24] sm:$0xf]
    %v3524 = vld [vmem:[%s11 + $0x28] sm:$0xf]
    %v3525 = vld [vmem:[%s11 + $0x2c] sm:$0xf]
    %v3526 = vld [vmem:[%s11 + $0x30] sm:$0xf]
    %v3527 = vld [vmem:[%s11 + $0x34] sm:$0xf]
    %v3528 = vld [vmem:[%s11 + $0x38] sm:$0xf]
    %v3529 = vld [vmem:[%s11 + $0x3c] sm:$0xf]
    %v3530 = vld [vmem:[%s11 + $0x40] sm:$0xf]
    %v3531 = vld [vmem:[%s11 + $0x44] sm:$0xf]
    %v3532 = vld [vmem:[%s11 + $0x48] sm:$0xf]
    %v3533 = vld [vmem:[%s11 + $0x4c] sm:$0xf]
    %v3534 = vld [vmem:[%s11 + $0x50] sm:$0xf]
    %v3535 = vld [vmem:[%s11 + $0x54] sm:$0xf]
    %v3536 = vld [vmem:[%s11 + $0x58] sm:$0xf]
    %v3537 = vld [vmem:[%s11 + $0x5c] sm:$0xf]
    %v3538 = vld [vmem:[%s11 + $0x60] sm:$0xf]
    %v3539 = vld [vmem:[%s11 + $0x64] sm:$0xf]
    %v3540 = vld [vmem:[%s11 + $0x68] sm:$0xf]
    %v3541 = vld [vmem:[%s11 + $0x6c] sm:$0xf]
    %v3542 = vld [vmem:[%s11 + $0x70] sm:$0xf]
    %v3543 = vld [vmem:[%s11 + $0x74] sm:$0xf]
    %v3544 = vld [vmem:[%s11 + $0x78] sm:$0xf]
    %v3545 = vld [vmem:[%s11 + $0x7c] sm:$0xf]
    %v3546 = vld [vmem:[%s11 + $0x80] sm:$0xf]
    %v3547 = vld [vmem:[%s11 + $0x84] sm:$0xf]
    %v3548 = vld [vmem:[%s11 + $0x88] sm:$0xf]
    %v3549 = vld [vmem:[%s11 + $0x8c] sm:$0xf]
    %v3550 = vld [vmem:[%s11 + $0x90] sm:$0xf]
    %v3551 = vld [vmem:[%s11 + $0x94] sm:$0xf]
    %v3552 = vld [vmem:[%s11 + $0x98] sm:$0xf]
    %v3553 = vld [vmem:[%s11 + $0x9c] sm:$0xf]
    %v3554 = vld [vmem:[%s11 + $0xa0] sm:$0xf]
    %v3555 = vld [vmem:[%s11 + $0xa4] sm:$0xf]
    %v3556 = vld [vmem:[%s11 + $0xa8] sm:$0xf]
    %v3557 = vld [vmem:[%s11 + $0xac] sm:$0xf]
    %v3558 = vld [vmem:[%s11 + $0xb0] sm:$0xf]
    %v3559 = vld [vmem:[%s11 + $0xb4] sm:$0xf]
    %v3560 = vld [vmem:[%s11 + $0xb8] sm:$0xf]
    %v3561 = vld [vmem:[%s11 + $0xbc] sm:$0xf]
    %v3562 = vld [vmem:[%s11 + $0xc0] sm:$0xf]
    %v3563 = vld [vmem:[%s11 + $0xc4] sm:$0xf]
    %v3564 = vld [vmem:[%s11 + $0xc8] sm:$0xf]
    %v3565 = vld [vmem:[%s11 + $0xcc] sm:$0xf]
    %v3566 = vld [vmem:[%s11 + $0xd0] sm:$0xf]
    %v3567 = vld [vmem:[%s11 + $0xd4] sm:$0xf]
    %v3568 = vld [vmem:[%s11 + $0xd8] sm:$0xf]
    %v3569 = vld [vmem:[%s11 + $0xdc] sm:$0xf]
    %v3570 = vld [vmem:[%s11 + $0xe0] sm:$0xf]
    %v3571 = vld [vmem:[%s11 + $0xe4] sm:$0xf]
    %v3572 = vld [vmem:[%s11 + $0xe8] sm:$0xf]
    %v3573 = vld [vmem:[%s11 + $0xec] sm:$0xf]
    %v3574 = vld [vmem:[%s11 + $0xf0] sm:$0xf]
    %v3575 = vld [vmem:[%s11 + $0xf4] sm:$0xf]
    %v3576 = vld [vmem:[%s11 + $0xf8] sm:$0xf]
    %v3577 = vld [vmem:[%s11 + $0xfc] sm:$0xf]
    %v3610 = vunpack.c.l.b16 %v3546
    %v3611 = vunpack.c.l.b16 %v3547
    %v3612 = vunpack.c.l.b16 %v3548
    %v3613 = vunpack.c.l.b16 %v3549
    %v3614 = vunpack.c.l.b16 %v3550
    %v3615 = vunpack.c.l.b16 %v3551
    %v3616 = vunpack.c.l.b16 %v3552
    %v3617 = vunpack.c.l.b16 %v3553
    %v3618 = vunpack.c.l.b16 %v3554
    %v3619 = vunpack.c.l.b16 %v3555
    %v3620 = vunpack.c.l.b16 %v3556
    %v3621 = vunpack.c.l.b16 %v3557
    %v3622 = vunpack.c.l.b16 %v3558
    %v3623 = vunpack.c.l.b16 %v3559
    %v3624 = vunpack.c.l.b16 %v3560
    %v3625 = vunpack.c.l.b16 %v3561
    %v3626 = vunpack.c.l.b16 %v3562
    %v3627 = vunpack.c.l.b16 %v3563
    %v3628 = vunpack.c.l.b16 %v3564
    %v3629 = vunpack.c.l.b16 %v3565
    %v3630 = vunpack.c.l.b16 %v3566
    %v3631 = vunpack.c.l.b16 %v3567
    %v3632 = vunpack.c.l.b16 %v3568
    %v3633 = vunpack.c.l.b16 %v3569
    %v3634 = vunpack.c.l.b16 %v3570
    %v3635 = vunpack.c.l.b16 %v3571
    %v3636 = vunpack.c.l.b16 %v3572
    %v3637 = vunpack.c.l.b16 %v3573
    %v3638 = vunpack.c.l.b16 %v3574
    %v3639 = vunpack.c.l.b16 %v3575
    %v3640 = vunpack.c.l.b16 %v3576
    %v3641 = vunpack.c.l.b16 %v3577
    %v3642 = vpack.c.b16 %v3611, %v3610
    %v3643 = vpack.c.b16 %v3613, %v3612
    %v3644 = vpack.c.b16 %v3615, %v3614
    %v3645 = vpack.c.b16 %v3617, %v3616
    %v3646 = vpack.c.b16 %v3619, %v3618
    %v3647 = vpack.c.b16 %v3621, %v3620
    %v3648 = vpack.c.b16 %v3623, %v3622
    %v3649 = vpack.c.b16 %v3625, %v3624
    %v3650 = vpack.c.b16 %v3627, %v3626
    %v3651 = vpack.c.b16 %v3629, %v3628
    %v3652 = vpack.c.b16 %v3631, %v3630
    %v3653 = vpack.c.b16 %v3633, %v3632
    %v3654 = vpack.c.b16 %v3635, %v3634
    %v3655 = vpack.c.b16 %v3637, %v3636
    %v3656 = vpack.c.b16 %v3639, %v3638
    %v3657 = vpack.c.b16 %v3641, %v3640
    %3674 = vmatprep.subr.bf16.mxu0 0
    %3675 = vmatpush1.bf16.msra.mxu0 %v3649
    %3676 = vmatprep.subr.bf16.mxu0 0
    %3677 = vmatpush1.bf16.msra.mxu0 %v3648
    %3678 = vmatprep.subr.bf16.mxu0 0
    %3679 = vmatpush1.bf16.msra.mxu0 %v3647
    %3680 = vmatprep.subr.bf16.mxu0 0
    %3681 = vmatpush1.bf16.msra.mxu0 %v3646
    %3682 = vmatprep.subr.bf16.mxu0 0
    %3683 = vmatpush1.bf16.msra.mxu0 %v3645
    %3684 = vmatprep.subr.bf16.mxu0 0
    %3685 = vmatpush1.bf16.msra.mxu0 %v3644
    %3686 = vmatprep.subr.bf16.mxu0 0
    %3687 = vmatpush1.bf16.msra.mxu0 %v3643
    %3688 = vmatprep.subr.bf16.mxu0 0
    %3689 = vmatpush1.bf16.msra.mxu0 %v3642
    %3690 = vmatprep.subr.bf16.mxu0 0
    %3691 = vmatpush2.bf16.msra.mxu0 %v3657
    %3692 = vmatprep.subr.bf16.mxu0 0
    %3693 = vmatpush2.bf16.msra.mxu0 %v3656
    %3694 = vmatprep.subr.bf16.mxu0 0
    %3695 = vmatpush2.bf16.msra.mxu0 %v3655
    %3696 = vmatprep.subr.bf16.mxu0 0
    %3697 = vmatpush2.bf16.msra.mxu0 %v3654
    %3698 = vmatprep.subr.bf16.mxu0 0
    %3699 = vmatpush2.bf16.msra.mxu0 %v3653
    %3700 = vmatprep.subr.bf16.mxu0 0
    %3701 = vmatpush2.bf16.msra.mxu0 %v3652
    %3702 = vmatprep.subr.bf16.mxu0 0
    %3703 = vmatpush2.bf16.msra.mxu0 %v3651
    %3704 = vmatprep.subr.bf16.mxu0 0
    %3705 = vmatpush2.bf16.msra.mxu0 %v3650
    %3706 = vmatprep.mubr.bf16.mxu0 %v3513
    %3707 = vmatmul.mubr.bf16.gmra.mxu0 %v3512
    %v3708 = vpop.f32.mrf.mxu0
    %v3709 = vadd.f32 0.0, %v3708
    %v3710 = vpop.f32.mrf.mxu0
    %v3711 = vpop.f32.mrf.mxu0
    %v3712 = vpop.f32.mrf.mxu0
    %3713 = vdwg.mxu0
    %v3746 = vunpack.c.l.b16 %v3514
    %v3747 = vunpack.c.l.b16 %v3515
    %v3748 = vunpack.c.l.b16 %v3516
    %v3749 = vunpack.c.l.b16 %v3517
    %v3750 = vunpack.c.l.b16 %v3518
    %v3751 = vunpack.c.l.b16 %v3519
    %v3752 = vunpack.c.l.b16 %v3520
    %v3753 = vunpack.c.l.b16 %v3521
    %v3754 = vunpack.c.l.b16 %v3522
    %v3755 = vunpack.c.l.b16 %v3523
    %v3756 = vunpack.c.l.b16 %v3524
    %v3757 = vunpack.c.l.b16 %v3525
    %v3758 = vunpack.c.l.b16 %v3526
    %v3759 = vunpack.c.l.b16 %v3527
    %v3760 = vunpack.c.l.b16 %v3528
    %v3761 = vunpack.c.l.b16 %v3529
    %v3762 = vunpack.c.l.b16 %v3530
    %v3763 = vunpack.c.l.b16 %v3531
    %v3764 = vunpack.c.l.b16 %v3532
    %v3765 = vunpack.c.l.b16 %v3533
    %v3766 = vunpack.c.l.b16 %v3534
    %v3767 = vunpack.c.l.b16 %v3535
    %v3768 = vunpack.c.l.b16 %v3536
    %v3769 = vunpack.c.l.b16 %v3537
    %v3770 = vunpack.c.l.b16 %v3538
    %v3771 = vunpack.c.l.b16 %v3539
    %v3772 = vunpack.c.l.b16 %v3540
    %v3773 = vunpack.c.l.b16 %v3541
    %v3774 = vunpack.c.l.b16 %v3542
    %v3775 = vunpack.c.l.b16 %v3543
    %v3776 = vunpack.c.l.b16 %v3544
    %v3777 = vunpack.c.l.b16 %v3545
    %v3778 = vpack.c.b16 %v3747, %v3746
    %v3779 = vpack.c.b16 %v3749, %v3748
    %v3780 = vpack.c.b16 %v3751, %v3750
    %v3781 = vpack.c.b16 %v3753, %v3752
    %v3782 = vpack.c.b16 %v3755, %v3754
    %v3783 = vpack.c.b16 %v3757, %v3756
    %v3784 = vpack.c.b16 %v3759, %v3758
    %v3785 = vpack.c.b16 %v3761, %v3760
    %v3786 = vpack.c.b16 %v3763, %v3762
    %v3787 = vpack.c.b16 %v3765, %v3764
    %v3788 = vpack.c.b16 %v3767, %v3766
    %v3789 = vpack.c.b16 %v3769, %v3768
    %v3790 = vpack.c.b16 %v3771, %v3770
    %v3791 = vpack.c.b16 %v3773, %v3772
    %v3792 = vpack.c.b16 %v3775, %v3774
    %v3793 = vpack.c.b16 %v3777, %v3776
    %3810 = vmatprep.subr.bf16.mxu0 0
    %3811 = vmatpush1.bf16.msra.mxu0 %v3785
    %3812 = vmatprep.subr.bf16.mxu0 0
    %3813 = vmatpush1.bf16.msra.mxu0 %v3784
    %3814 = vmatprep.subr.bf16.mxu0 0
    %3815 = vmatpush1.bf16.msra.mxu0 %v3783
    %3816 = vmatprep.subr.bf16.mxu0 0
    %3817 = vmatpush1.bf16.msra.mxu0 %v3782
    %3818 = vmatprep.subr.bf16.mxu0 0
    %3819 = vmatpush1.bf16.msra.mxu0 %v3781
    %3820 = vmatprep.subr.bf16.mxu0 0
    %3821 = vmatpush1.bf16.msra.mxu0 %v3780
    %3822 = vmatprep.subr.bf16.mxu0 0
    %3823 = vmatpush1.bf16.msra.mxu0 %v3779
    %3824 = vmatprep.subr.bf16.mxu0 0
    %3825 = vmatpush1.bf16.msra.mxu0 %v3778
    %3826 = vmatprep.subr.bf16.mxu0 0
    %3827 = vmatpush2.bf16.msra.mxu0 %v3793
    %3828 = vmatprep.subr.bf16.mxu0 0
    %3829 = vmatpush2.bf16.msra.mxu0 %v3792
    %3830 = vmatprep.subr.bf16.mxu0 0
    %3831 = vmatpush2.bf16.msra.mxu0 %v3791
    %3832 = vmatprep.subr.bf16.mxu0 0
    %3833 = vmatpush2.bf16.msra.mxu0 %v3790
    %3834 = vmatprep.subr.bf16.mxu0 0
    %3835 = vmatpush2.bf16.msra.mxu0 %v3789
    %3836 = vmatprep.subr.bf16.mxu0 0
    %3837 = vmatpush2.bf16.msra.mxu0 %v3788
    %3838 = vmatprep.subr.bf16.mxu0 0
    %3839 = vmatpush2.bf16.msra.mxu0 %v3787
    %3840 = vmatprep.subr.bf16.mxu0 0
    %3841 = vmatpush2.bf16.msra.mxu0 %v3786
    %3842 = vmatprep.mubr.bf16.mxu0 %v3003
    %3843 = vmatmul.mubr.bf16.gmra.mxu0 %v3002
    %v3844 = vpop.f32.mrf.mxu0
    %v3845 = vadd.f32 %v3709, %v3844
    %v3846 = vpop.f32.mrf.mxu0
    %v3847 = vpop.f32.mrf.mxu0
    %v3848 = vpop.f32.mrf.mxu0
    %3849 = vdwg.mxu0
    %v3850 = vld [vmem:[%s12] sm:$0x1]
    %v3852 = vlaneseq
    %v3853 = vshrl.u32 %v3852, 7
    %v3854 = vsub.s32 0, %v3853
    %v3855 = vrot.slane %v3850, %v3854
    %v3857 = vadd.f32 %v3845, %v3855
    %vm3858 = vcmask 58368
    %v3859 = vsel %vm3858, %v3857, 0.0
    %3860 = vadd.xlane.f32.xlu0 %v3859
    %v3861 = vpop.xlane.xlu0 %3860
    %v3862 = vrcp.pop 8.0
    %v3863 = vmul.f32 %v3861, %v3862
    %v3864 = vsub.f32 %v3857, %v3863
    %3866 = vset.pattern.permute.xlu0 8
    %3867 = vperm.xlu0 %3866, %v3857
    %v3868 = vpop.permute.xlu0 %3867
    %v3870 = vadd.f32 %v3868, %v3864
    %3871 = vst.msk [vmem:[#allocation10] sm:$0x3] %vm3858, %v3870
    // Predicated region
    $region70: #{tpu_custom_call.1} parent=1 // pred_check
      _
    $region71: #{tpu_custom_call.1} parent=1 // pred_check_branch
      %3873 = sbr.rel (0) target = $region73
    $region72: #{tpu_custom_call.1} parent=1 // pred_region
      %s3875 = ssub.s32 32, 32
      %3876 = vsyncadd [#allocation4], %s3875
      %s3878 = sshll.u32 [#allocation10], 4
      %s3879 = int_to_ptr.vmem [resolvable:$true] %s3878
      %3881 = dma.vmem_to_hbm [thread:$0]  %s3879, 32, %s13, [#allocation4]
    $region73: #{tpu_custom_call.1} parent=1 // pred_fallthru
      _
    // Predicated region
    $region74: #{tpu_custom_call.1} parent=1 // pred_check
      _
    $region75: #{tpu_custom_call.1} parent=1 // pred_check_branch
      %3883 = sbr.rel (0) target = $region77
    $region76: #{tpu_custom_call.1} parent=1 // pred_region
      %3884 = dma.done [#allocation4], 32
    $region77: #{tpu_custom_call.1} parent=1 // pred_fallthru
      _
    %3885 = vsyncpa [#allocation3], 1
    %3886 = vsyncpa [#allocation6], 1
    %3887 = vsyncpa [#allocation9], 1
    %3888 = vsyncpa [#allocation4], 1

</llo_original>
